<compile_context>
chip_gen: v7x
topology: tpu7x:2x2x1
jax: 0.10.0
libtpu: 0.0.40
codegen_flags: <defaults>
</compile_context>

<pallas_src>
import jax
import jax.numpy as jnp
from jax import lax
from jax.experimental import pallas as pl
from jax.experimental.pallas import tpu as pltpu

# ---- hyperparameters (match the script globals) -----------------------------
LASER_DIM = 90
NUM_AGENTS = 5
RELPOS_DIM = 3
NOMINAL_DIM = 3
HIDDEN_DIM = 64
ACTION_DIM = 3

# derived conv geometry for laser_dim = 90
L1 = (LASER_DIM + 2 * 2 - 5) // 2 + 1      # conv1 (k5,s2,p2) output length = 45
LP = L1 // 2                               # after MaxPool1d(2)             = 22
L2 = LP                                    # conv2 (k3,s1,p1) output length = 22
POOL_OUT = 16                              # AdaptiveAvgPool1d(16)
CONV_OUT_DIM = 32 * POOL_OUT               # 512
JOINT_IN = CONV_OUT_DIM + 64               # 576

DEFAULT_TILE_B = 32                        # batch elements per grid step


def _pool_bins():
    """Static AdaptiveAvgPool1d(22 -> 16) bins, (start, end) per output pos."""
    bins = []
    for i in range(POOL_OUT):
        s = (i * L2) // POOL_OUT
        e = -(-((i + 1) * L2) // POOL_OUT)          # ceil
        bins.append((s, e))
    return tuple(bins)


_POOL_BINS = _pool_bins()

# offsets of the sub-matrices packed into the (768, 64) weight slab
_OFF_WJL = 0                                # 16 x (32,64) pooled->joint weights
_OFF_ENCW2 = POOL_OUT * 32                  # 512: block-diag encoder W2 (128,64)
_OFF_WPN = _OFF_ENCW2 + 128                 # 640: stacked [wjp; wjn]    (64,64)
_OFF_JW2 = _OFF_WPN + 64                    # 704: joint W2              (64,64)
_BIG_ROWS = _OFF_JW2 + 64                   # 768


# =============================================================================
# Fused kernel factory (tile size is a trace-time constant)
# =============================================================================
def _make_kernel(tb):
    rows_l = tb * LP            # conv rows per tile, (l, b) order
    rows_h = tb * NUM_AGENTS    # head rows per tile, (a, b) order

    def kernel(conv_in_ref, enc_in_ref, w1_ref, w2_ref, encw1_ref, big_ref,
               bias_ref, headw_ref, out_ref, hp_pad_ref):
        f32 = jnp.float32

        def dot(a, b):
            return jnp.dot(a, b, preferred_element_type=f32)

        def relu(x):
            return jnp.maximum(x, 0.0)

        # --- conv1 (k5,s2,p2) + ReLU on the stacked even/odd output patches
        #     (one matmul, one weight latch), MaxPool1d(2) as elementwise max.
        b1 = bias_ref[0:1, 0:16]
        h_all = relu(dot(conv_in_ref[...], w1_ref[...]) + b1)    # (2*rows_l, 16)
        hp = jnp.maximum(h_all[:rows_l], h_all[rows_l:])         # (rows_l, 16)

        # --- conv2 (k3,s1,p1) + ReLU: (l, b) row order means the +-1 taps are
        #     static sublane-shifted slices of a zero-padded VMEM scratch.
        zrow = jnp.zeros((tb, 16), f32)
        hp_pad_ref[0:tb, :] = zrow                     # l = -1 zero padding
        hp_pad_ref[tb:tb + rows_l, :] = hp
        hp_pad_ref[tb + rows_l:, :] = zrow             # l = LP zero padding
        b2 = bias_ref[1:2, 0:32]
        h2 = relu(dot(hp_pad_ref[0:rows_l, :], w2_ref[0])                  # l-1
                  + dot(hp_pad_ref[tb:tb + rows_l, :], w2_ref[1])          # l
                  + dot(hp_pad_ref[2 * tb:2 * tb + rows_l, :], w2_ref[2])  # l+1
                  + b2)                                          # (rows_l, 32)

        # --- AdaptiveAvgPool1d(22->16) + channel-major Flatten + laser part of
        #     joint_net.  The 1/n averaging is folded into the weights, so
        #     j_laser = sum_p (sum of bin-p rows) @ Wjl_p        -> (tb, 64)
        j_laser = None
        for p, (s, e) in enumerate(_POOL_BINS):
            blk = h2[s * tb:(s + 1) * tb, :]
            for l in range(s + 1, e):
                blk = blk + h2[l * tb:(l + 1) * tb, :]
            contrib = dot(blk,
                          big_ref[_OFF_WJL + p * 32:_OFF_WJL + (p + 1) * 32, :])
            j_laser = contrib if j_laser is None else j_laser + contrib

        # --- fused pos / nominal-pos encoders (block-diagonal weights) -------
        enc_b1 = bias_ref[2:3, :]                                # (1, 128)
        enc_b2 = bias_ref[3:4, 0:64]                             # (1, 64)
        henc = relu(dot(enc_in_ref[...], encw1_ref[...]) + enc_b1)      # (rows_h,128)
        enc_feat = (dot(henc, big_ref[_OFF_ENCW2:_OFF_ENCW2 + 128, :])
                    + enc_b2)                                    # (rows_h, 64)

        # --- joint_net + action_head ------------------------------------------
        j_b1 = bias_ref[4:5, 0:64]
        j_b2 = bias_ref[5:6, 0:64]
        h_b = bias_ref[6:7, 0:ACTION_DIM]
        laser_rows = jnp.concatenate([j_laser] * NUM_AGENTS, axis=0)   # (rows_h,64)
        j = relu(laser_rows
                 + dot(enc_feat, big_ref[_OFF_WPN:_OFF_WPN + 64, :]) + j_b1)
        h = relu(dot(j, big_ref[_OFF_JW2:_OFF_JW2 + 64, :]) + j_b2)
        out_ref[...] = dot(h, headw_ref[...]) + h_b              # (rows_h, 3)

    return kernel


# =============================================================================
# Parameters (deterministic, PyTorch-convention shapes)
# =============================================================================
def init_params(key):
    ks = jax.random.split(key, 18)

    def w(k, shape, fan_in):
        return jax.random.normal(k, shape, jnp.float32) / jnp.sqrt(fan_in)

    p = {}
    p["conv1_w"] = w(ks[0], (16, 3, 5), 15)              # Conv1d: (out, in, k)
    p["conv1_b"] = w(ks[1], (16,), 15)
    p["conv2_w"] = w(ks[2], (32, 16, 3), 48)
    p["conv2_b"] = w(ks[3], (32,), 48)
    p["pos_w1"] = w(ks[4], (64, 3), 3)                   # Linear: (out, in)
    p["pos_b1"] = w(ks[5], (64,), 3)
    p["pos_w2"] = w(ks[6], (32, 64), 64)
    p["pos_b2"] = w(ks[7], (32,), 64)
    p["nom_w1"] = w(ks[8], (64, 3), 3)
    p["nom_b1"] = w(ks[9], (64,), 3)
    p["nom_w2"] = w(ks[10], (32, 64), 64)
    p["nom_b2"] = w(ks[11], (32,), 64)
    p["j_w1"] = w(ks[12], (HIDDEN_DIM, JOINT_IN), JOINT_IN)
    p["j_b1"] = w(ks[13], (HIDDEN_DIM,), JOINT_IN)
    p["j_w2"] = w(ks[14], (HIDDEN_DIM, HIDDEN_DIM), HIDDEN_DIM)
    p["j_b2"] = w(ks[15], (HIDDEN_DIM,), HIDDEN_DIM)
    p["head_w"] = w(ks[16], (ACTION_DIM, HIDDEN_DIM), HIDDEN_DIM)
    p["head_b"] = w(ks[17], (ACTION_DIM,), HIDDEN_DIM)
    p["log_std"] = jnp.ones((1, NUM_AGENTS, ACTION_DIM), jnp.float32) * -2.2  # unused in output
    return p


# =============================================================================
# Forward wrapper (glue: im2col, weight packing, batch tiling)
# =============================================================================
def laser_fc_actor_forward(params, laser_input, relative_pos, nominal_pos,
                           tile_b=DEFAULT_TILE_B):
    f32 = jnp.float32
    B = laser_input.shape[0]
    A = NUM_AGENTS

    # batch tile: big enough to amortize per-grid-step overhead, but don't pad
    # a tiny batch all the way up to the default tile.
    tb = int(min(tile_b, max(8, -(-B // 8) * 8)))
    tb = max(8, (tb // 8) * 8)
    rows_l = tb * LP
    rows_h = tb * A
    n_tiles = -(-B // tb)
    Bp = n_tiles * tb
    pad = Bp - B

    # --- conv1 im2col patches, stacked (parity, l, b) row order per tile -----
    # TODO(synk): fuse the im2col / layout shuffle into the kernel (DMA the raw
    # (tb,3,94) laser tile) to drop this extra HBM round trip.
    x = jnp.pad(laser_input.astype(f32), ((0, pad), (0, 0), (0, 0)))
    xp = jnp.pad(x, ((0, 0), (0, 0), (2, 2)))                        # (Bp,3,94)
    idx = 2 * jnp.arange(L1)[:, None] + jnp.arange(5)[None, :]       # (45,5)
    patches = jnp.transpose(xp[:, :, idx], (0, 2, 1, 3)).reshape(Bp, L1, 15)
    pe = patches[:, 0:2 * LP:2, :].reshape(n_tiles, tb, LP, 15)      # even pos
    po = patches[:, 1:2 * LP:2, :].reshape(n_tiles, tb, LP, 15)      # odd  pos
    pe = jnp.transpose(pe, (0, 2, 1, 3))                             # (g,l,b,15)
    po = jnp.transpose(po, (0, 2, 1, 3))
    conv_in = jnp.stack([pe, po], axis=1).reshape(n_tiles * 2 * rows_l, 15)

    # --- rel||nom encoder input, (a, b) row order per tile --------------------
    rel = jnp.pad(relative_pos.astype(f32), ((0, pad), (0, 0), (0, 0)))
    nom = jnp.pad(nominal_pos.astype(f32), ((0, pad), (0, 0), (0, 0)))
    enc = jnp.concatenate([rel, nom], axis=-1)                       # (Bp,A,6)
    enc_in = jnp.transpose(enc.reshape(n_tiles, tb, A, 6),
                           (0, 2, 1, 3)).reshape(n_tiles * rows_h, 6)

    # --- weight re-layouts (built once per trace; kept f32 for accuracy) ------
    # TODO(synk): optionally cast weights/patches to bf16 (f32 accumulation) to
    # halve VMEM/HBM traffic; needs a looser tolerance vs the f32 reference.
    w1 = params["conv1_w"].reshape(16, 15).T                         # (15,16)
    w2 = jnp.transpose(params["conv2_w"], (2, 1, 0))                 # (3,16,32)

    wj = params["j_w1"]                                              # (64,576)
    inv_n = jnp.array([1.0 / (e - s) for s, e in _POOL_BINS], f32)
    # channel-major Flatten: laser column index = c*16 + p
    wjl = jnp.transpose(wj[:, :CONV_OUT_DIM].reshape(HIDDEN_DIM, 32, POOL_OUT),
                        (2, 1, 0)) * inv_n[:, None, None]            # (16,32,64)
    wjl = wjl.reshape(POOL_OUT * 32, HIDDEN_DIM)                     # (512,64)
    encw2 = (jnp.zeros((128, 64), f32)
             .at[:64, :32].set(params["pos_w2"].T)
             .at[64:, 32:].set(params["nom_w2"].T))                  # (128,64)
    wpn = jnp.concatenate([wj[:, CONV_OUT_DIM:CONV_OUT_DIM + 32].T,
                           wj[:, CONV_OUT_DIM + 32:].T], axis=0)     # (64,64)
    big64 = jnp.concatenate([wjl, encw2, wpn, params["j_w2"].T], axis=0)  # (768,64)

    encw1 = (jnp.zeros((6, 128), f32)
             .at[:3, :64].set(params["pos_w1"].T)
             .at[3:, 64:].set(params["nom_w1"].T))                   # (6,128)

    bias = jnp.zeros((8, 128), f32)
    bias = bias.at[0, :16].set(params["conv1_b"])
    bias = bias.at[1, :32].set(params["conv2_b"])
    bias = bias.at[2, :64].set(params["pos_b1"])
    bias = bias.at[2, 64:].set(params["nom_b1"])
    bias = bias.at[3, :32].set(params["pos_b2"])
    bias = bias.at[3, 32:64].set(params["nom_b2"])
    bias = bias.at[4, :64].set(params["j_b1"])
    bias = bias.at[5, :64].set(params["j_b2"])
    bias = bias.at[6, :ACTION_DIM].set(params["head_b"])

    headw = params["head_w"].T                                       # (64,3)

    def _const(shape):
        nd = len(shape)
        return pl.BlockSpec(shape, lambda *_: (0,) * nd)

    out = pl.pallas_call(
        _make_kernel(tb),
        out_shape=jax.ShapeDtypeStruct((n_tiles * rows_h, ACTION_DIM), f32),
        grid=(n_tiles,),
        in_specs=[
            pl.BlockSpec((2 * rows_l, 15), lambda g: (g, 0)),   # conv patches
            pl.BlockSpec((rows_h, 6), lambda g: (g, 0)),        # rel||nom
            _const((15, 16)),                                   # conv1 weight
            _const((3, 16, 32)),                                # conv2 taps
            _const((6, 128)),                                   # encoder W1
            _const((_BIG_ROWS, 64)),                            # packed 64-wide weights
            _const((8, 128)),                                   # packed biases
            _const((64, ACTION_DIM)),                           # head weight
        ],
        out_specs=pl.BlockSpec((rows_h, ACTION_DIM), lambda g: (g, 0)),
        scratch_shapes=[pltpu.VMEM((rows_l + 2 * tb, 16), f32)],
        compiler_params=pltpu.CompilerParams(
            dimension_semantics=("parallel",)),
    )(conv_in, enc_in, w1, w2, encw1, big64, bias, headw)

    # rows are (tile, agent, batch) -> back to (batch, agent, action)
    out = out.reshape(n_tiles, A, tb, ACTION_DIM)
    out = jnp.transpose(out, (0, 2, 1, 3)).reshape(Bp, A, ACTION_DIM)
    return out[:B]                                                   # action_mean


# =============================================================================
# Pure-JAX reference (mirrors the PyTorch forward) for correctness checking
# =============================================================================
def reference_forward(params, laser_input, relative_pos, nominal_pos):
    B = laser_input.shape[0]
    A = NUM_AGENTS
    y = lax.conv_general_dilated(laser_input, params["conv1_w"], (2,), [(2, 2)],
                                 dimension_numbers=("NCH", "OIH", "NCH"))
    y = jnp.maximum(y + params["conv1_b"][None, :, None], 0.0)
    y = lax.reduce_window(y, -jnp.inf, lax.max, (1, 1, 2), (1, 1, 2), "VALID")
    y = lax.conv_general_dilated(y, params["conv2_w"], (1,), [(1, 1)],
                                 dimension_numbers=("NCH", "OIH", "NCH"))
    y = jnp.maximum(y + params["conv2_b"][None, :, None], 0.0)
    cols = []
    for s, e in _POOL_BINS:
        cols.append(jnp.mean(y[:, :, s:e], axis=-1))
    y = jnp.stack(cols, axis=-1)                                     # (B,32,16)
    laser_feat = y.reshape(B, -1)                                    # (B,512)

    def mlp2(x, w1, b1, w2, b2):
        return jnp.maximum(x @ w1.T + b1, 0.0) @ w2.T + b2

    pos_f = mlp2(relative_pos.reshape(-1, 3), params["pos_w1"], params["pos_b1"],
                 params["pos_w2"], params["pos_b2"])
    nom_f = mlp2(nominal_pos.reshape(-1, 3), params["nom_w1"], params["nom_b1"],
                 params["nom_w2"], params["nom_b2"])
    comb = jnp.concatenate([jnp.repeat(laser_feat, A, axis=0), pos_f, nom_f], -1)
    h = jnp.maximum(comb @ params["j_w1"].T + params["j_b1"], 0.0)
    h = jnp.maximum(h @ params["j_w2"].T + params["j_b2"], 0.0)
    out = h @ params["head_w"].T + params["head_b"]
    return out.reshape(B, A, ACTION_DIM)


if __name__ == "__main__":
    key = jax.random.PRNGKey(0)
    kp, kd = jax.random.split(key)
    params = init_params(kp)

    fwd = jax.jit(laser_fc_actor_forward)

    # B=2: tiny batch (single 8-row tile); B=40: two 32-row tiles with padding.
    for B in (2, 40):
        kb = jax.random.fold_in(kd, B)
        kl, kr, kn = jax.random.split(kb, 3)
        laser_input = jax.random.normal(kl, (B, 3, LASER_DIM), jnp.float32)
        relative_pos = jax.random.normal(kr, (B, NUM_AGENTS, RELPOS_DIM), jnp.float32)
        nominal_pos = jax.random.normal(kn, (B, NUM_AGENTS, NOMINAL_DIM), jnp.float32)

        action_mean = jax.block_until_ready(
            fwd(params, laser_input, relative_pos, nominal_pos))
        ref = reference_forward(params, laser_input, relative_pos, nominal_pos)
        assert action_mean.shape == (B, NUM_AGENTS, ACTION_DIM)
        assert jnp.allclose(action_mean, ref, atol=1e-3, rtol=1e-3), f"mismatch at B={B}"

    print("KERNEL_OK")
</pallas_src>

<mosaic_0001>
module attributes {stable_mosaic.version = 11 : i64} {
  func.func @kernel(%arg0: i32, %arg1: memref<352x15xf32, #tpu.memory_space<vmem>>, %arg2: memref<40x6xf32, #tpu.memory_space<vmem>>, %arg3: memref<15x16xf32, #tpu.memory_space<vmem>>, %arg4: memref<3x16x32xf32, #tpu.memory_space<vmem>>, %arg5: memref<6x128xf32, #tpu.memory_space<vmem>>, %arg6: memref<768x64xf32, #tpu.memory_space<vmem>>, %arg7: memref<8x128xf32, #tpu.memory_space<vmem>>, %arg8: memref<64x3xf32, #tpu.memory_space<vmem>>, %arg9: memref<40x3xf32, #tpu.memory_space<vmem>>, %arg10: memref<192x16xf32, #tpu.memory_space<vmem>>) attributes {dimension_semantics = [#tpu.dimension_semantics<parallel>], iteration_bounds = array<i64: 1>, scalar_prefetch = 0 : i64, scratch_operands = 1 : i64, tpu.core_type = #tpu.core_type<tc>, window_params = [{transform_indices = @transform_0, window_bounds = array<i64: 352, 15>}, {transform_indices = @transform_1, window_bounds = array<i64: 40, 6>}, {pipeline_mode = #tpu.pipeline_mode<synchronous>, transform_indices = @transform_2, window_bounds = array<i64: 15, 16>}, {pipeline_mode = #tpu.pipeline_mode<synchronous>, transform_indices = @transform_3, window_bounds = array<i64: 3, 16, 32>}, {pipeline_mode = #tpu.pipeline_mode<synchronous>, transform_indices = @transform_4, window_bounds = array<i64: 6, 128>}, {pipeline_mode = #tpu.pipeline_mode<synchronous>, transform_indices = @transform_5, window_bounds = array<i64: 768, 64>}, {pipeline_mode = #tpu.pipeline_mode<synchronous>, transform_indices = @transform_6, window_bounds = array<i64: 8, 128>}, {pipeline_mode = #tpu.pipeline_mode<synchronous>, transform_indices = @transform_7, window_bounds = array<i64: 64, 3>}, {transform_indices = @transform_8, window_bounds = array<i64: 40, 3>}]} {
    %c0 = arith.constant 0 : index
    %c0_0 = arith.constant 0 : index
    %0 = vector.load %arg7[%c0, %c0_0] : memref<8x128xf32, #tpu.memory_space<vmem>>, vector<1x16xf32>
    %c0_1 = arith.constant 0 : index
    %c0_2 = arith.constant 0 : index
    %1 = vector.load %arg1[%c0_1, %c0_2] : memref<352x15xf32, #tpu.memory_space<vmem>>, vector<352x15xf32>
    %c0_3 = arith.constant 0 : index
    %c0_4 = arith.constant 0 : index
    %2 = vector.load %arg3[%c0_3, %c0_4] : memref<15x16xf32, #tpu.memory_space<vmem>>, vector<15x16xf32>
    %cst = arith.constant dense<0.000000e+00> : vector<352x16xf32>
    %3 = tpu.matmul %1, %2, %cst {dimension_numbers = #tpu.dot_dimension_numbers<[1], [0], [0], [1], [0, 0, 1, 1], [], []>} : vector<352x15xf32>, vector<15x16xf32>, vector<352x16xf32> -> vector<352x16xf32>
    %4 = vector.broadcast %0 : vector<1x16xf32> to vector<352x16xf32>
    %5 = arith.addf %3, %4 : vector<352x16xf32>
    %cst_5 = arith.constant 0.000000e+00 : f32
    %6 = vector.broadcast %cst_5 : f32 to vector<352x16xf32>
    %7 = arith.maximumf %5, %6 : vector<352x16xf32>
    %8 = vector.extract_strided_slice %7 {offsets = [0, 0], sizes = [176, 16], strides = [1, 1]} : vector<352x16xf32> to vector<176x16xf32>
    %9 = vector.extract_strided_slice %7 {offsets = [176, 0], sizes = [176, 16], strides = [1, 1]} : vector<352x16xf32> to vector<176x16xf32>
    %10 = arith.maximumf %8, %9 : vector<176x16xf32>
    %cst_6 = arith.constant 0.000000e+00 : f32
    %11 = vector.broadcast %cst_6 : f32 to vector<8x16xf32>
    %c0_7 = arith.constant 0 : index
    %c0_8 = arith.constant 0 : index
    %12 = vector.load %arg10[%c0_7, %c0_8] : memref<192x16xf32, #tpu.memory_space<vmem>>, vector<8x16xf32>
    tpu.vector_store %arg10[%c0_7, %c0_8], %11 {strides = array<i32>} : memref<192x16xf32, #tpu.memory_space<vmem>>, vector<8x16xf32>,
    %c8 = arith.constant 8 : index
    %c0_9 = arith.constant 0 : index
    %13 = vector.load %arg10[%c8, %c0_9] : memref<192x16xf32, #tpu.memory_space<vmem>>, vector<176x16xf32>
    tpu.vector_store %arg10[%c8, %c0_9], %10 {strides = array<i32>} : memref<192x16xf32, #tpu.memory_space<vmem>>, vector<176x16xf32>,
    %c184 = arith.constant 184 : index
    %c0_10 = arith.constant 0 : index
    %14 = vector.load %arg10[%c184, %c0_10] : memref<192x16xf32, #tpu.memory_space<vmem>>, vector<8x16xf32>
    tpu.vector_store %arg10[%c184, %c0_10], %11 {strides = array<i32>} : memref<192x16xf32, #tpu.memory_space<vmem>>, vector<8x16xf32>,
    %c1 = arith.constant 1 : index
    %c0_11 = arith.constant 0 : index
    %15 = vector.load %arg7[%c1, %c0_11] : memref<8x128xf32, #tpu.memory_space<vmem>>, vector<1x32xf32>
    %c0_12 = arith.constant 0 : index
    %c0_13 = arith.constant 0 : index
    %16 = vector.load %arg10[%c0_12, %c0_13] : memref<192x16xf32, #tpu.memory_space<vmem>>, vector<176x16xf32>
    %c0_14 = arith.constant 0 : index
    %c0_15 = arith.constant 0 : index
    %c0_16 = arith.constant 0 : index
    %17 = vector.load %arg4[%c0_14, %c0_15, %c0_16] : memref<3x16x32xf32, #tpu.memory_space<vmem>>, vector<1x16x32xf32>
    %18 = vector.shape_cast %17 : vector<1x16x32xf32> to vector<16x32xf32>
    %cst_17 = arith.constant dense<0.000000e+00> : vector<176x32xf32>
    %19 = tpu.matmul %16, %18, %cst_17 {dimension_numbers = #tpu.dot_dimension_numbers<[1], [0], [0], [1], [0, 0, 1, 1], [], []>} : vector<176x16xf32>, vector<16x32xf32>, vector<176x32xf32> -> vector<176x32xf32>
    %c8_18 = arith.constant 8 : index
    %c0_19 = arith.constant 0 : index
    %20 = vector.load %arg10[%c8_18, %c0_19] : memref<192x16xf32, #tpu.memory_space<vmem>>, vector<176x16xf32>
    %c1_20 = arith.constant 1 : index
    %c0_21 = arith.constant 0 : index
    %c0_22 = arith.constant 0 : index
    %21 = vector.load %arg4[%c1_20, %c0_21, %c0_22] : memref<3x16x32xf32, #tpu.memory_space<vmem>>, vector<1x16x32xf32>
    %22 = vector.shape_cast %21 : vector<1x16x32xf32> to vector<16x32xf32>
    %cst_23 = arith.constant dense<0.000000e+00> : vector<176x32xf32>
    %23 = tpu.matmul %20, %22, %cst_23 {dimension_numbers = #tpu.dot_dimension_numbers<[1], [0], [0], [1], [0, 0, 1, 1], [], []>} : vector<176x16xf32>, vector<16x32xf32>, vector<176x32xf32> -> vector<176x32xf32>
    %24 = arith.addf %19, %23 : vector<176x32xf32>
    %c16 = arith.constant 16 : index
    %c0_24 = arith.constant 0 : index
    %25 = vector.load %arg10[%c16, %c0_24] : memref<192x16xf32, #tpu.memory_space<vmem>>, vector<176x16xf32>
    %c2 = arith.constant 2 : index
    %c0_25 = arith.constant 0 : index
    %c0_26 = arith.constant 0 : index
    %26 = vector.load %arg4[%c2, %c0_25, %c0_26] : memref<3x16x32xf32, #tpu.memory_space<vmem>>, vector<1x16x32xf32>
    %27 = vector.shape_cast %26 : vector<1x16x32xf32> to vector<16x32xf32>
    %cst_27 = arith.constant dense<0.000000e+00> : vector<176x32xf32>
    %28 = tpu.matmul %25, %27, %cst_27 {dimension_numbers = #tpu.dot_dimension_numbers<[1], [0], [0], [1], [0, 0, 1, 1], [], []>} : vector<176x16xf32>, vector<16x32xf32>, vector<176x32xf32> -> vector<176x32xf32>
    %29 = arith.addf %24, %28 : vector<176x32xf32>
    %30 = vector.broadcast %15 : vector<1x32xf32> to vector<176x32xf32>
    %31 = arith.addf %29, %30 : vector<176x32xf32>
    %cst_28 = arith.constant 0.000000e+00 : f32
    %32 = vector.broadcast %cst_28 : f32 to vector<176x32xf32>
    %33 = arith.maximumf %31, %32 : vector<176x32xf32>
    %34 = vector.extract_strided_slice %33 {offsets = [0, 0], sizes = [8, 32], strides = [1, 1]} : vector<176x32xf32> to vector<8x32xf32>
    %35 = vector.extract_strided_slice %33 {offsets = [8, 0], sizes = [8, 32], strides = [1, 1]} : vector<176x32xf32> to vector<8x32xf32>
    %36 = arith.addf %34, %35 : vector<8x32xf32>
    %c0_29 = arith.constant 0 : index
    %c0_30 = arith.constant 0 : index
    %37 = vector.load %arg6[%c0_29, %c0_30] : memref<768x64xf32, #tpu.memory_space<vmem>>, vector<32x64xf32>
    %cst_31 = arith.constant dense<0.000000e+00> : vector<8x64xf32>
    %38 = tpu.matmul %36, %37, %cst_31 {dimension_numbers = #tpu.dot_dimension_numbers<[1], [0], [0], [1], [0, 0, 1, 1], [], []>} : vector<8x32xf32>, vector<32x64xf32>, vector<8x64xf32> -> vector<8x64xf32>
    %39 = vector.extract_strided_slice %33 {offsets = [8, 0], sizes = [8, 32], strides = [1, 1]} : vector<176x32xf32> to vector<8x32xf32>
    %40 = vector.extract_strided_slice %33 {offsets = [16, 0], sizes = [8, 32], strides = [1, 1]} : vector<176x32xf32> to vector<8x32xf32>
    %41 = arith.addf %39, %40 : vector<8x32xf32>
    %c32 = arith.constant 32 : index
    %c0_32 = arith.constant 0 : index
    %42 = vector.load %arg6[%c32, %c0_32] : memref<768x64xf32, #tpu.memory_space<vmem>>, vector<32x64xf32>
    %cst_33 = arith.constant dense<0.000000e+00> : vector<8x64xf32>
    %43 = tpu.matmul %41, %42, %cst_33 {dimension_numbers = #tpu.dot_dimension_numbers<[1], [0], [0], [1], [0, 0, 1, 1], [], []>} : vector<8x32xf32>, vector<32x64xf32>, vector<8x64xf32> -> vector<8x64xf32>
    %44 = arith.addf %38, %43 : vector<8x64xf32>
    %45 = vector.extract_strided_slice %33 {offsets = [16, 0], sizes = [8, 32], strides = [1, 1]} : vector<176x32xf32> to vector<8x32xf32>
    %46 = vector.extract_strided_slice %33 {offsets = [24, 0], sizes = [8, 32], strides = [1, 1]} : vector<176x32xf32> to vector<8x32xf32>
    %47 = arith.addf %45, %46 : vector<8x32xf32>
    %48 = vector.extract_strided_slice %33 {offsets = [32, 0], sizes = [8, 32], strides = [1, 1]} : vector<176x32xf32> to vector<8x32xf32>
    %49 = arith.addf %47, %48 : vector<8x32xf32>
    %c64 = arith.constant 64 : index
    %c0_34 = arith.constant 0 : index
    %50 = vector.load %arg6[%c64, %c0_34] : memref<768x64xf32, #tpu.memory_space<vmem>>, vector<32x64xf32>
    %cst_35 = arith.constant dense<0.000000e+00> : vector<8x64xf32>
    %51 = tpu.matmul %49, %50, %cst_35 {dimension_numbers = #tpu.dot_dimension_numbers<[1], [0], [0], [1], [0, 0, 1, 1], [], []>} : vector<8x32xf32>, vector<32x64xf32>, vector<8x64xf32> -> vector<8x64xf32>
    %52 = arith.addf %44, %51 : vector<8x64xf32>
    %53 = vector.extract_strided_slice %33 {offsets = [32, 0], sizes = [8, 32], strides = [1, 1]} : vector<176x32xf32> to vector<8x32xf32>
    %54 = vector.extract_strided_slice %33 {offsets = [40, 0], sizes = [8, 32], strides = [1, 1]} : vector<176x32xf32> to vector<8x32xf32>
    %55 = arith.addf %53, %54 : vector<8x32xf32>
    %c96 = arith.constant 96 : index
    %c0_36 = arith.constant 0 : index
    %56 = vector.load %arg6[%c96, %c0_36] : memref<768x64xf32, #tpu.memory_space<vmem>>, vector<32x64xf32>
    %cst_37 = arith.constant dense<0.000000e+00> : vector<8x64xf32>
    %57 = tpu.matmul %55, %56, %cst_37 {dimension_numbers = #tpu.dot_dimension_numbers<[1], [0], [0], [1], [0, 0, 1, 1], [], []>} : vector<8x32xf32>, vector<32x64xf32>, vector<8x64xf32> -> vector<8x64xf32>
    %58 = arith.addf %52, %57 : vector<8x64xf32>
    %59 = vector.extract_strided_slice %33 {offsets = [40, 0], sizes = [8, 32], strides = [1, 1]} : vector<176x32xf32> to vector<8x32xf32>
    %60 = vector.extract_strided_slice %33 {offsets = [48, 0], sizes = [8, 32], strides = [1, 1]} : vector<176x32xf32> to vector<8x32xf32>
    %61 = arith.addf %59, %60 : vector<8x32xf32>
    %c128 = arith.constant 128 : index
    %c0_38 = arith.constant 0 : index
    %62 = vector.load %arg6[%c128, %c0_38] : memref<768x64xf32, #tpu.memory_space<vmem>>, vector<32x64xf32>
    %cst_39 = arith.constant dense<0.000000e+00> : vector<8x64xf32>
    %63 = tpu.matmul %61, %62, %cst_39 {dimension_numbers = #tpu.dot_dimension_numbers<[1], [0], [0], [1], [0, 0, 1, 1], [], []>} : vector<8x32xf32>, vector<32x64xf32>, vector<8x64xf32> -> vector<8x64xf32>
    %64 = arith.addf %58, %63 : vector<8x64xf32>
    %65 = vector.extract_strided_slice %33 {offsets = [48, 0], sizes = [8, 32], strides = [1, 1]} : vector<176x32xf32> to vector<8x32xf32>
    %66 = vector.extract_strided_slice %33 {offsets = [56, 0], sizes = [8, 32], strides = [1, 1]} : vector<176x32xf32> to vector<8x32xf32>
    %67 = arith.addf %65, %66 : vector<8x32xf32>
    %68 = vector.extract_strided_slice %33 {offsets = [64, 0], sizes = [8, 32], strides = [1, 1]} : vector<176x32xf32> to vector<8x32xf32>
    %69 = arith.addf %67, %68 : vector<8x32xf32>
    %c160 = arith.constant 160 : index
    %c0_40 = arith.constant 0 : index
    %70 = vector.load %arg6[%c160, %c0_40] : memref<768x64xf32, #tpu.memory_space<vmem>>, vector<32x64xf32>
    %cst_41 = arith.constant dense<0.000000e+00> : vector<8x64xf32>
    %71 = tpu.matmul %69, %70, %cst_41 {dimension_numbers = #tpu.dot_dimension_numbers<[1], [0], [0], [1], [0, 0, 1, 1], [], []>} : vector<8x32xf32>, vector<32x64xf32>, vector<8x64xf32> -> vector<8x64xf32>
    %72 = arith.addf %64, %71 : vector<8x64xf32>
    %73 = vector.extract_strided_slice %33 {offsets = [64, 0], sizes = [8, 32], strides = [1, 1]} : vector<176x32xf32> to vector<8x32xf32>
    %74 = vector.extract_strided_slice %33 {offsets = [72, 0], sizes = [8, 32], strides = [1, 1]} : vector<176x32xf32> to vector<8x32xf32>
    %75 = arith.addf %73, %74 : vector<8x32xf32>
    %c192 = arith.constant 192 : index
    %c0_42 = arith.constant 0 : index
    %76 = vector.load %arg6[%c192, %c0_42] : memref<768x64xf32, #tpu.memory_space<vmem>>, vector<32x64xf32>
    %cst_43 = arith.constant dense<0.000000e+00> : vector<8x64xf32>
    %77 = tpu.matmul %75, %76, %cst_43 {dimension_numbers = #tpu.dot_dimension_numbers<[1], [0], [0], [1], [0, 0, 1, 1], [], []>} : vector<8x32xf32>, vector<32x64xf32>, vector<8x64xf32> -> vector<8x64xf32>
    %78 = arith.addf %72, %77 : vector<8x64xf32>
    %79 = vector.extract_strided_slice %33 {offsets = [72, 0], sizes = [8, 32], strides = [1, 1]} : vector<176x32xf32> to vector<8x32xf32>
    %80 = vector.extract_strided_slice %33 {offsets = [80, 0], sizes = [8, 32], strides = [1, 1]} : vector<176x32xf32> to vector<8x32xf32>
    %81 = arith.addf %79, %80 : vector<8x32xf32>
    %c224 = arith.constant 224 : index
    %c0_44 = arith.constant 0 : index
    %82 = vector.load %arg6[%c224, %c0_44] : memref<768x64xf32, #tpu.memory_space<vmem>>, vector<32x64xf32>
    %cst_45 = arith.constant dense<0.000000e+00> : vector<8x64xf32>
    %83 = tpu.matmul %81, %82, %cst_45 {dimension_numbers = #tpu.dot_dimension_numbers<[1], [0], [0], [1], [0, 0, 1, 1], [], []>} : vector<8x32xf32>, vector<32x64xf32>, vector<8x64xf32> -> vector<8x64xf32>
    %84 = arith.addf %78, %83 : vector<8x64xf32>
    %85 = vector.extract_strided_slice %33 {offsets = [88, 0], sizes = [8, 32], strides = [1, 1]} : vector<176x32xf32> to vector<8x32xf32>
    %86 = vector.extract_strided_slice %33 {offsets = [96, 0], sizes = [8, 32], strides = [1, 1]} : vector<176x32xf32> to vector<8x32xf32>
    %87 = arith.addf %85, %86 : vector<8x32xf32>
    %c256 = arith.constant 256 : index
    %c0_46 = arith.constant 0 : index
    %88 = vector.load %arg6[%c256, %c0_46] : memref<768x64xf32, #tpu.memory_space<vmem>>, vector<32x64xf32>
    %cst_47 = arith.constant dense<0.000000e+00> : vector<8x64xf32>
    %89 = tpu.matmul %87, %88, %cst_47 {dimension_numbers = #tpu.dot_dimension_numbers<[1], [0], [0], [1], [0, 0, 1, 1], [], []>} : vector<8x32xf32>, vector<32x64xf32>, vector<8x64xf32> -> vector<8x64xf32>
    %90 = arith.addf %84, %89 : vector<8x64xf32>
    %91 = vector.extract_strided_slice %33 {offsets = [96, 0], sizes = [8, 32], strides = [1, 1]} : vector<176x32xf32> to vector<8x32xf32>
    %92 = vector.extract_strided_slice %33 {offsets = [104, 0], sizes = [8, 32], strides = [1, 1]} : vector<176x32xf32> to vector<8x32xf32>
    %93 = arith.addf %91, %92 : vector<8x32xf32>
    %c288 = arith.constant 288 : index
    %c0_48 = arith.constant 0 : index
    %94 = vector.load %arg6[%c288, %c0_48] : memref<768x64xf32, #tpu.memory_space<vmem>>, vector<32x64xf32>
    %cst_49 = arith.constant dense<0.000000e+00> : vector<8x64xf32>
    %95 = tpu.matmul %93, %94, %cst_49 {dimension_numbers = #tpu.dot_dimension_numbers<[1], [0], [0], [1], [0, 0, 1, 1], [], []>} : vector<8x32xf32>, vector<32x64xf32>, vector<8x64xf32> -> vector<8x64xf32>
    %96 = arith.addf %90, %95 : vector<8x64xf32>
    %97 = vector.extract_strided_slice %33 {offsets = [104, 0], sizes = [8, 32], strides = [1, 1]} : vector<176x32xf32> to vector<8x32xf32>
    %98 = vector.extract_strided_slice %33 {offsets = [112, 0], sizes = [8, 32], strides = [1, 1]} : vector<176x32xf32> to vector<8x32xf32>
    %99 = arith.addf %97, %98 : vector<8x32xf32>
    %100 = vector.extract_strided_slice %33 {offsets = [120, 0], sizes = [8, 32], strides = [1, 1]} : vector<176x32xf32> to vector<8x32xf32>
    %101 = arith.addf %99, %100 : vector<8x32xf32>
    %c320 = arith.constant 320 : index
    %c0_50 = arith.constant 0 : index
    %102 = vector.load %arg6[%c320, %c0_50] : memref<768x64xf32, #tpu.memory_space<vmem>>, vector<32x64xf32>
    %cst_51 = arith.constant dense<0.000000e+00> : vector<8x64xf32>
    %103 = tpu.matmul %101, %102, %cst_51 {dimension_numbers = #tpu.dot_dimension_numbers<[1], [0], [0], [1], [0, 0, 1, 1], [], []>} : vector<8x32xf32>, vector<32x64xf32>, vector<8x64xf32> -> vector<8x64xf32>
    %104 = arith.addf %96, %103 : vector<8x64xf32>
    %105 = vector.extract_strided_slice %33 {offsets = [120, 0], sizes = [8, 32], strides = [1, 1]} : vector<176x32xf32> to vector<8x32xf32>
    %106 = vector.extract_strided_slice %33 {offsets = [128, 0], sizes = [8, 32], strides = [1, 1]} : vector<176x32xf32> to vector<8x32xf32>
    %107 = arith.addf %105, %106 : vector<8x32xf32>
    %c352 = arith.constant 352 : index
    %c0_52 = arith.constant 0 : index
    %108 = vector.load %arg6[%c352, %c0_52] : memref<768x64xf32, #tpu.memory_space<vmem>>, vector<32x64xf32>
    %cst_53 = arith.constant dense<0.000000e+00> : vector<8x64xf32>
    %109 = tpu.matmul %107, %108, %cst_53 {dimension_numbers = #tpu.dot_dimension_numbers<[1], [0], [0], [1], [0, 0, 1, 1], [], []>} : vector<8x32xf32>, vector<32x64xf32>, vector<8x64xf32> -> vector<8x64xf32>
    %110 = arith.addf %104, %109 : vector<8x64xf32>
    %111 = vector.extract_strided_slice %33 {offsets = [128, 0], sizes = [8, 32], strides = [1, 1]} : vector<176x32xf32> to vector<8x32xf32>
    %112 = vector.extract_strided_slice %33 {offsets = [136, 0], sizes = [8, 32], strides = [1, 1]} : vector<176x32xf32> to vector<8x32xf32>
    %113 = arith.addf %111, %112 : vector<8x32xf32>
    %c384 = arith.constant 384 : index
    %c0_54 = arith.constant 0 : index
    %114 = vector.load %arg6[%c384, %c0_54] : memref<768x64xf32, #tpu.memory_space<vmem>>, vector<32x64xf32>
    %cst_55 = arith.constant dense<0.000000e+00> : vector<8x64xf32>
    %115 = tpu.matmul %113, %114, %cst_55 {dimension_numbers = #tpu.dot_dimension_numbers<[1], [0], [0], [1], [0, 0, 1, 1], [], []>} : vector<8x32xf32>, vector<32x64xf32>, vector<8x64xf32> -> vector<8x64xf32>
    %116 = arith.addf %110, %115 : vector<8x64xf32>
    %117 = vector.extract_strided_slice %33 {offsets = [136, 0], sizes = [8, 32], strides = [1, 1]} : vector<176x32xf32> to vector<8x32xf32>
    %118 = vector.extract_strided_slice %33 {offsets = [144, 0], sizes = [8, 32], strides = [1, 1]} : vector<176x32xf32> to vector<8x32xf32>
    %119 = arith.addf %117, %118 : vector<8x32xf32>
    %120 = vector.extract_strided_slice %33 {offsets = [152, 0], sizes = [8, 32], strides = [1, 1]} : vector<176x32xf32> to vector<8x32xf32>
    %121 = arith.addf %119, %120 : vector<8x32xf32>
    %c416 = arith.constant 416 : index
    %c0_56 = arith.constant 0 : index
    %122 = vector.load %arg6[%c416, %c0_56] : memref<768x64xf32, #tpu.memory_space<vmem>>, vector<32x64xf32>
    %cst_57 = arith.constant dense<0.000000e+00> : vector<8x64xf32>
    %123 = tpu.matmul %121, %122, %cst_57 {dimension_numbers = #tpu.dot_dimension_numbers<[1], [0], [0], [1], [0, 0, 1, 1], [], []>} : vector<8x32xf32>, vector<32x64xf32>, vector<8x64xf32> -> vector<8x64xf32>
    %124 = arith.addf %116, %123 : vector<8x64xf32>
    %125 = vector.extract_strided_slice %33 {offsets = [152, 0], sizes = [8, 32], strides = [1, 1]} : vector<176x32xf32> to vector<8x32xf32>
    %126 = vector.extract_strided_slice %33 {offsets = [160, 0], sizes = [8, 32], strides = [1, 1]} : vector<176x32xf32> to vector<8x32xf32>
    %127 = arith.addf %125, %126 : vector<8x32xf32>
    %c448 = arith.constant 448 : index
    %c0_58 = arith.constant 0 : index
    %128 = vector.load %arg6[%c448, %c0_58] : memref<768x64xf32, #tpu.memory_space<vmem>>, vector<32x64xf32>
    %cst_59 = arith.constant dense<0.000000e+00> : vector<8x64xf32>
    %129 = tpu.matmul %127, %128, %cst_59 {dimension_numbers = #tpu.dot_dimension_numbers<[1], [0], [0], [1], [0, 0, 1, 1], [], []>} : vector<8x32xf32>, vector<32x64xf32>, vector<8x64xf32> -> vector<8x64xf32>
    %130 = arith.addf %124, %129 : vector<8x64xf32>
    %131 = vector.extract_strided_slice %33 {offsets = [160, 0], sizes = [8, 32], strides = [1, 1]} : vector<176x32xf32> to vector<8x32xf32>
    %132 = vector.extract_strided_slice %33 {offsets = [168, 0], sizes = [8, 32], strides = [1, 1]} : vector<176x32xf32> to vector<8x32xf32>
    %133 = arith.addf %131, %132 : vector<8x32xf32>
    %c480 = arith.constant 480 : index
    %c0_60 = arith.constant 0 : index
    %134 = vector.load %arg6[%c480, %c0_60] : memref<768x64xf32, #tpu.memory_space<vmem>>, vector<32x64xf32>
    %cst_61 = arith.constant dense<0.000000e+00> : vector<8x64xf32>
    %135 = tpu.matmul %133, %134, %cst_61 {dimension_numbers = #tpu.dot_dimension_numbers<[1], [0], [0], [1], [0, 0, 1, 1], [], []>} : vector<8x32xf32>, vector<32x64xf32>, vector<8x64xf32> -> vector<8x64xf32>
    %136 = arith.addf %130, %135 : vector<8x64xf32>
    %c2_62 = arith.constant 2 : index
    %c0_63 = arith.constant 0 : index
    %137 = vector.load %arg7[%c2_62, %c0_63] : memref<8x128xf32, #tpu.memory_space<vmem>>, vector<1x128xf32>
    %c3 = arith.constant 3 : index
    %c0_64 = arith.constant 0 : index
    %138 = vector.load %arg7[%c3, %c0_64] : memref<8x128xf32, #tpu.memory_space<vmem>>, vector<1x64xf32>
    %c0_65 = arith.constant 0 : index
    %c0_66 = arith.constant 0 : index
    %139 = vector.load %arg2[%c0_65, %c0_66] : memref<40x6xf32, #tpu.memory_space<vmem>>, vector<40x6xf32>
    %c0_67 = arith.constant 0 : index
    %c0_68 = arith.constant 0 : index
    %140 = vector.load %arg5[%c0_67, %c0_68] : memref<6x128xf32, #tpu.memory_space<vmem>>, vector<6x128xf32>
    %cst_69 = arith.constant dense<0.000000e+00> : vector<40x128xf32>
    %141 = tpu.matmul %139, %140, %cst_69 {dimension_numbers = #tpu.dot_dimension_numbers<[1], [0], [0], [1], [0, 0, 1, 1], [], []>} : vector<40x6xf32>, vector<6x128xf32>, vector<40x128xf32> -> vector<40x128xf32>
    %142 = vector.broadcast %137 : vector<1x128xf32> to vector<40x128xf32>
    %143 = arith.addf %141, %142 : vector<40x128xf32>
    %cst_70 = arith.constant 0.000000e+00 : f32
    %144 = vector.broadcast %cst_70 : f32 to vector<40x128xf32>
    %145 = arith.maximumf %143, %144 : vector<40x128xf32>
    %c512 = arith.constant 512 : index
    %c0_71 = arith.constant 0 : index
    %146 = vector.load %arg6[%c512, %c0_71] : memref<768x64xf32, #tpu.memory_space<vmem>>, vector<128x64xf32>
    %cst_72 = arith.constant dense<0.000000e+00> : vector<40x64xf32>
    %147 = tpu.matmul %145, %146, %cst_72 {dimension_numbers = #tpu.dot_dimension_numbers<[1], [0], [0], [1], [0, 0, 1, 1], [], []>} : vector<40x128xf32>, vector<128x64xf32>, vector<40x64xf32> -> vector<40x64xf32>
    %148 = vector.broadcast %138 : vector<1x64xf32> to vector<40x64xf32>
    %149 = arith.addf %147, %148 : vector<40x64xf32>
    %c4 = arith.constant 4 : index
    %c0_73 = arith.constant 0 : index
    %150 = vector.load %arg7[%c4, %c0_73] : memref<8x128xf32, #tpu.memory_space<vmem>>, vector<1x64xf32>
    %c5 = arith.constant 5 : index
    %c0_74 = arith.constant 0 : index
    %151 = vector.load %arg7[%c5, %c0_74] : memref<8x128xf32, #tpu.memory_space<vmem>>, vector<1x64xf32>
    %c6 = arith.constant 6 : index
    %c0_75 = arith.constant 0 : index
    %152 = vector.load %arg7[%c6, %c0_75] : memref<8x128xf32, #tpu.memory_space<vmem>>, vector<1x3xf32>
    %153 = tpu.concatenate %136, %136, %136, %136, %136 in 0 : vector<8x64xf32>, vector<8x64xf32>, vector<8x64xf32>, vector<8x64xf32>, vector<8x64xf32> -> vector<40x64xf32>
    %c640 = arith.constant 640 : index
    %c0_76 = arith.constant 0 : index
    %154 = vector.load %arg6[%c640, %c0_76] : memref<768x64xf32, #tpu.memory_space<vmem>>, vector<64x64xf32>
    %cst_77 = arith.constant dense<0.000000e+00> : vector<40x64xf32>
    %155 = tpu.matmul %149, %154, %cst_77 {dimension_numbers = #tpu.dot_dimension_numbers<[1], [0], [0], [1], [0, 0, 1, 1], [], []>} : vector<40x64xf32>, vector<64x64xf32>, vector<40x64xf32> -> vector<40x64xf32>
    %156 = arith.addf %153, %155 : vector<40x64xf32>
    %157 = vector.broadcast %150 : vector<1x64xf32> to vector<40x64xf32>
    %158 = arith.addf %156, %157 : vector<40x64xf32>
    %cst_78 = arith.constant 0.000000e+00 : f32
    %159 = vector.broadcast %cst_78 : f32 to vector<40x64xf32>
    %160 = arith.maximumf %158, %159 : vector<40x64xf32>
    %c704 = arith.constant 704 : index
    %c0_79 = arith.constant 0 : index
    %161 = vector.load %arg6[%c704, %c0_79] : memref<768x64xf32, #tpu.memory_space<vmem>>, vector<64x64xf32>
    %cst_80 = arith.constant dense<0.000000e+00> : vector<40x64xf32>
    %162 = tpu.matmul %160, %161, %cst_80 {dimension_numbers = #tpu.dot_dimension_numbers<[1], [0], [0], [1], [0, 0, 1, 1], [], []>} : vector<40x64xf32>, vector<64x64xf32>, vector<40x64xf32> -> vector<40x64xf32>
    %163 = vector.broadcast %151 : vector<1x64xf32> to vector<40x64xf32>
    %164 = arith.addf %162, %163 : vector<40x64xf32>
    %cst_81 = arith.constant 0.000000e+00 : f32
    %165 = vector.broadcast %cst_81 : f32 to vector<40x64xf32>
    %166 = arith.maximumf %164, %165 : vector<40x64xf32>
    %c0_82 = arith.constant 0 : index
    %c0_83 = arith.constant 0 : index
    %167 = vector.load %arg8[%c0_82, %c0_83] : memref<64x3xf32, #tpu.memory_space<vmem>>, vector<64x3xf32>
    %cst_84 = arith.constant dense<0.000000e+00> : vector<40x3xf32>
    %168 = tpu.matmul %166, %167, %cst_84 {dimension_numbers = #tpu.dot_dimension_numbers<[1], [0], [0], [1], [0, 0, 1, 1], [], []>} : vector<40x64xf32>, vector<64x3xf32>, vector<40x3xf32> -> vector<40x3xf32>
    %169 = vector.broadcast %152 : vector<1x3xf32> to vector<40x3xf32>
    %170 = arith.addf %168, %169 : vector<40x3xf32>
    %c0_85 = arith.constant 0 : index
    %c0_86 = arith.constant 0 : index
    %171 = vector.load %arg9[%c0_85, %c0_86] : memref<40x3xf32, #tpu.memory_space<vmem>>, vector<40x3xf32>
    tpu.vector_store %arg9[%c0_85, %c0_86], %170 {strides = array<i32>} : memref<40x3xf32, #tpu.memory_space<vmem>>, vector<40x3xf32>,
    return
  }
  func.func @transform_0(%arg0: i32) -> (i32, i32) {
    %c0_i32 = arith.constant 0 : i32
    %c0_i32_0 = arith.constant 0 : i32
    return %arg0, %c0_i32 : i32, i32
  }
  func.func @transform_1(%arg0: i32) -> (i32, i32) {
    %c0_i32 = arith.constant 0 : i32
    %c0_i32_0 = arith.constant 0 : i32
    return %arg0, %c0_i32 : i32, i32
  }
  func.func @transform_2(%arg0: i32) -> (i32, i32) {
    %c0_i32 = arith.constant 0 : i32
    %c0_i32_0 = arith.constant 0 : i32
    %c0_i32_1 = arith.constant 0 : i32
    return %c0_i32, %c0_i32_0 : i32, i32
  }
  func.func @transform_3(%arg0: i32) -> (i32, i32, i32) {
    %c0_i32 = arith.constant 0 : i32
    %c0_i32_0 = arith.constant 0 : i32
    %c0_i32_1 = arith.constant 0 : i32
    %c0_i32_2 = arith.constant 0 : i32
    return %c0_i32, %c0_i32_0, %c0_i32_1 : i32, i32, i32
  }
  func.func @transform_4(%arg0: i32) -> (i32, i32) {
    %c0_i32 = arith.constant 0 : i32
    %c0_i32_0 = arith.constant 0 : i32
    %c0_i32_1 = arith.constant 0 : i32
    return %c0_i32, %c0_i32_0 : i32, i32
  }
  func.func @transform_5(%arg0: i32) -> (i32, i32) {
    %c0_i32 = arith.constant 0 : i32
    %c0_i32_0 = arith.constant 0 : i32
    %c0_i32_1 = arith.constant 0 : i32
    return %c0_i32, %c0_i32_0 : i32, i32
  }
  func.func @transform_6(%arg0: i32) -> (i32, i32) {
    %c0_i32 = arith.constant 0 : i32
    %c0_i32_0 = arith.constant 0 : i32
    %c0_i32_1 = arith.constant 0 : i32
    return %c0_i32, %c0_i32_0 : i32, i32
  }
  func.func @transform_7(%arg0: i32) -> (i32, i32) {
    %c0_i32 = arith.constant 0 : i32
    %c0_i32_0 = arith.constant 0 : i32
    %c0_i32_1 = arith.constant 0 : i32
    return %c0_i32, %c0_i32_0 : i32, i32
  }
  func.func @transform_8(%arg0: i32) -> (i32, i32) {
    %c0_i32 = arith.constant 0 : i32
    %c0_i32_0 = arith.constant 0 : i32
    return %arg0, %c0_i32 : i32, i32
  }
}

</mosaic_0001>

<llo_original>
// kernel: laser_fc_actor_forward.1
$region0: #{laser_fc_actor_forward.1}
  #allocation0 [shape = 'u32[]', space=smem, size = 0x4, offset = 0x4, fixed_abs, tag = 'smem constant byte address 0x4 - core index']
  #allocation1 [shape = 'u32[144,128]{1,0:T(1,128)}', space=vmem, size = 0x12000, scoped, tag = 'internal scratch']
  #allocation2 [shape = 'f32[192,16]{1,0:T(8,128)}', space=vmem, size = 0x18000, scoped, tag = 'scratch operand']
  %s0 = inlined_call_operand.vmem [shape: f32[352,15], index: 0, kind: input, shape index: {}]
  %s1 = inlined_call_operand.vmem [shape: f32[40,6], index: 1, kind: input, shape index: {}]
  %s2 = inlined_call_operand.vmem [shape: f32[15,16], index: 2, kind: input, shape index: {}]
  %s3 = inlined_call_operand.vmem [shape: f32[3,16,32], index: 3, kind: input, shape index: {}]
  %s4 = inlined_call_operand.vmem [shape: f32[6,128], index: 4, kind: input, shape index: {}]
  %s5 = inlined_call_operand.vmem [shape: f32[768,64], index: 5, kind: input, shape index: {}]
  %s6 = inlined_call_operand.vmem [shape: f32[8,128], index: 6, kind: input, shape index: {}]
  %s7 = inlined_call_operand.vmem [shape: f32[64,3], index: 7, kind: input, shape index: {}]
  %s8 = inlined_call_operand.vmem [shape: f32[40,3], index: 8, kind: output, shape index: {}]
  %s9 = sld [smem:[#allocation0]]
  $region42: #{laser_fc_actor_forward.1} parent=0
    _
  %s11 = ssub.s32 1, %s9
  %s12 = scalar_select 0, %s11, %s9
  // Predicated region
  $region2: #{laser_fc_actor_forward.1} parent=0 // pred_check
    _
  $region3: #{laser_fc_actor_forward.1} parent=0 // pred_check_branch
    %14 = sbr.rel (0) target = $region5
  $region4: #{laser_fc_actor_forward.1} parent=0 // pred_region
    _
  $region5: #{laser_fc_actor_forward.1} parent=0 // pred_fallthru
    _
  // Predicated region
  $region6: #{laser_fc_actor_forward.1} parent=0 // pred_check
    _
  $region7: #{laser_fc_actor_forward.1} parent=0 // pred_check_branch
    %16 = sbr.rel (0) target = $region9
  $region8: #{laser_fc_actor_forward.1} parent=0 // pred_region
    _
  $region9: #{laser_fc_actor_forward.1} parent=0 // pred_fallthru
    _
  // Predicated region
  $region10: #{laser_fc_actor_forward.1} parent=0 // pred_check
    _
  $region11: #{laser_fc_actor_forward.1} parent=0 // pred_check_branch
    %18 = sbr.rel (0) target = $region13
  $region12: #{laser_fc_actor_forward.1} parent=0 // pred_region
    _
  $region13: #{laser_fc_actor_forward.1} parent=0 // pred_fallthru
    _
  // Predicated region
  $region14: #{laser_fc_actor_forward.1} parent=0 // pred_check
    _
  $region15: #{laser_fc_actor_forward.1} parent=0 // pred_check_branch
    %20 = sbr.rel (0) target = $region17
  $region16: #{laser_fc_actor_forward.1} parent=0 // pred_region
    _
  $region17: #{laser_fc_actor_forward.1} parent=0 // pred_fallthru
    _
  // Predicated region
  $region18: #{laser_fc_actor_forward.1} parent=0 // pred_check
    _
  $region19: #{laser_fc_actor_forward.1} parent=0 // pred_check_branch
    %22 = sbr.rel (0) target = $region21
  $region20: #{laser_fc_actor_forward.1} parent=0 // pred_region
    _
  $region21: #{laser_fc_actor_forward.1} parent=0 // pred_fallthru
    _
  // Predicated region
  $region22: #{laser_fc_actor_forward.1} parent=0 // pred_check
    _
  $region23: #{laser_fc_actor_forward.1} parent=0 // pred_check_branch
    %24 = sbr.rel (0) target = $region25
  $region24: #{laser_fc_actor_forward.1} parent=0 // pred_region
    _
  $region25: #{laser_fc_actor_forward.1} parent=0 // pred_fallthru
    _
  // Predicated region
  $region26: #{laser_fc_actor_forward.1} parent=0 // pred_check
    _
  $region27: #{laser_fc_actor_forward.1} parent=0 // pred_check_branch
    %26 = sbr.rel (0) target = $region29
  $region28: #{laser_fc_actor_forward.1} parent=0 // pred_region
    _
  $region29: #{laser_fc_actor_forward.1} parent=0 // pred_fallthru
    _
  // Predicated region
  $region30: #{laser_fc_actor_forward.1} parent=0 // pred_check
    _
  $region31: #{laser_fc_actor_forward.1} parent=0 // pred_check_branch
    %28 = sbr.rel (0) target = $region33
  $region32: #{laser_fc_actor_forward.1} parent=0 // pred_region
    _
  $region33: #{laser_fc_actor_forward.1} parent=0 // pred_fallthru
    _
  %v29 = vld [vmem:[%s6] sm:$0x1]
  %v30 = vld [vmem:[%s0] sm:$0xff]
  %v31 = vld [vmem:[%s0 + $0x8] sm:$0xff]
  %v32 = vld [vmem:[%s0 + $0x10] sm:$0xff]
  %v33 = vld [vmem:[%s0 + $0x18] sm:$0xff]
  %v34 = vld [vmem:[%s0 + $0x20] sm:$0xff]
  %v35 = vld [vmem:[%s0 + $0x28] sm:$0xff]
  %v36 = vld [vmem:[%s0 + $0x30] sm:$0xff]
  %v37 = vld [vmem:[%s0 + $0x38] sm:$0xff]
  %v38 = vld [vmem:[%s0 + $0x40] sm:$0xff]
  %v39 = vld [vmem:[%s0 + $0x48] sm:$0xff]
  %v40 = vld [vmem:[%s0 + $0x50] sm:$0xff]
  %v41 = vld [vmem:[%s0 + $0x58] sm:$0xff]
  %v42 = vld [vmem:[%s0 + $0x60] sm:$0xff]
  %v43 = vld [vmem:[%s0 + $0x68] sm:$0xff]
  %v44 = vld [vmem:[%s0 + $0x70] sm:$0xff]
  %v45 = vld [vmem:[%s0 + $0x78] sm:$0xff]
  %v46 = vld [vmem:[%s0 + $0x80] sm:$0xff]
  %v47 = vld [vmem:[%s0 + $0x88] sm:$0xff]
  %v48 = vld [vmem:[%s0 + $0x90] sm:$0xff]
  %v49 = vld [vmem:[%s0 + $0x98] sm:$0xff]
  %v50 = vld [vmem:[%s0 + $0xa0] sm:$0xff]
  %v51 = vld [vmem:[%s0 + $0xa8] sm:$0xff]
  %v52 = vld [vmem:[%s0 + $0xb0] sm:$0xff]
  %v53 = vld [vmem:[%s0 + $0xb8] sm:$0xff]
  %v54 = vld [vmem:[%s0 + $0xc0] sm:$0xff]
  %v55 = vld [vmem:[%s0 + $0xc8] sm:$0xff]
  %v56 = vld [vmem:[%s0 + $0xd0] sm:$0xff]
  %v57 = vld [vmem:[%s0 + $0xd8] sm:$0xff]
  %v58 = vld [vmem:[%s0 + $0xe0] sm:$0xff]
  %v59 = vld [vmem:[%s0 + $0xe8] sm:$0xff]
  %v60 = vld [vmem:[%s0 + $0xf0] sm:$0xff]
  %v61 = vld [vmem:[%s0 + $0xf8] sm:$0xff]
  %v62 = vld [vmem:[%s0 + $0x100] sm:$0xff]
  %v63 = vld [vmem:[%s0 + $0x108] sm:$0xff]
  %v64 = vld [vmem:[%s0 + $0x110] sm:$0xff]
  %v65 = vld [vmem:[%s0 + $0x118] sm:$0xff]
  %v66 = vld [vmem:[%s0 + $0x120] sm:$0xff]
  %v67 = vld [vmem:[%s0 + $0x128] sm:$0xff]
  %v68 = vld [vmem:[%s0 + $0x130] sm:$0xff]
  %v69 = vld [vmem:[%s0 + $0x138] sm:$0xff]
  %v70 = vld [vmem:[%s0 + $0x140] sm:$0xff]
  %v71 = vld [vmem:[%s0 + $0x148] sm:$0xff]
  %v72 = vld [vmem:[%s0 + $0x150] sm:$0xff]
  %v73 = vld [vmem:[%s0 + $0x158] sm:$0xff]
  %v74 = vld [vmem:[%s2] sm:$0xff]
  %v75 = vld [vmem:[%s2 + $0x8] sm:$0x7f]
  %v76 = vlaneseq
  %v77 = vshrl.u32 %v76, 7
  %v78 = vsub.s32 0, %v77
  %v79 = vrot.slane %v29, %v78
  %vm80 = vcmask 121856
  %v82 = vsel %vm80, %v30, 0
  %v85 = vsel %vm80, %v31, 0
  %v88 = vsel %vm80, %v32, 0
  %v91 = vsel %vm80, %v33, 0
  %v94 = vsel %vm80, %v34, 0
  %v97 = vsel %vm80, %v35, 0
  %v100 = vsel %vm80, %v36, 0
  %v103 = vsel %vm80, %v37, 0
  %v106 = vsel %vm80, %v38, 0
  %v109 = vsel %vm80, %v39, 0
  %v112 = vsel %vm80, %v40, 0
  %v115 = vsel %vm80, %v41, 0
  %v118 = vsel %vm80, %v42, 0
  %v121 = vsel %vm80, %v43, 0
  %v124 = vsel %vm80, %v44, 0
  %v127 = vsel %vm80, %v45, 0
  %v130 = vsel %vm80, %v46, 0
  %v133 = vsel %vm80, %v47, 0
  %v136 = vsel %vm80, %v48, 0
  %v139 = vsel %vm80, %v49, 0
  %v142 = vsel %vm80, %v50, 0
  %v145 = vsel %vm80, %v51, 0
  %v148 = vsel %vm80, %v52, 0
  %v151 = vsel %vm80, %v53, 0
  %v154 = vsel %vm80, %v54, 0
  %v157 = vsel %vm80, %v55, 0
  %v160 = vsel %vm80, %v56, 0
  %v163 = vsel %vm80, %v57, 0
  %v166 = vsel %vm80, %v58, 0
  %v169 = vsel %vm80, %v59, 0
  %v172 = vsel %vm80, %v60, 0
  %v175 = vsel %vm80, %v61, 0
  %v178 = vsel %vm80, %v62, 0
  %v181 = vsel %vm80, %v63, 0
  %v184 = vsel %vm80, %v64, 0
  %v187 = vsel %vm80, %v65, 0
  %v190 = vsel %vm80, %v66, 0
  %v193 = vsel %vm80, %v67, 0
  %v196 = vsel %vm80, %v68, 0
  %v199 = vsel %vm80, %v69, 0
  %v202 = vsel %vm80, %v70, 0
  %v205 = vsel %vm80, %v71, 0
  %v208 = vsel %vm80, %v72, 0
  %v211 = vsel %vm80, %v73, 0
  %vm213 = vcmask 1046528
  %v215 = vsel %vm213, %v75, 0
  %217 = vmatprep.subr.mxu0 0.0
  %218 = vmatpush1.msra.mxu0 %v74
  %219 = vmatprep.subr.mxu0 0.0
  %220 = vmatpush1.msra.mxu0 %v215
  %221 = vmatprep.subr.mxu0 0.0
  %222 = vmatpush1.msra.mxu0 0.0
  %223 = vmatprep.subr.mxu0 0.0
  %224 = vmatpush1.msra.mxu0 0.0
  %225 = vmatprep.subr.mxu0 0.0
  %226 = vmatpush1.msra.mxu0 0.0
  %227 = vmatprep.subr.mxu0 0.0
  %228 = vmatpush1.msra.mxu0 0.0
  %229 = vmatprep.subr.mxu0 0.0
  %230 = vmatpush1.msra.mxu0 0.0
  %231 = vmatprep.subr.mxu0 0.0
  %232 = vmatpush1.msra.mxu0 0.0
  %233 = vmatprep.subr.mxu0 0.0
  %234 = vmatpush1.msra.mxu0 0.0
  %235 = vmatprep.subr.mxu0 0.0
  %236 = vmatpush1.msra.mxu0 0.0
  %237 = vmatprep.subr.mxu0 0.0
  %238 = vmatpush1.msra.mxu0 0.0
  %239 = vmatprep.subr.mxu0 0.0
  %240 = vmatpush1.msra.mxu0 0.0
  %241 = vmatprep.subr.mxu0 0.0
  %242 = vmatpush1.msra.mxu0 0.0
  %243 = vmatprep.subr.mxu0 0.0
  %244 = vmatpush1.msra.mxu0 0.0
  %245 = vmatprep.subr.mxu0 0.0
  %246 = vmatpush1.msra.mxu0 0.0
  %247 = vmatprep.subr.mxu0 0.0
  %248 = vmatpush1.msra.mxu0 0.0
  %249 = vmatprep.subr.mxu0 0.0
  %250 = vmatpush1.msra.mxu0 0.0
  %251 = vmatprep.subr.mxu0 0.0
  %252 = vmatpush1.msra.mxu0 0.0
  %253 = vmatprep.subr.mxu0 0.0
  %254 = vmatpush1.msra.mxu0 0.0
  %255 = vmatprep.subr.mxu0 0.0
  %256 = vmatpush1.msra.mxu0 0.0
  %257 = vmatprep.subr.mxu0 0.0
  %258 = vmatpush1.msra.mxu0 0.0
  %259 = vmatprep.subr.mxu0 0.0
  %260 = vmatpush1.msra.mxu0 0.0
  %261 = vmatprep.subr.mxu0 0.0
  %262 = vmatpush1.msra.mxu0 0.0
  %263 = vmatprep.subr.mxu0 0.0
  %264 = vmatpush1.msra.mxu0 0.0
  %265 = vmatprep.subr.mxu0 0.0
  %266 = vmatpush1.msra.mxu0 0.0
  %267 = vmatprep.subr.mxu0 0.0
  %268 = vmatpush1.msra.mxu0 0.0
  %269 = vmatprep.subr.mxu0 0.0
  %270 = vmatpush1.msra.mxu0 0.0
  %271 = vmatprep.subr.mxu0 0.0
  %272 = vmatpush1.msra.mxu0 0.0
  %273 = vmatprep.subr.mxu0 0.0
  %274 = vmatpush1.msra.mxu0 0.0
  %275 = vmatprep.subr.mxu0 0.0
  %276 = vmatpush1.msra.mxu0 0.0
  %277 = vmatprep.subr.mxu0 0.0
  %278 = vmatpush1.msra.mxu0 0.0
  %279 = vmatprep.subr.mxu0 0.0
  %280 = vmatpush1.msra.mxu0 0.0
  %281 = vmatprep.mubr.f32.mxu0 0.0
  %282 = vmatmul.mubr.f32.gmra.mrb[0].mxu0 %v82
  %v283 = vpop.f32.mrb[0].mxu0
  %v284 = vadd.f32 %v79, %v283
  %v285 = vpop.f32.mrb[0].mxu0
  %286 = vmatprep.mubr.f32.mxu0 0.0
  %287 = vmatmul.mubr.f32.gmra.mrb[0].mxu0 %v85
  %v288 = vpop.f32.mrb[0].mxu0
  %v289 = vadd.f32 %v79, %v288
  %v290 = vpop.f32.mrb[0].mxu0
  %291 = vmatprep.mubr.f32.mxu0 0.0
  %292 = vmatmul.mubr.f32.gmra.mrb[0].mxu0 %v88
  %v293 = vpop.f32.mrb[0].mxu0
  %v294 = vadd.f32 %v79, %v293
  %v295 = vpop.f32.mrb[0].mxu0
  %296 = vmatprep.mubr.f32.mxu0 0.0
  %297 = vmatmul.mubr.f32.gmra.mrb[0].mxu0 %v91
  %v298 = vpop.f32.mrb[0].mxu0
  %v299 = vadd.f32 %v79, %v298
  %v300 = vpop.f32.mrb[0].mxu0
  %301 = vmatprep.mubr.f32.mxu0 0.0
  %302 = vmatmul.mubr.f32.gmra.mrb[0].mxu0 %v94
  %v303 = vpop.f32.mrb[0].mxu0
  %v304 = vadd.f32 %v79, %v303
  %v305 = vpop.f32.mrb[0].mxu0
  %306 = vmatprep.mubr.f32.mxu0 0.0
  %307 = vmatmul.mubr.f32.gmra.mrb[0].mxu0 %v97
  %v308 = vpop.f32.mrb[0].mxu0
  %v309 = vadd.f32 %v79, %v308
  %v310 = vpop.f32.mrb[0].mxu0
  %311 = vmatprep.mubr.f32.mxu0 0.0
  %312 = vmatmul.mubr.f32.gmra.mrb[0].mxu0 %v100
  %v313 = vpop.f32.mrb[0].mxu0
  %v314 = vadd.f32 %v79, %v313
  %v315 = vpop.f32.mrb[0].mxu0
  %316 = vmatprep.mubr.f32.mxu0 0.0
  %317 = vmatmul.mubr.f32.gmra.mrb[0].mxu0 %v103
  %v318 = vpop.f32.mrb[0].mxu0
  %v319 = vadd.f32 %v79, %v318
  %v320 = vpop.f32.mrb[0].mxu0
  %321 = vmatprep.mubr.f32.mxu0 0.0
  %322 = vmatmul.mubr.f32.gmra.mrb[0].mxu0 %v106
  %v323 = vpop.f32.mrb[0].mxu0
  %v324 = vadd.f32 %v79, %v323
  %v325 = vpop.f32.mrb[0].mxu0
  %326 = vmatprep.mubr.f32.mxu0 0.0
  %327 = vmatmul.mubr.f32.gmra.mrb[0].mxu0 %v109
  %v328 = vpop.f32.mrb[0].mxu0
  %v329 = vadd.f32 %v79, %v328
  %v330 = vpop.f32.mrb[0].mxu0
  %331 = vmatprep.mubr.f32.mxu0 0.0
  %332 = vmatmul.mubr.f32.gmra.mrb[0].mxu0 %v112
  %v333 = vpop.f32.mrb[0].mxu0
  %v334 = vadd.f32 %v79, %v333
  %v335 = vpop.f32.mrb[0].mxu0
  %336 = vmatprep.mubr.f32.mxu0 0.0
  %337 = vmatmul.mubr.f32.gmra.mrb[0].mxu0 %v115
  %v338 = vpop.f32.mrb[0].mxu0
  %v339 = vadd.f32 %v79, %v338
  %v340 = vpop.f32.mrb[0].mxu0
  %341 = vmatprep.mubr.f32.mxu0 0.0
  %342 = vmatmul.mubr.f32.gmra.mrb[0].mxu0 %v118
  %v343 = vpop.f32.mrb[0].mxu0
  %v344 = vadd.f32 %v79, %v343
  %v345 = vpop.f32.mrb[0].mxu0
  %346 = vmatprep.mubr.f32.mxu0 0.0
  %347 = vmatmul.mubr.f32.gmra.mrb[0].mxu0 %v121
  %v348 = vpop.f32.mrb[0].mxu0
  %v349 = vadd.f32 %v79, %v348
  %v350 = vpop.f32.mrb[0].mxu0
  %351 = vmatprep.mubr.f32.mxu0 0.0
  %352 = vmatmul.mubr.f32.gmra.mrb[0].mxu0 %v124
  %v353 = vpop.f32.mrb[0].mxu0
  %v354 = vadd.f32 %v79, %v353
  %v355 = vpop.f32.mrb[0].mxu0
  %356 = vmatprep.mubr.f32.mxu0 0.0
  %357 = vmatmul.mubr.f32.gmra.mrb[0].mxu0 %v127
  %v358 = vpop.f32.mrb[0].mxu0
  %v359 = vadd.f32 %v79, %v358
  %v360 = vpop.f32.mrb[0].mxu0
  %361 = vmatprep.mubr.f32.mxu0 0.0
  %362 = vmatmul.mubr.f32.gmra.mrb[0].mxu0 %v130
  %v363 = vpop.f32.mrb[0].mxu0
  %v364 = vadd.f32 %v79, %v363
  %v365 = vpop.f32.mrb[0].mxu0
  %366 = vmatprep.mubr.f32.mxu0 0.0
  %367 = vmatmul.mubr.f32.gmra.mrb[0].mxu0 %v133
  %v368 = vpop.f32.mrb[0].mxu0
  %v369 = vadd.f32 %v79, %v368
  %v370 = vpop.f32.mrb[0].mxu0
  %371 = vmatprep.mubr.f32.mxu0 0.0
  %372 = vmatmul.mubr.f32.gmra.mrb[0].mxu0 %v136
  %v373 = vpop.f32.mrb[0].mxu0
  %v374 = vadd.f32 %v79, %v373
  %v375 = vpop.f32.mrb[0].mxu0
  %376 = vmatprep.mubr.f32.mxu0 0.0
  %377 = vmatmul.mubr.f32.gmra.mrb[0].mxu0 %v139
  %v378 = vpop.f32.mrb[0].mxu0
  %v379 = vadd.f32 %v79, %v378
  %v380 = vpop.f32.mrb[0].mxu0
  %381 = vmatprep.mubr.f32.mxu0 0.0
  %382 = vmatmul.mubr.f32.gmra.mrb[0].mxu0 %v142
  %v383 = vpop.f32.mrb[0].mxu0
  %v384 = vadd.f32 %v79, %v383
  %v385 = vpop.f32.mrb[0].mxu0
  %386 = vmatprep.mubr.f32.mxu0 0.0
  %387 = vmatmul.mubr.f32.gmra.mrb[0].mxu0 %v145
  %v388 = vpop.f32.mrb[0].mxu0
  %v389 = vadd.f32 %v79, %v388
  %v390 = vpop.f32.mrb[0].mxu0
  %391 = vmatprep.mubr.f32.mxu0 0.0
  %392 = vmatmul.mubr.f32.gmra.mrb[0].mxu0 %v148
  %v393 = vpop.f32.mrb[0].mxu0
  %v394 = vadd.f32 %v79, %v393
  %v395 = vpop.f32.mrb[0].mxu0
  %396 = vmatprep.mubr.f32.mxu0 0.0
  %397 = vmatmul.mubr.f32.gmra.mrb[0].mxu0 %v151
  %v398 = vpop.f32.mrb[0].mxu0
  %v399 = vadd.f32 %v79, %v398
  %v400 = vpop.f32.mrb[0].mxu0
  %401 = vmatprep.mubr.f32.mxu0 0.0
  %402 = vmatmul.mubr.f32.gmra.mrb[0].mxu0 %v154
  %v403 = vpop.f32.mrb[0].mxu0
  %v404 = vadd.f32 %v79, %v403
  %v405 = vpop.f32.mrb[0].mxu0
  %406 = vmatprep.mubr.f32.mxu0 0.0
  %407 = vmatmul.mubr.f32.gmra.mrb[0].mxu0 %v157
  %v408 = vpop.f32.mrb[0].mxu0
  %v409 = vadd.f32 %v79, %v408
  %v410 = vpop.f32.mrb[0].mxu0
  %411 = vmatprep.mubr.f32.mxu0 0.0
  %412 = vmatmul.mubr.f32.gmra.mrb[0].mxu0 %v160
  %v413 = vpop.f32.mrb[0].mxu0
  %v414 = vadd.f32 %v79, %v413
  %v415 = vpop.f32.mrb[0].mxu0
  %416 = vmatprep.mubr.f32.mxu0 0.0
  %417 = vmatmul.mubr.f32.gmra.mrb[0].mxu0 %v163
  %v418 = vpop.f32.mrb[0].mxu0
  %v419 = vadd.f32 %v79, %v418
  %v420 = vpop.f32.mrb[0].mxu0
  %421 = vmatprep.mubr.f32.mxu0 0.0
  %422 = vmatmul.mubr.f32.gmra.mrb[0].mxu0 %v166
  %v423 = vpop.f32.mrb[0].mxu0
  %v424 = vadd.f32 %v79, %v423
  %v425 = vpop.f32.mrb[0].mxu0
  %426 = vmatprep.mubr.f32.mxu0 0.0
  %427 = vmatmul.mubr.f32.gmra.mrb[0].mxu0 %v169
  %v428 = vpop.f32.mrb[0].mxu0
  %v429 = vadd.f32 %v79, %v428
  %v430 = vpop.f32.mrb[0].mxu0
  %431 = vmatprep.mubr.f32.mxu0 0.0
  %432 = vmatmul.mubr.f32.gmra.mrb[0].mxu0 %v172
  %v433 = vpop.f32.mrb[0].mxu0
  %v434 = vadd.f32 %v79, %v433
  %v435 = vpop.f32.mrb[0].mxu0
  %436 = vmatprep.mubr.f32.mxu0 0.0
  %437 = vmatmul.mubr.f32.gmra.mrb[0].mxu0 %v175
  %v438 = vpop.f32.mrb[0].mxu0
  %v439 = vadd.f32 %v79, %v438
  %v440 = vpop.f32.mrb[0].mxu0
  %441 = vmatprep.mubr.f32.mxu0 0.0
  %442 = vmatmul.mubr.f32.gmra.mrb[0].mxu0 %v178
  %v443 = vpop.f32.mrb[0].mxu0
  %v444 = vadd.f32 %v79, %v443
  %v445 = vpop.f32.mrb[0].mxu0
  %446 = vmatprep.mubr.f32.mxu0 0.0
  %447 = vmatmul.mubr.f32.gmra.mrb[0].mxu0 %v181
  %v448 = vpop.f32.mrb[0].mxu0
  %v449 = vadd.f32 %v79, %v448
  %v450 = vpop.f32.mrb[0].mxu0
  %451 = vmatprep.mubr.f32.mxu0 0.0
  %452 = vmatmul.mubr.f32.gmra.mrb[0].mxu0 %v184
  %v453 = vpop.f32.mrb[0].mxu0
  %v454 = vadd.f32 %v79, %v453
  %v455 = vpop.f32.mrb[0].mxu0
  %456 = vmatprep.mubr.f32.mxu0 0.0
  %457 = vmatmul.mubr.f32.gmra.mrb[0].mxu0 %v187
  %v458 = vpop.f32.mrb[0].mxu0
  %v459 = vadd.f32 %v79, %v458
  %v460 = vpop.f32.mrb[0].mxu0
  %461 = vmatprep.mubr.f32.mxu0 0.0
  %462 = vmatmul.mubr.f32.gmra.mrb[0].mxu0 %v190
  %v463 = vpop.f32.mrb[0].mxu0
  %v464 = vadd.f32 %v79, %v463
  %v465 = vpop.f32.mrb[0].mxu0
  %466 = vmatprep.mubr.f32.mxu0 0.0
  %467 = vmatmul.mubr.f32.gmra.mrb[0].mxu0 %v193
  %v468 = vpop.f32.mrb[0].mxu0
  %v469 = vadd.f32 %v79, %v468
  %v470 = vpop.f32.mrb[0].mxu0
  %471 = vmatprep.mubr.f32.mxu0 0.0
  %472 = vmatmul.mubr.f32.gmra.mrb[0].mxu0 %v196
  %v473 = vpop.f32.mrb[0].mxu0
  %v474 = vadd.f32 %v79, %v473
  %v475 = vpop.f32.mrb[0].mxu0
  %476 = vmatprep.mubr.f32.mxu0 0.0
  %477 = vmatmul.mubr.f32.gmra.mrb[0].mxu0 %v199
  %v478 = vpop.f32.mrb[0].mxu0
  %v479 = vadd.f32 %v79, %v478
  %v480 = vpop.f32.mrb[0].mxu0
  %481 = vmatprep.mubr.f32.mxu0 0.0
  %482 = vmatmul.mubr.f32.gmra.mrb[0].mxu0 %v202
  %v483 = vpop.f32.mrb[0].mxu0
  %v484 = vadd.f32 %v79, %v483
  %v485 = vpop.f32.mrb[0].mxu0
  %486 = vmatprep.mubr.f32.mxu0 0.0
  %487 = vmatmul.mubr.f32.gmra.mrb[0].mxu0 %v205
  %v488 = vpop.f32.mrb[0].mxu0
  %v489 = vadd.f32 %v79, %v488
  %v490 = vpop.f32.mrb[0].mxu0
  %491 = vmatprep.mubr.f32.mxu0 0.0
  %492 = vmatmul.mubr.f32.gmra.mrb[0].mxu0 %v208
  %v493 = vpop.f32.mrb[0].mxu0
  %v494 = vadd.f32 %v79, %v493
  %v495 = vpop.f32.mrb[0].mxu0
  %496 = vmatprep.mubr.f32.mxu0 0.0
  %497 = vmatmul.mubr.f32.gmra.mrb[0].mxu0 %v211
  %v498 = vpop.f32.mrb[0].mxu0
  %v499 = vadd.f32 %v79, %v498
  %v500 = vpop.f32.mrb[0].mxu0
  %501 = vdwg.mxu0
  %v502 = vmax.f32 %v284, 0.0
  %v503 = vmax.f32 %v289, 0.0
  %v504 = vmax.f32 %v294, 0.0
  %v505 = vmax.f32 %v299, 0.0
  %v506 = vmax.f32 %v304, 0.0
  %v507 = vmax.f32 %v309, 0.0
  %v508 = vmax.f32 %v314, 0.0
  %v509 = vmax.f32 %v319, 0.0
  %v510 = vmax.f32 %v324, 0.0
  %v511 = vmax.f32 %v329, 0.0
  %v512 = vmax.f32 %v334, 0.0
  %v513 = vmax.f32 %v339, 0.0
  %v514 = vmax.f32 %v344, 0.0
  %v515 = vmax.f32 %v349, 0.0
  %v516 = vmax.f32 %v354, 0.0
  %v517 = vmax.f32 %v359, 0.0
  %v518 = vmax.f32 %v364, 0.0
  %v519 = vmax.f32 %v369, 0.0
  %v520 = vmax.f32 %v374, 0.0
  %v521 = vmax.f32 %v379, 0.0
  %v522 = vmax.f32 %v384, 0.0
  %v523 = vmax.f32 %v389, 0.0
  %v524 = vmax.f32 %v394, 0.0
  %v525 = vmax.f32 %v399, 0.0
  %v526 = vmax.f32 %v404, 0.0
  %v527 = vmax.f32 %v409, 0.0
  %v528 = vmax.f32 %v414, 0.0
  %v529 = vmax.f32 %v419, 0.0
  %v530 = vmax.f32 %v424, 0.0
  %v531 = vmax.f32 %v429, 0.0
  %v532 = vmax.f32 %v434, 0.0
  %v533 = vmax.f32 %v439, 0.0
  %v534 = vmax.f32 %v444, 0.0
  %v535 = vmax.f32 %v449, 0.0
  %v536 = vmax.f32 %v454, 0.0
  %v537 = vmax.f32 %v459, 0.0
  %v538 = vmax.f32 %v464, 0.0
  %v539 = vmax.f32 %v469, 0.0
  %v540 = vmax.f32 %v474, 0.0
  %v541 = vmax.f32 %v479, 0.0
  %v542 = vmax.f32 %v484, 0.0
  %v543 = vmax.f32 %v489, 0.0
  %v544 = vmax.f32 %v494, 0.0
  %v545 = vmax.f32 %v499, 0.0
  %v546 = vmax.f32 %v502, %v524
  %v547 = vmax.f32 %v503, %v525
  %v548 = vmax.f32 %v504, %v526
  %v549 = vmax.f32 %v505, %v527
  %v550 = vmax.f32 %v506, %v528
  %v551 = vmax.f32 %v507, %v529
  %v552 = vmax.f32 %v508, %v530
  %v553 = vmax.f32 %v509, %v531
  %v554 = vmax.f32 %v510, %v532
  %v555 = vmax.f32 %v511, %v533
  %v556 = vmax.f32 %v512, %v534
  %v557 = vmax.f32 %v513, %v535
  %v558 = vmax.f32 %v514, %v536
  %v559 = vmax.f32 %v515, %v537
  %v560 = vmax.f32 %v516, %v538
  %v561 = vmax.f32 %v517, %v539
  %v562 = vmax.f32 %v518, %v540
  %v563 = vmax.f32 %v519, %v541
  %v564 = vmax.f32 %v520, %v542
  %v565 = vmax.f32 %v521, %v543
  %v566 = vmax.f32 %v522, %v544
  %v567 = vmax.f32 %v523, %v545
  %vm568 = vcmask 130048
  %569 = vst.msk [vmem:[#allocation2] sm:$0xff] %vm568, 0.0
  %570 = vst.msk [vmem:[#allocation2 + $0x8] sm:$0xff] %vm568, %v546
  %571 = vst.msk [vmem:[#allocation2 + $0x10] sm:$0xff] %vm568, %v547
  %572 = vst.msk [vmem:[#allocation2 + $0x18] sm:$0xff] %vm568, %v548
  %573 = vst.msk [vmem:[#allocation2 + $0x20] sm:$0xff] %vm568, %v549
  %574 = vst.msk [vmem:[#allocation2 + $0x28] sm:$0xff] %vm568, %v550
  %575 = vst.msk [vmem:[#allocation2 + $0x30] sm:$0xff] %vm568, %v551
  %576 = vst.msk [vmem:[#allocation2 + $0x38] sm:$0xff] %vm568, %v552
  %577 = vst.msk [vmem:[#allocation2 + $0x40] sm:$0xff] %vm568, %v553
  %578 = vst.msk [vmem:[#allocation2 + $0x48] sm:$0xff] %vm568, %v554
  %579 = vst.msk [vmem:[#allocation2 + $0x50] sm:$0xff] %vm568, %v555
  %580 = vst.msk [vmem:[#allocation2 + $0x58] sm:$0xff] %vm568, %v556
  %581 = vst.msk [vmem:[#allocation2 + $0x60] sm:$0xff] %vm568, %v557
  %582 = vst.msk [vmem:[#allocation2 + $0x68] sm:$0xff] %vm568, %v558
  %583 = vst.msk [vmem:[#allocation2 + $0x70] sm:$0xff] %vm568, %v559
  %584 = vst.msk [vmem:[#allocation2 + $0x78] sm:$0xff] %vm568, %v560
  %585 = vst.msk [vmem:[#allocation2 + $0x80] sm:$0xff] %vm568, %v561
  %586 = vst.msk [vmem:[#allocation2 + $0x88] sm:$0xff] %vm568, %v562
  %587 = vst.msk [vmem:[#allocation2 + $0x90] sm:$0xff] %vm568, %v563
  %588 = vst.msk [vmem:[#allocation2 + $0x98] sm:$0xff] %vm568, %v564
  %589 = vst.msk [vmem:[#allocation2 + $0xa0] sm:$0xff] %vm568, %v565
  %590 = vst.msk [vmem:[#allocation2 + $0xa8] sm:$0xff] %vm568, %v566
  %591 = vst.msk [vmem:[#allocation2 + $0xb0] sm:$0xff] %vm568, %v567
  %592 = vst.msk [vmem:[#allocation2 + $0xb8] sm:$0xff] %vm568, 0.0
  %v593 = vld [vmem:[%s6 + $0x1] sm:$0x1]
  %v594 = vld [vmem:[#allocation2] sm:$0xff]
  %v595 = vld [vmem:[#allocation2 + $0x8] sm:$0xff]
  %v596 = vld [vmem:[#allocation2 + $0x10] sm:$0xff]
  %v597 = vld [vmem:[#allocation2 + $0x18] sm:$0xff]
  %v598 = vld [vmem:[#allocation2 + $0x20] sm:$0xff]
  %v599 = vld [vmem:[#allocation2 + $0x28] sm:$0xff]
  %v600 = vld [vmem:[#allocation2 + $0x30] sm:$0xff]
  %v601 = vld [vmem:[#allocation2 + $0x38] sm:$0xff]
  %v602 = vld [vmem:[#allocation2 + $0x40] sm:$0xff]
  %v603 = vld [vmem:[#allocation2 + $0x48] sm:$0xff]
  %v604 = vld [vmem:[#allocation2 + $0x50] sm:$0xff]
  %v605 = vld [vmem:[#allocation2 + $0x58] sm:$0xff]
  %v606 = vld [vmem:[#allocation2 + $0x60] sm:$0xff]
  %v607 = vld [vmem:[#allocation2 + $0x68] sm:$0xff]
  %v608 = vld [vmem:[#allocation2 + $0x70] sm:$0xff]
  %v609 = vld [vmem:[#allocation2 + $0x78] sm:$0xff]
  %v610 = vld [vmem:[#allocation2 + $0x80] sm:$0xff]
  %v611 = vld [vmem:[#allocation2 + $0x88] sm:$0xff]
  %v612 = vld [vmem:[#allocation2 + $0x90] sm:$0xff]
  %v613 = vld [vmem:[#allocation2 + $0x98] sm:$0xff]
  %v614 = vld [vmem:[#allocation2 + $0xa0] sm:$0xff]
  %v615 = vld [vmem:[#allocation2 + $0xa8] sm:$0xff]
  %v616 = vld [vmem:[%s3] sm:$0xff]
  %v617 = vld [vmem:[%s3 + $0x8] sm:$0xff]
  %v618 = vld [vmem:[#allocation2 + $0xb0] sm:$0xff]
  %s619 = scalar_lea.vmem %s3, 16
  %v620 = vld [vmem:[%s619] sm:$0xff]
  %v621 = vld [vmem:[%s619 + $0x8] sm:$0xff]
  %v623 = vsel %vm568, %v595, 0
  %v626 = vsel %vm568, %v596, 0
  %v629 = vsel %vm568, %v597, 0
  %v632 = vsel %vm568, %v598, 0
  %v635 = vsel %vm568, %v599, 0
  %v638 = vsel %vm568, %v600, 0
  %v641 = vsel %vm568, %v601, 0
  %v644 = vsel %vm568, %v602, 0
  %v647 = vsel %vm568, %v603, 0
  %v650 = vsel %vm568, %v604, 0
  %v653 = vsel %vm568, %v605, 0
  %v656 = vsel %vm568, %v606, 0
  %v659 = vsel %vm568, %v607, 0
  %v662 = vsel %vm568, %v608, 0
  %v665 = vsel %vm568, %v609, 0
  %v668 = vsel %vm568, %v610, 0
  %v671 = vsel %vm568, %v611, 0
  %v674 = vsel %vm568, %v612, 0
  %v677 = vsel %vm568, %v613, 0
  %v680 = vsel %vm568, %v614, 0
  %v683 = vsel %vm568, %v615, 0
  %v686 = vsel %vm568, %v618, 0
  %688 = vmatprep.subr.mxu0 0.0
  %689 = vmatpush1.msra.mxu0 %v620
  %690 = vmatprep.subr.mxu0 0.0
  %691 = vmatpush1.msra.mxu0 %v621
  %692 = vmatprep.subr.mxu0 0.0
  %693 = vmatpush1.msra.mxu0 0.0
  %694 = vmatprep.subr.mxu0 0.0
  %695 = vmatpush1.msra.mxu0 0.0
  %696 = vmatprep.subr.mxu0 0.0
  %697 = vmatpush1.msra.mxu0 0.0
  %698 = vmatprep.subr.mxu0 0.0
  %699 = vmatpush1.msra.mxu0 0.0
  %700 = vmatprep.subr.mxu0 0.0
  %701 = vmatpush1.msra.mxu0 0.0
  %702 = vmatprep.subr.mxu0 0.0
  %703 = vmatpush1.msra.mxu0 0.0
  %704 = vmatprep.subr.mxu0 0.0
  %705 = vmatpush1.msra.mxu0 0.0
  %706 = vmatprep.subr.mxu0 0.0
  %707 = vmatpush1.msra.mxu0 0.0
  %708 = vmatprep.subr.mxu0 0.0
  %709 = vmatpush1.msra.mxu0 0.0
  %710 = vmatprep.subr.mxu0 0.0
  %711 = vmatpush1.msra.mxu0 0.0
  %712 = vmatprep.subr.mxu0 0.0
  %713 = vmatpush1.msra.mxu0 0.0
  %714 = vmatprep.subr.mxu0 0.0
  %715 = vmatpush1.msra.mxu0 0.0
  %716 = vmatprep.subr.mxu0 0.0
  %717 = vmatpush1.msra.mxu0 0.0
  %718 = vmatprep.subr.mxu0 0.0
  %719 = vmatpush1.msra.mxu0 0.0
  %720 = vmatprep.subr.mxu0 0.0
  %721 = vmatpush1.msra.mxu0 0.0
  %722 = vmatprep.subr.mxu0 0.0
  %723 = vmatpush1.msra.mxu0 0.0
  %724 = vmatprep.subr.mxu0 0.0
  %725 = vmatpush1.msra.mxu0 0.0
  %726 = vmatprep.subr.mxu0 0.0
  %727 = vmatpush1.msra.mxu0 0.0
  %728 = vmatprep.subr.mxu0 0.0
  %729 = vmatpush1.msra.mxu0 0.0
  %730 = vmatprep.subr.mxu0 0.0
  %731 = vmatpush1.msra.mxu0 0.0
  %732 = vmatprep.subr.mxu0 0.0
  %733 = vmatpush1.msra.mxu0 0.0
  %734 = vmatprep.subr.mxu0 0.0
  %735 = vmatpush1.msra.mxu0 0.0
  %736 = vmatprep.subr.mxu0 0.0
  %737 = vmatpush1.msra.mxu0 0.0
  %738 = vmatprep.subr.mxu0 0.0
  %739 = vmatpush1.msra.mxu0 0.0
  %740 = vmatprep.subr.mxu0 0.0
  %741 = vmatpush1.msra.mxu0 0.0
  %742 = vmatprep.subr.mxu0 0.0
  %743 = vmatpush1.msra.mxu0 0.0
  %744 = vmatprep.subr.mxu0 0.0
  %745 = vmatpush1.msra.mxu0 0.0
  %746 = vmatprep.subr.mxu0 0.0
  %747 = vmatpush1.msra.mxu0 0.0
  %748 = vmatprep.subr.mxu0 0.0
  %749 = vmatpush1.msra.mxu0 0.0
  %750 = vmatprep.subr.mxu0 0.0
  %751 = vmatpush1.msra.mxu0 0.0
  %752 = vmatprep.mubr.f32.mxu0 0.0
  %753 = vmatmul.mubr.f32.gmra.mrb[0].mxu0 %v623
  %v754 = vpop.f32.mrb[0].mxu0
  %v755 = vadd.f32 0.0, %v754
  %v756 = vpop.f32.mrb[0].mxu0
  %757 = vmatprep.mubr.f32.mxu0 0.0
  %758 = vmatmul.mubr.f32.gmra.mrb[0].mxu0 %v626
  %v759 = vpop.f32.mrb[0].mxu0
  %v760 = vadd.f32 0.0, %v759
  %v761 = vpop.f32.mrb[0].mxu0
  %762 = vmatprep.mubr.f32.mxu0 0.0
  %763 = vmatmul.mubr.f32.gmra.mrb[0].mxu0 %v629
  %v764 = vpop.f32.mrb[0].mxu0
  %v765 = vadd.f32 0.0, %v764
  %v766 = vpop.f32.mrb[0].mxu0
  %767 = vmatprep.mubr.f32.mxu0 0.0
  %768 = vmatmul.mubr.f32.gmra.mrb[0].mxu0 %v632
  %v769 = vpop.f32.mrb[0].mxu0
  %v770 = vadd.f32 0.0, %v769
  %v771 = vpop.f32.mrb[0].mxu0
  %772 = vmatprep.mubr.f32.mxu0 0.0
  %773 = vmatmul.mubr.f32.gmra.mrb[0].mxu0 %v635
  %v774 = vpop.f32.mrb[0].mxu0
  %v775 = vadd.f32 0.0, %v774
  %v776 = vpop.f32.mrb[0].mxu0
  %777 = vmatprep.mubr.f32.mxu0 0.0
  %778 = vmatmul.mubr.f32.gmra.mrb[0].mxu0 %v638
  %v779 = vpop.f32.mrb[0].mxu0
  %v780 = vadd.f32 0.0, %v779
  %v781 = vpop.f32.mrb[0].mxu0
  %782 = vmatprep.mubr.f32.mxu0 0.0
  %783 = vmatmul.mubr.f32.gmra.mrb[0].mxu0 %v641
  %v784 = vpop.f32.mrb[0].mxu0
  %v785 = vadd.f32 0.0, %v784
  %v786 = vpop.f32.mrb[0].mxu0
  %787 = vmatprep.mubr.f32.mxu0 0.0
  %788 = vmatmul.mubr.f32.gmra.mrb[0].mxu0 %v644
  %v789 = vpop.f32.mrb[0].mxu0
  %v790 = vadd.f32 0.0, %v789
  %v791 = vpop.f32.mrb[0].mxu0
  %792 = vmatprep.mubr.f32.mxu0 0.0
  %793 = vmatmul.mubr.f32.gmra.mrb[0].mxu0 %v647
  %v794 = vpop.f32.mrb[0].mxu0
  %v795 = vadd.f32 0.0, %v794
  %v796 = vpop.f32.mrb[0].mxu0
  %797 = vmatprep.mubr.f32.mxu0 0.0
  %798 = vmatmul.mubr.f32.gmra.mrb[0].mxu0 %v650
  %v799 = vpop.f32.mrb[0].mxu0
  %v800 = vadd.f32 0.0, %v799
  %v801 = vpop.f32.mrb[0].mxu0
  %802 = vmatprep.mubr.f32.mxu0 0.0
  %803 = vmatmul.mubr.f32.gmra.mrb[0].mxu0 %v653
  %v804 = vpop.f32.mrb[0].mxu0
  %v805 = vadd.f32 0.0, %v804
  %v806 = vpop.f32.mrb[0].mxu0
  %807 = vmatprep.mubr.f32.mxu0 0.0
  %808 = vmatmul.mubr.f32.gmra.mrb[0].mxu0 %v656
  %v809 = vpop.f32.mrb[0].mxu0
  %v810 = vadd.f32 0.0, %v809
  %v811 = vpop.f32.mrb[0].mxu0
  %812 = vmatprep.mubr.f32.mxu0 0.0
  %813 = vmatmul.mubr.f32.gmra.mrb[0].mxu0 %v659
  %v814 = vpop.f32.mrb[0].mxu0
  %v815 = vadd.f32 0.0, %v814
  %v816 = vpop.f32.mrb[0].mxu0
  %817 = vmatprep.mubr.f32.mxu0 0.0
  %818 = vmatmul.mubr.f32.gmra.mrb[0].mxu0 %v662
  %v819 = vpop.f32.mrb[0].mxu0
  %v820 = vadd.f32 0.0, %v819
  %v821 = vpop.f32.mrb[0].mxu0
  %822 = vmatprep.mubr.f32.mxu0 0.0
  %823 = vmatmul.mubr.f32.gmra.mrb[0].mxu0 %v665
  %v824 = vpop.f32.mrb[0].mxu0
  %v825 = vadd.f32 0.0, %v824
  %v826 = vpop.f32.mrb[0].mxu0
  %827 = vmatprep.mubr.f32.mxu0 0.0
  %828 = vmatmul.mubr.f32.gmra.mrb[0].mxu0 %v668
  %v829 = vpop.f32.mrb[0].mxu0
  %v830 = vadd.f32 0.0, %v829
  %v831 = vpop.f32.mrb[0].mxu0
  %832 = vmatprep.mubr.f32.mxu0 0.0
  %833 = vmatmul.mubr.f32.gmra.mrb[0].mxu0 %v671
  %v834 = vpop.f32.mrb[0].mxu0
  %v835 = vadd.f32 0.0, %v834
  %v836 = vpop.f32.mrb[0].mxu0
  %837 = vmatprep.mubr.f32.mxu0 0.0
  %838 = vmatmul.mubr.f32.gmra.mrb[0].mxu0 %v674
  %v839 = vpop.f32.mrb[0].mxu0
  %v840 = vadd.f32 0.0, %v839
  %v841 = vpop.f32.mrb[0].mxu0
  %842 = vmatprep.mubr.f32.mxu0 0.0
  %843 = vmatmul.mubr.f32.gmra.mrb[0].mxu0 %v677
  %v844 = vpop.f32.mrb[0].mxu0
  %v845 = vadd.f32 0.0, %v844
  %v846 = vpop.f32.mrb[0].mxu0
  %847 = vmatprep.mubr.f32.mxu0 0.0
  %848 = vmatmul.mubr.f32.gmra.mrb[0].mxu0 %v680
  %v849 = vpop.f32.mrb[0].mxu0
  %v850 = vadd.f32 0.0, %v849
  %v851 = vpop.f32.mrb[0].mxu0
  %852 = vmatprep.mubr.f32.mxu0 0.0
  %853 = vmatmul.mubr.f32.gmra.mrb[0].mxu0 %v683
  %v854 = vpop.f32.mrb[0].mxu0
  %v855 = vadd.f32 0.0, %v854
  %v856 = vpop.f32.mrb[0].mxu0
  %857 = vmatprep.mubr.f32.mxu0 0.0
  %858 = vmatmul.mubr.f32.gmra.mrb[0].mxu0 %v686
  %v859 = vpop.f32.mrb[0].mxu0
  %v860 = vadd.f32 0.0, %v859
  %v861 = vpop.f32.mrb[0].mxu0
  %862 = vdwg.mxu0
  %v864 = vsel %vm568, %v594, 0
  %866 = vmatprep.subr.mxu0 0.0
  %867 = vmatpush1.msra.mxu0 %v616
  %868 = vmatprep.subr.mxu0 0.0
  %869 = vmatpush1.msra.mxu0 %v617
  %870 = vmatprep.subr.mxu0 0.0
  %871 = vmatpush1.msra.mxu0 0.0
  %872 = vmatprep.subr.mxu0 0.0
  %873 = vmatpush1.msra.mxu0 0.0
  %874 = vmatprep.subr.mxu0 0.0
  %875 = vmatpush1.msra.mxu0 0.0
  %876 = vmatprep.subr.mxu0 0.0
  %877 = vmatpush1.msra.mxu0 0.0
  %878 = vmatprep.subr.mxu0 0.0
  %879 = vmatpush1.msra.mxu0 0.0
  %880 = vmatprep.subr.mxu0 0.0
  %881 = vmatpush1.msra.mxu0 0.0
  %882 = vmatprep.subr.mxu0 0.0
  %883 = vmatpush1.msra.mxu0 0.0
  %884 = vmatprep.subr.mxu0 0.0
  %885 = vmatpush1.msra.mxu0 0.0
  %886 = vmatprep.subr.mxu0 0.0
  %887 = vmatpush1.msra.mxu0 0.0
  %888 = vmatprep.subr.mxu0 0.0
  %889 = vmatpush1.msra.mxu0 0.0
  %890 = vmatprep.subr.mxu0 0.0
  %891 = vmatpush1.msra.mxu0 0.0
  %892 = vmatprep.subr.mxu0 0.0
  %893 = vmatpush1.msra.mxu0 0.0
  %894 = vmatprep.subr.mxu0 0.0
  %895 = vmatpush1.msra.mxu0 0.0
  %896 = vmatprep.subr.mxu0 0.0
  %897 = vmatpush1.msra.mxu0 0.0
  %898 = vmatprep.subr.mxu0 0.0
  %899 = vmatpush1.msra.mxu0 0.0
  %900 = vmatprep.subr.mxu0 0.0
  %901 = vmatpush1.msra.mxu0 0.0
  %902 = vmatprep.subr.mxu0 0.0
  %903 = vmatpush1.msra.mxu0 0.0
  %904 = vmatprep.subr.mxu0 0.0
  %905 = vmatpush1.msra.mxu0 0.0
  %906 = vmatprep.subr.mxu0 0.0
  %907 = vmatpush1.msra.mxu0 0.0
  %908 = vmatprep.subr.mxu0 0.0
  %909 = vmatpush1.msra.mxu0 0.0
  %910 = vmatprep.subr.mxu0 0.0
  %911 = vmatpush1.msra.mxu0 0.0
  %912 = vmatprep.subr.mxu0 0.0
  %913 = vmatpush1.msra.mxu0 0.0
  %914 = vmatprep.subr.mxu0 0.0
  %915 = vmatpush1.msra.mxu0 0.0
  %916 = vmatprep.subr.mxu0 0.0
  %917 = vmatpush1.msra.mxu0 0.0
  %918 = vmatprep.subr.mxu0 0.0
  %919 = vmatpush1.msra.mxu0 0.0
  %920 = vmatprep.subr.mxu0 0.0
  %921 = vmatpush1.msra.mxu0 0.0
  %922 = vmatprep.subr.mxu0 0.0
  %923 = vmatpush1.msra.mxu0 0.0
  %924 = vmatprep.subr.mxu0 0.0
  %925 = vmatpush1.msra.mxu0 0.0
  %926 = vmatprep.subr.mxu0 0.0
  %927 = vmatpush1.msra.mxu0 0.0
  %928 = vmatprep.subr.mxu0 0.0
  %929 = vmatpush1.msra.mxu0 0.0
  %930 = vmatprep.mubr.f32.mxu0 0.0
  %931 = vmatmul.mubr.f32.gmra.mrb[0].mxu0 %v864
  %v932 = vpop.f32.mrb[0].mxu0
  %v933 = vadd.f32 %v755, %v932
  %v934 = vpop.f32.mrb[0].mxu0
  %935 = vmatprep.mubr.f32.mxu0 0.0
  %936 = vmatmul.mubr.f32.gmra.mrb[0].mxu0 %v623
  %v937 = vpop.f32.mrb[0].mxu0
  %v938 = vadd.f32 %v760, %v937
  %v939 = vpop.f32.mrb[0].mxu0
  %940 = vmatprep.mubr.f32.mxu0 0.0
  %941 = vmatmul.mubr.f32.gmra.mrb[0].mxu0 %v626
  %v942 = vpop.f32.mrb[0].mxu0
  %v943 = vadd.f32 %v765, %v942
  %v944 = vpop.f32.mrb[0].mxu0
  %945 = vmatprep.mubr.f32.mxu0 0.0
  %946 = vmatmul.mubr.f32.gmra.mrb[0].mxu0 %v629
  %v947 = vpop.f32.mrb[0].mxu0
  %v948 = vadd.f32 %v770, %v947
  %v949 = vpop.f32.mrb[0].mxu0
  %950 = vmatprep.mubr.f32.mxu0 0.0
  %951 = vmatmul.mubr.f32.gmra.mrb[0].mxu0 %v632
  %v952 = vpop.f32.mrb[0].mxu0
  %v953 = vadd.f32 %v775, %v952
  %v954 = vpop.f32.mrb[0].mxu0
  %955 = vmatprep.mubr.f32.mxu0 0.0
  %956 = vmatmul.mubr.f32.gmra.mrb[0].mxu0 %v635
  %v957 = vpop.f32.mrb[0].mxu0
  %v958 = vadd.f32 %v780, %v957
  %v959 = vpop.f32.mrb[0].mxu0
  %960 = vmatprep.mubr.f32.mxu0 0.0
  %961 = vmatmul.mubr.f32.gmra.mrb[0].mxu0 %v638
  %v962 = vpop.f32.mrb[0].mxu0
  %v963 = vadd.f32 %v785, %v962
  %v964 = vpop.f32.mrb[0].mxu0
  %965 = vmatprep.mubr.f32.mxu0 0.0
  %966 = vmatmul.mubr.f32.gmra.mrb[0].mxu0 %v641
  %v967 = vpop.f32.mrb[0].mxu0
  %v968 = vadd.f32 %v790, %v967
  %v969 = vpop.f32.mrb[0].mxu0
  %970 = vmatprep.mubr.f32.mxu0 0.0
  %971 = vmatmul.mubr.f32.gmra.mrb[0].mxu0 %v644
  %v972 = vpop.f32.mrb[0].mxu0
  %v973 = vadd.f32 %v795, %v972
  %v974 = vpop.f32.mrb[0].mxu0
  %975 = vmatprep.mubr.f32.mxu0 0.0
  %976 = vmatmul.mubr.f32.gmra.mrb[0].mxu0 %v647
  %v977 = vpop.f32.mrb[0].mxu0
  %v978 = vadd.f32 %v800, %v977
  %v979 = vpop.f32.mrb[0].mxu0
  %980 = vmatprep.mubr.f32.mxu0 0.0
  %981 = vmatmul.mubr.f32.gmra.mrb[0].mxu0 %v650
  %v982 = vpop.f32.mrb[0].mxu0
  %v983 = vadd.f32 %v805, %v982
  %v984 = vpop.f32.mrb[0].mxu0
  %985 = vmatprep.mubr.f32.mxu0 0.0
  %986 = vmatmul.mubr.f32.gmra.mrb[0].mxu0 %v653
  %v987 = vpop.f32.mrb[0].mxu0
  %v988 = vadd.f32 %v810, %v987
  %v989 = vpop.f32.mrb[0].mxu0
  %990 = vmatprep.mubr.f32.mxu0 0.0
  %991 = vmatmul.mubr.f32.gmra.mrb[0].mxu0 %v656
  %v992 = vpop.f32.mrb[0].mxu0
  %v993 = vadd.f32 %v815, %v992
  %v994 = vpop.f32.mrb[0].mxu0
  %995 = vmatprep.mubr.f32.mxu0 0.0
  %996 = vmatmul.mubr.f32.gmra.mrb[0].mxu0 %v659
  %v997 = vpop.f32.mrb[0].mxu0
  %v998 = vadd.f32 %v820, %v997
  %v999 = vpop.f32.mrb[0].mxu0
  %1000 = vmatprep.mubr.f32.mxu0 0.0
  %1001 = vmatmul.mubr.f32.gmra.mrb[0].mxu0 %v662
  %v1002 = vpop.f32.mrb[0].mxu0
  %v1003 = vadd.f32 %v825, %v1002
  %v1004 = vpop.f32.mrb[0].mxu0
  %1005 = vmatprep.mubr.f32.mxu0 0.0
  %1006 = vmatmul.mubr.f32.gmra.mrb[0].mxu0 %v665
  %v1007 = vpop.f32.mrb[0].mxu0
  %v1008 = vadd.f32 %v830, %v1007
  %v1009 = vpop.f32.mrb[0].mxu0
  %1010 = vmatprep.mubr.f32.mxu0 0.0
  %1011 = vmatmul.mubr.f32.gmra.mrb[0].mxu0 %v668
  %v1012 = vpop.f32.mrb[0].mxu0
  %v1013 = vadd.f32 %v835, %v1012
  %v1014 = vpop.f32.mrb[0].mxu0
  %1015 = vmatprep.mubr.f32.mxu0 0.0
  %1016 = vmatmul.mubr.f32.gmra.mrb[0].mxu0 %v671
  %v1017 = vpop.f32.mrb[0].mxu0
  %v1018 = vadd.f32 %v840, %v1017
  %v1019 = vpop.f32.mrb[0].mxu0
  %1020 = vmatprep.mubr.f32.mxu0 0.0
  %1021 = vmatmul.mubr.f32.gmra.mrb[0].mxu0 %v674
  %v1022 = vpop.f32.mrb[0].mxu0
  %v1023 = vadd.f32 %v845, %v1022
  %v1024 = vpop.f32.mrb[0].mxu0
  %1025 = vmatprep.mubr.f32.mxu0 0.0
  %1026 = vmatmul.mubr.f32.gmra.mrb[0].mxu0 %v677
  %v1027 = vpop.f32.mrb[0].mxu0
  %v1028 = vadd.f32 %v850, %v1027
  %v1029 = vpop.f32.mrb[0].mxu0
  %1030 = vmatprep.mubr.f32.mxu0 0.0
  %1031 = vmatmul.mubr.f32.gmra.mrb[0].mxu0 %v680
  %v1032 = vpop.f32.mrb[0].mxu0
  %v1033 = vadd.f32 %v855, %v1032
  %v1034 = vpop.f32.mrb[0].mxu0
  %1035 = vmatprep.mubr.f32.mxu0 0.0
  %1036 = vmatmul.mubr.f32.gmra.mrb[0].mxu0 %v683
  %v1037 = vpop.f32.mrb[0].mxu0
  %v1038 = vadd.f32 %v860, %v1037
  %v1039 = vpop.f32.mrb[0].mxu0
  %1040 = vdwg.mxu0
  %v1041 = vld [vmem:[#allocation2 + $0x10] sm:$0xff]
  %v1042 = vld [vmem:[#allocation2 + $0x18] sm:$0xff]
  %v1043 = vld [vmem:[#allocation2 + $0x20] sm:$0xff]
  %v1044 = vld [vmem:[#allocation2 + $0x28] sm:$0xff]
  %v1045 = vld [vmem:[#allocation2 + $0x30] sm:$0xff]
  %v1046 = vld [vmem:[#allocation2 + $0x38] sm:$0xff]
  %v1047 = vld [vmem:[#allocation2 + $0x40] sm:$0xff]
  %v1048 = vld [vmem:[#allocation2 + $0x48] sm:$0xff]
  %v1049 = vld [vmem:[#allocation2 + $0x50] sm:$0xff]
  %v1050 = vld [vmem:[#allocation2 + $0x58] sm:$0xff]
  %v1051 = vld [vmem:[#allocation2 + $0x60] sm:$0xff]
  %v1052 = vld [vmem:[#allocation2 + $0x68] sm:$0xff]
  %v1053 = vld [vmem:[#allocation2 + $0x70] sm:$0xff]
  %v1054 = vld [vmem:[#allocation2 + $0x78] sm:$0xff]
  %v1055 = vld [vmem:[#allocation2 + $0x80] sm:$0xff]
  %v1056 = vld [vmem:[#allocation2 + $0x88] sm:$0xff]
  %v1057 = vld [vmem:[#allocation2 + $0x90] sm:$0xff]
  %v1058 = vld [vmem:[#allocation2 + $0x98] sm:$0xff]
  %v1059 = vld [vmem:[#allocation2 + $0xa0] sm:$0xff]
  %v1060 = vld [vmem:[#allocation2 + $0xa8] sm:$0xff]
  %v1061 = vld [vmem:[#allocation2 + $0xb0] sm:$0xff]
  %v1062 = vld [vmem:[#allocation2 + $0xb8] sm:$0xff]
  %s1063 = scalar_lea.vmem %s3, 32
  %v1064 = vld [vmem:[%s1063] sm:$0xff]
  %v1065 = vld [vmem:[%s1063 + $0x8] sm:$0xff]
  %v1067 = vsel %vm568, %v1041, 0
  %v1070 = vsel %vm568, %v1042, 0
  %v1073 = vsel %vm568, %v1043, 0
  %v1076 = vsel %vm568, %v1044, 0
  %v1079 = vsel %vm568, %v1045, 0
  %v1082 = vsel %vm568, %v1046, 0
  %v1085 = vsel %vm568, %v1047, 0
  %v1088 = vsel %vm568, %v1048, 0
  %v1091 = vsel %vm568, %v1049, 0
  %v1094 = vsel %vm568, %v1050, 0
  %v1097 = vsel %vm568, %v1051, 0
  %v1100 = vsel %vm568, %v1052, 0
  %v1103 = vsel %vm568, %v1053, 0
  %v1106 = vsel %vm568, %v1054, 0
  %v1109 = vsel %vm568, %v1055, 0
  %v1112 = vsel %vm568, %v1056, 0
  %v1115 = vsel %vm568, %v1057, 0
  %v1118 = vsel %vm568, %v1058, 0
  %v1121 = vsel %vm568, %v1059, 0
  %v1124 = vsel %vm568, %v1060, 0
  %v1127 = vsel %vm568, %v1061, 0
  %v1130 = vsel %vm568, %v1062, 0
  %1132 = vmatprep.subr.mxu0 0.0
  %1133 = vmatpush1.msra.mxu0 %v1064
  %1134 = vmatprep.subr.mxu0 0.0
  %1135 = vmatpush1.msra.mxu0 %v1065
  %1136 = vmatprep.subr.mxu0 0.0
  %1137 = vmatpush1.msra.mxu0 0.0
  %1138 = vmatprep.subr.mxu0 0.0
  %1139 = vmatpush1.msra.mxu0 0.0
  %1140 = vmatprep.subr.mxu0 0.0
  %1141 = vmatpush1.msra.mxu0 0.0
  %1142 = vmatprep.subr.mxu0 0.0
  %1143 = vmatpush1.msra.mxu0 0.0
  %1144 = vmatprep.subr.mxu0 0.0
  %1145 = vmatpush1.msra.mxu0 0.0
  %1146 = vmatprep.subr.mxu0 0.0
  %1147 = vmatpush1.msra.mxu0 0.0
  %1148 = vmatprep.subr.mxu0 0.0
  %1149 = vmatpush1.msra.mxu0 0.0
  %1150 = vmatprep.subr.mxu0 0.0
  %1151 = vmatpush1.msra.mxu0 0.0
  %1152 = vmatprep.subr.mxu0 0.0
  %1153 = vmatpush1.msra.mxu0 0.0
  %1154 = vmatprep.subr.mxu0 0.0
  %1155 = vmatpush1.msra.mxu0 0.0
  %1156 = vmatprep.subr.mxu0 0.0
  %1157 = vmatpush1.msra.mxu0 0.0
  %1158 = vmatprep.subr.mxu0 0.0
  %1159 = vmatpush1.msra.mxu0 0.0
  %1160 = vmatprep.subr.mxu0 0.0
  %1161 = vmatpush1.msra.mxu0 0.0
  %1162 = vmatprep.subr.mxu0 0.0
  %1163 = vmatpush1.msra.mxu0 0.0
  %1164 = vmatprep.subr.mxu0 0.0
  %1165 = vmatpush1.msra.mxu0 0.0
  %1166 = vmatprep.subr.mxu0 0.0
  %1167 = vmatpush1.msra.mxu0 0.0
  %1168 = vmatprep.subr.mxu0 0.0
  %1169 = vmatpush1.msra.mxu0 0.0
  %1170 = vmatprep.subr.mxu0 0.0
  %1171 = vmatpush1.msra.mxu0 0.0
  %1172 = vmatprep.subr.mxu0 0.0
  %1173 = vmatpush1.msra.mxu0 0.0
  %1174 = vmatprep.subr.mxu0 0.0
  %1175 = vmatpush1.msra.mxu0 0.0
  %1176 = vmatprep.subr.mxu0 0.0
  %1177 = vmatpush1.msra.mxu0 0.0
  %1178 = vmatprep.subr.mxu0 0.0
  %1179 = vmatpush1.msra.mxu0 0.0
  %1180 = vmatprep.subr.mxu0 0.0
  %1181 = vmatpush1.msra.mxu0 0.0
  %1182 = vmatprep.subr.mxu0 0.0
  %1183 = vmatpush1.msra.mxu0 0.0
  %1184 = vmatprep.subr.mxu0 0.0
  %1185 = vmatpush1.msra.mxu0 0.0
  %1186 = vmatprep.subr.mxu0 0.0
  %1187 = vmatpush1.msra.mxu0 0.0
  %1188 = vmatprep.subr.mxu0 0.0
  %1189 = vmatpush1.msra.mxu0 0.0
  %1190 = vmatprep.subr.mxu0 0.0
  %1191 = vmatpush1.msra.mxu0 0.0
  %1192 = vmatprep.subr.mxu0 0.0
  %1193 = vmatpush1.msra.mxu0 0.0
  %1194 = vmatprep.subr.mxu0 0.0
  %1195 = vmatpush1.msra.mxu0 0.0
  %1196 = vmatprep.mubr.f32.mxu0 0.0
  %1197 = vmatmul.mubr.f32.gmra.mrb[0].mxu0 %v1067
  %v1198 = vpop.f32.mrb[0].mxu0
  %v1199 = vadd.f32 0.0, %v1198
  %v1200 = vpop.f32.mrb[0].mxu0
  %1201 = vmatprep.mubr.f32.mxu0 0.0
  %1202 = vmatmul.mubr.f32.gmra.mrb[0].mxu0 %v1070
  %v1203 = vpop.f32.mrb[0].mxu0
  %v1204 = vadd.f32 0.0, %v1203
  %v1205 = vpop.f32.mrb[0].mxu0
  %1206 = vmatprep.mubr.f32.mxu0 0.0
  %1207 = vmatmul.mubr.f32.gmra.mrb[0].mxu0 %v1073
  %v1208 = vpop.f32.mrb[0].mxu0
  %v1209 = vadd.f32 0.0, %v1208
  %v1210 = vpop.f32.mrb[0].mxu0
  %1211 = vmatprep.mubr.f32.mxu0 0.0
  %1212 = vmatmul.mubr.f32.gmra.mrb[0].mxu0 %v1076
  %v1213 = vpop.f32.mrb[0].mxu0
  %v1214 = vadd.f32 0.0, %v1213
  %v1215 = vpop.f32.mrb[0].mxu0
  %1216 = vmatprep.mubr.f32.mxu0 0.0
  %1217 = vmatmul.mubr.f32.gmra.mrb[0].mxu0 %v1079
  %v1218 = vpop.f32.mrb[0].mxu0
  %v1219 = vadd.f32 0.0, %v1218
  %v1220 = vpop.f32.mrb[0].mxu0
  %1221 = vmatprep.mubr.f32.mxu0 0.0
  %1222 = vmatmul.mubr.f32.gmra.mrb[0].mxu0 %v1082
  %v1223 = vpop.f32.mrb[0].mxu0
  %v1224 = vadd.f32 0.0, %v1223
  %v1225 = vpop.f32.mrb[0].mxu0
  %1226 = vmatprep.mubr.f32.mxu0 0.0
  %1227 = vmatmul.mubr.f32.gmra.mrb[0].mxu0 %v1085
  %v1228 = vpop.f32.mrb[0].mxu0
  %v1229 = vadd.f32 0.0, %v1228
  %v1230 = vpop.f32.mrb[0].mxu0
  %1231 = vmatprep.mubr.f32.mxu0 0.0
  %1232 = vmatmul.mubr.f32.gmra.mrb[0].mxu0 %v1088
  %v1233 = vpop.f32.mrb[0].mxu0
  %v1234 = vadd.f32 0.0, %v1233
  %v1235 = vpop.f32.mrb[0].mxu0
  %1236 = vmatprep.mubr.f32.mxu0 0.0
  %1237 = vmatmul.mubr.f32.gmra.mrb[0].mxu0 %v1091
  %v1238 = vpop.f32.mrb[0].mxu0
  %v1239 = vadd.f32 0.0, %v1238
  %v1240 = vpop.f32.mrb[0].mxu0
  %1241 = vmatprep.mubr.f32.mxu0 0.0
  %1242 = vmatmul.mubr.f32.gmra.mrb[0].mxu0 %v1094
  %v1243 = vpop.f32.mrb[0].mxu0
  %v1244 = vadd.f32 0.0, %v1243
  %v1245 = vpop.f32.mrb[0].mxu0
  %1246 = vmatprep.mubr.f32.mxu0 0.0
  %1247 = vmatmul.mubr.f32.gmra.mrb[0].mxu0 %v1097
  %v1248 = vpop.f32.mrb[0].mxu0
  %v1249 = vadd.f32 0.0, %v1248
  %v1250 = vpop.f32.mrb[0].mxu0
  %1251 = vmatprep.mubr.f32.mxu0 0.0
  %1252 = vmatmul.mubr.f32.gmra.mrb[0].mxu0 %v1100
  %v1253 = vpop.f32.mrb[0].mxu0
  %v1254 = vadd.f32 0.0, %v1253
  %v1255 = vpop.f32.mrb[0].mxu0
  %1256 = vmatprep.mubr.f32.mxu0 0.0
  %1257 = vmatmul.mubr.f32.gmra.mrb[0].mxu0 %v1103
  %v1258 = vpop.f32.mrb[0].mxu0
  %v1259 = vadd.f32 0.0, %v1258
  %v1260 = vpop.f32.mrb[0].mxu0
  %1261 = vmatprep.mubr.f32.mxu0 0.0
  %1262 = vmatmul.mubr.f32.gmra.mrb[0].mxu0 %v1106
  %v1263 = vpop.f32.mrb[0].mxu0
  %v1264 = vadd.f32 0.0, %v1263
  %v1265 = vpop.f32.mrb[0].mxu0
  %1266 = vmatprep.mubr.f32.mxu0 0.0
  %1267 = vmatmul.mubr.f32.gmra.mrb[0].mxu0 %v1109
  %v1268 = vpop.f32.mrb[0].mxu0
  %v1269 = vadd.f32 0.0, %v1268
  %v1270 = vpop.f32.mrb[0].mxu0
  %1271 = vmatprep.mubr.f32.mxu0 0.0
  %1272 = vmatmul.mubr.f32.gmra.mrb[0].mxu0 %v1112
  %v1273 = vpop.f32.mrb[0].mxu0
  %v1274 = vadd.f32 0.0, %v1273
  %v1275 = vpop.f32.mrb[0].mxu0
  %1276 = vmatprep.mubr.f32.mxu0 0.0
  %1277 = vmatmul.mubr.f32.gmra.mrb[0].mxu0 %v1115
  %v1278 = vpop.f32.mrb[0].mxu0
  %v1279 = vadd.f32 0.0, %v1278
  %v1280 = vpop.f32.mrb[0].mxu0
  %1281 = vmatprep.mubr.f32.mxu0 0.0
  %1282 = vmatmul.mubr.f32.gmra.mrb[0].mxu0 %v1118
  %v1283 = vpop.f32.mrb[0].mxu0
  %v1284 = vadd.f32 0.0, %v1283
  %v1285 = vpop.f32.mrb[0].mxu0
  %1286 = vmatprep.mubr.f32.mxu0 0.0
  %1287 = vmatmul.mubr.f32.gmra.mrb[0].mxu0 %v1121
  %v1288 = vpop.f32.mrb[0].mxu0
  %v1289 = vadd.f32 0.0, %v1288
  %v1290 = vpop.f32.mrb[0].mxu0
  %1291 = vmatprep.mubr.f32.mxu0 0.0
  %1292 = vmatmul.mubr.f32.gmra.mrb[0].mxu0 %v1124
  %v1293 = vpop.f32.mrb[0].mxu0
  %v1294 = vadd.f32 0.0, %v1293
  %v1295 = vpop.f32.mrb[0].mxu0
  %1296 = vmatprep.mubr.f32.mxu0 0.0
  %1297 = vmatmul.mubr.f32.gmra.mrb[0].mxu0 %v1127
  %v1298 = vpop.f32.mrb[0].mxu0
  %v1299 = vadd.f32 0.0, %v1298
  %v1300 = vpop.f32.mrb[0].mxu0
  %1301 = vmatprep.mubr.f32.mxu0 0.0
  %1302 = vmatmul.mubr.f32.gmra.mrb[0].mxu0 %v1130
  %v1303 = vpop.f32.mrb[0].mxu0
  %v1304 = vadd.f32 0.0, %v1303
  %v1305 = vpop.f32.mrb[0].mxu0
  %1306 = vdwg.mxu0
  %v1307 = vadd.f32 %v933, %v1199
  %v1308 = vadd.f32 %v938, %v1204
  %v1309 = vadd.f32 %v943, %v1209
  %v1310 = vadd.f32 %v948, %v1214
  %v1311 = vadd.f32 %v953, %v1219
  %v1312 = vadd.f32 %v958, %v1224
  %v1313 = vadd.f32 %v963, %v1229
  %v1314 = vadd.f32 %v968, %v1234
  %v1315 = vadd.f32 %v973, %v1239
  %v1316 = vadd.f32 %v978, %v1244
  %v1317 = vadd.f32 %v983, %v1249
  %v1318 = vadd.f32 %v988, %v1254
  %v1319 = vadd.f32 %v993, %v1259
  %v1320 = vadd.f32 %v998, %v1264
  %v1321 = vadd.f32 %v1003, %v1269
  %v1322 = vadd.f32 %v1008, %v1274
  %v1323 = vadd.f32 %v1013, %v1279
  %v1324 = vadd.f32 %v1018, %v1284
  %v1325 = vadd.f32 %v1023, %v1289
  %v1326 = vadd.f32 %v1028, %v1294
  %v1327 = vadd.f32 %v1033, %v1299
  %v1328 = vadd.f32 %v1038, %v1304
  %v1329 = vlaneseq
  %v1330 = vshrl.u32 %v1329, 7
  %v1331 = vsub.s32 0, %v1330
  %v1332 = vrot.slane %v593, %v1331
  %v1333 = vadd.f32 %v1307, %v1332
  %v1334 = vadd.f32 %v1308, %v1332
  %v1335 = vadd.f32 %v1309, %v1332
  %v1336 = vadd.f32 %v1310, %v1332
  %v1337 = vadd.f32 %v1311, %v1332
  %v1338 = vadd.f32 %v1312, %v1332
  %v1339 = vadd.f32 %v1313, %v1332
  %v1340 = vadd.f32 %v1314, %v1332
  %v1341 = vadd.f32 %v1315, %v1332
  %v1342 = vadd.f32 %v1316, %v1332
  %v1343 = vadd.f32 %v1317, %v1332
  %v1344 = vadd.f32 %v1318, %v1332
  %v1345 = vadd.f32 %v1319, %v1332
  %v1346 = vadd.f32 %v1320, %v1332
  %v1347 = vadd.f32 %v1321, %v1332
  %v1348 = vadd.f32 %v1322, %v1332
  %v1349 = vadd.f32 %v1323, %v1332
  %v1350 = vadd.f32 %v1324, %v1332
  %v1351 = vadd.f32 %v1325, %v1332
  %v1352 = vadd.f32 %v1326, %v1332
  %v1353 = vadd.f32 %v1327, %v1332
  %v1354 = vadd.f32 %v1328, %v1332
  %v1355 = vmax.f32 %v1333, 0.0
  %v1356 = vmax.f32 %v1334, 0.0
  %v1357 = vmax.f32 %v1335, 0.0
  %v1358 = vmax.f32 %v1336, 0.0
  %v1359 = vmax.f32 %v1337, 0.0
  %v1360 = vmax.f32 %v1338, 0.0
  %v1361 = vmax.f32 %v1339, 0.0
  %v1362 = vmax.f32 %v1340, 0.0
  %v1363 = vmax.f32 %v1341, 0.0
  %v1364 = vmax.f32 %v1342, 0.0
  %v1365 = vmax.f32 %v1343, 0.0
  %v1366 = vmax.f32 %v1344, 0.0
  %v1367 = vmax.f32 %v1345, 0.0
  %v1368 = vmax.f32 %v1346, 0.0
  %v1369 = vmax.f32 %v1347, 0.0
  %v1370 = vmax.f32 %v1348, 0.0
  %v1371 = vmax.f32 %v1349, 0.0
  %v1372 = vmax.f32 %v1350, 0.0
  %v1373 = vmax.f32 %v1351, 0.0
  %v1374 = vmax.f32 %v1352, 0.0
  %v1375 = vmax.f32 %v1353, 0.0
  %v1376 = vmax.f32 %v1354, 0.0
  %v1377 = vadd.f32 %v1355, %v1356
  %v1378 = vld [vmem:[%s5] sm:$0xff]
  %v1379 = vld [vmem:[%s5 + $0x8] sm:$0xff]
  %v1380 = vld [vmem:[%s5 + $0x10] sm:$0xff]
  %v1381 = vld [vmem:[%s5 + $0x18] sm:$0xff]
  %v1382 = vadd.f32 %v1356, %v1357
  %v1383 = vld [vmem:[%s5 + $0x20] sm:$0xff]
  %v1384 = vld [vmem:[%s5 + $0x28] sm:$0xff]
  %v1385 = vld [vmem:[%s5 + $0x30] sm:$0xff]
  %v1386 = vld [vmem:[%s5 + $0x38] sm:$0xff]
  %vm1387 = vcmask 261120
  %v1389 = vsel %vm1387, %v1382, 0
  %1391 = vmatprep.subr.mxu0 0.0
  %1392 = vmatpush1.msra.mxu0 %v1383
  %1393 = vmatprep.subr.mxu0 0.0
  %1394 = vmatpush1.msra.mxu0 %v1384
  %1395 = vmatprep.subr.mxu0 0.0
  %1396 = vmatpush1.msra.mxu0 %v1385
  %1397 = vmatprep.subr.mxu0 0.0
  %1398 = vmatpush1.msra.mxu0 %v1386
  %1399 = vmatprep.subr.mxu0 0.0
  %1400 = vmatpush1.msra.mxu0 0.0
  %1401 = vmatprep.subr.mxu0 0.0
  %1402 = vmatpush1.msra.mxu0 0.0
  %1403 = vmatprep.subr.mxu0 0.0
  %1404 = vmatpush1.msra.mxu0 0.0
  %1405 = vmatprep.subr.mxu0 0.0
  %1406 = vmatpush1.msra.mxu0 0.0
  %1407 = vmatprep.subr.mxu0 0.0
  %1408 = vmatpush1.msra.mxu0 0.0
  %1409 = vmatprep.subr.mxu0 0.0
  %1410 = vmatpush1.msra.mxu0 0.0
  %1411 = vmatprep.subr.mxu0 0.0
  %1412 = vmatpush1.msra.mxu0 0.0
  %1413 = vmatprep.subr.mxu0 0.0
  %1414 = vmatpush1.msra.mxu0 0.0
  %1415 = vmatprep.subr.mxu0 0.0
  %1416 = vmatpush1.msra.mxu0 0.0
  %1417 = vmatprep.subr.mxu0 0.0
  %1418 = vmatpush1.msra.mxu0 0.0
  %1419 = vmatprep.subr.mxu0 0.0
  %1420 = vmatpush1.msra.mxu0 0.0
  %1421 = vmatprep.subr.mxu0 0.0
  %1422 = vmatpush1.msra.mxu0 0.0
  %1423 = vmatprep.subr.mxu0 0.0
  %1424 = vmatpush1.msra.mxu0 0.0
  %1425 = vmatprep.subr.mxu0 0.0
  %1426 = vmatpush1.msra.mxu0 0.0
  %1427 = vmatprep.subr.mxu0 0.0
  %1428 = vmatpush1.msra.mxu0 0.0
  %1429 = vmatprep.subr.mxu0 0.0
  %1430 = vmatpush1.msra.mxu0 0.0
  %1431 = vmatprep.subr.mxu0 0.0
  %1432 = vmatpush1.msra.mxu0 0.0
  %1433 = vmatprep.subr.mxu0 0.0
  %1434 = vmatpush1.msra.mxu0 0.0
  %1435 = vmatprep.subr.mxu0 0.0
  %1436 = vmatpush1.msra.mxu0 0.0
  %1437 = vmatprep.subr.mxu0 0.0
  %1438 = vmatpush1.msra.mxu0 0.0
  %1439 = vmatprep.subr.mxu0 0.0
  %1440 = vmatpush1.msra.mxu0 0.0
  %1441 = vmatprep.subr.mxu0 0.0
  %1442 = vmatpush1.msra.mxu0 0.0
  %1443 = vmatprep.subr.mxu0 0.0
  %1444 = vmatpush1.msra.mxu0 0.0
  %1445 = vmatprep.subr.mxu0 0.0
  %1446 = vmatpush1.msra.mxu0 0.0
  %1447 = vmatprep.subr.mxu0 0.0
  %1448 = vmatpush1.msra.mxu0 0.0
  %1449 = vmatprep.subr.mxu0 0.0
  %1450 = vmatpush1.msra.mxu0 0.0
  %1451 = vmatprep.subr.mxu0 0.0
  %1452 = vmatpush1.msra.mxu0 0.0
  %1453 = vmatprep.subr.mxu0 0.0
  %1454 = vmatpush1.msra.mxu0 0.0
  %1455 = vmatprep.mubr.f32.mxu0 0.0
  %1456 = vmatmul.mubr.f32.gmra.mrb[0].mxu0 %v1389
  %v1457 = vpop.f32.mrb[0].mxu0
  %v1458 = vadd.f32 0.0, %v1457
  %v1459 = vpop.f32.mrb[0].mxu0
  %1460 = vdwg.mxu0
  %v1462 = vsel %vm1387, %v1377, 0
  %1464 = vmatprep.subr.mxu0 0.0
  %1465 = vmatpush1.msra.mxu0 %v1378
  %1466 = vmatprep.subr.mxu0 0.0
  %1467 = vmatpush1.msra.mxu0 %v1379
  %1468 = vmatprep.subr.mxu0 0.0
  %1469 = vmatpush1.msra.mxu0 %v1380
  %1470 = vmatprep.subr.mxu0 0.0
  %1471 = vmatpush1.msra.mxu0 %v1381
  %1472 = vmatprep.subr.mxu0 0.0
  %1473 = vmatpush1.msra.mxu0 0.0
  %1474 = vmatprep.subr.mxu0 0.0
  %1475 = vmatpush1.msra.mxu0 0.0
  %1476 = vmatprep.subr.mxu0 0.0
  %1477 = vmatpush1.msra.mxu0 0.0
  %1478 = vmatprep.subr.mxu0 0.0
  %1479 = vmatpush1.msra.mxu0 0.0
  %1480 = vmatprep.subr.mxu0 0.0
  %1481 = vmatpush1.msra.mxu0 0.0
  %1482 = vmatprep.subr.mxu0 0.0
  %1483 = vmatpush1.msra.mxu0 0.0
  %1484 = vmatprep.subr.mxu0 0.0
  %1485 = vmatpush1.msra.mxu0 0.0
  %1486 = vmatprep.subr.mxu0 0.0
  %1487 = vmatpush1.msra.mxu0 0.0
  %1488 = vmatprep.subr.mxu0 0.0
  %1489 = vmatpush1.msra.mxu0 0.0
  %1490 = vmatprep.subr.mxu0 0.0
  %1491 = vmatpush1.msra.mxu0 0.0
  %1492 = vmatprep.subr.mxu0 0.0
  %1493 = vmatpush1.msra.mxu0 0.0
  %1494 = vmatprep.subr.mxu0 0.0
  %1495 = vmatpush1.msra.mxu0 0.0
  %1496 = vmatprep.subr.mxu0 0.0
  %1497 = vmatpush1.msra.mxu0 0.0
  %1498 = vmatprep.subr.mxu0 0.0
  %1499 = vmatpush1.msra.mxu0 0.0
  %1500 = vmatprep.subr.mxu0 0.0
  %1501 = vmatpush1.msra.mxu0 0.0
  %1502 = vmatprep.subr.mxu0 0.0
  %1503 = vmatpush1.msra.mxu0 0.0
  %1504 = vmatprep.subr.mxu0 0.0
  %1505 = vmatpush1.msra.mxu0 0.0
  %1506 = vmatprep.subr.mxu0 0.0
  %1507 = vmatpush1.msra.mxu0 0.0
  %1508 = vmatprep.subr.mxu0 0.0
  %1509 = vmatpush1.msra.mxu0 0.0
  %1510 = vmatprep.subr.mxu0 0.0
  %1511 = vmatpush1.msra.mxu0 0.0
  %1512 = vmatprep.subr.mxu0 0.0
  %1513 = vmatpush1.msra.mxu0 0.0
  %1514 = vmatprep.subr.mxu0 0.0
  %1515 = vmatpush1.msra.mxu0 0.0
  %1516 = vmatprep.subr.mxu0 0.0
  %1517 = vmatpush1.msra.mxu0 0.0
  %1518 = vmatprep.subr.mxu0 0.0
  %1519 = vmatpush1.msra.mxu0 0.0
  %1520 = vmatprep.subr.mxu0 0.0
  %1521 = vmatpush1.msra.mxu0 0.0
  %1522 = vmatprep.subr.mxu0 0.0
  %1523 = vmatpush1.msra.mxu0 0.0
  %1524 = vmatprep.subr.mxu0 0.0
  %1525 = vmatpush1.msra.mxu0 0.0
  %1526 = vmatprep.subr.mxu0 0.0
  %1527 = vmatpush1.msra.mxu0 0.0
  %1528 = vmatprep.mubr.f32.mxu0 0.0
  %1529 = vmatmul.mubr.f32.gmra.mrb[0].mxu0 %v1462
  %v1530 = vpop.f32.mrb[0].mxu0
  %v1531 = vadd.f32 %v1458, %v1530
  %v1532 = vpop.f32.mrb[0].mxu0
  %1533 = vdwg.mxu0
  %v1534 = vadd.f32 %v1357, %v1358
  %v1535 = vadd.f32 %v1534, %v1359
  %v1536 = vld [vmem:[%s5 + $0x40] sm:$0xff]
  %v1537 = vld [vmem:[%s5 + $0x48] sm:$0xff]
  %v1538 = vld [vmem:[%s5 + $0x50] sm:$0xff]
  %v1539 = vld [vmem:[%s5 + $0x58] sm:$0xff]
  %v1541 = vsel %vm1387, %v1535, 0
  %1543 = vmatprep.subr.mxu0 0.0
  %1544 = vmatpush1.msra.mxu0 %v1536
  %1545 = vmatprep.subr.mxu0 0.0
  %1546 = vmatpush1.msra.mxu0 %v1537
  %1547 = vmatprep.subr.mxu0 0.0
  %1548 = vmatpush1.msra.mxu0 %v1538
  %1549 = vmatprep.subr.mxu0 0.0
  %1550 = vmatpush1.msra.mxu0 %v1539
  %1551 = vmatprep.subr.mxu0 0.0
  %1552 = vmatpush1.msra.mxu0 0.0
  %1553 = vmatprep.subr.mxu0 0.0
  %1554 = vmatpush1.msra.mxu0 0.0
  %1555 = vmatprep.subr.mxu0 0.0
  %1556 = vmatpush1.msra.mxu0 0.0
  %1557 = vmatprep.subr.mxu0 0.0
  %1558 = vmatpush1.msra.mxu0 0.0
  %1559 = vmatprep.subr.mxu0 0.0
  %1560 = vmatpush1.msra.mxu0 0.0
  %1561 = vmatprep.subr.mxu0 0.0
  %1562 = vmatpush1.msra.mxu0 0.0
  %1563 = vmatprep.subr.mxu0 0.0
  %1564 = vmatpush1.msra.mxu0 0.0
  %1565 = vmatprep.subr.mxu0 0.0
  %1566 = vmatpush1.msra.mxu0 0.0
  %1567 = vmatprep.subr.mxu0 0.0
  %1568 = vmatpush1.msra.mxu0 0.0
  %1569 = vmatprep.subr.mxu0 0.0
  %1570 = vmatpush1.msra.mxu0 0.0
  %1571 = vmatprep.subr.mxu0 0.0
  %1572 = vmatpush1.msra.mxu0 0.0
  %1573 = vmatprep.subr.mxu0 0.0
  %1574 = vmatpush1.msra.mxu0 0.0
  %1575 = vmatprep.subr.mxu0 0.0
  %1576 = vmatpush1.msra.mxu0 0.0
  %1577 = vmatprep.subr.mxu0 0.0
  %1578 = vmatpush1.msra.mxu0 0.0
  %1579 = vmatprep.subr.mxu0 0.0
  %1580 = vmatpush1.msra.mxu0 0.0
  %1581 = vmatprep.subr.mxu0 0.0
  %1582 = vmatpush1.msra.mxu0 0.0
  %1583 = vmatprep.subr.mxu0 0.0
  %1584 = vmatpush1.msra.mxu0 0.0
  %1585 = vmatprep.subr.mxu0 0.0
  %1586 = vmatpush1.msra.mxu0 0.0
  %1587 = vmatprep.subr.mxu0 0.0
  %1588 = vmatpush1.msra.mxu0 0.0
  %1589 = vmatprep.subr.mxu0 0.0
  %1590 = vmatpush1.msra.mxu0 0.0
  %1591 = vmatprep.subr.mxu0 0.0
  %1592 = vmatpush1.msra.mxu0 0.0
  %1593 = vmatprep.subr.mxu0 0.0
  %1594 = vmatpush1.msra.mxu0 0.0
  %1595 = vmatprep.subr.mxu0 0.0
  %1596 = vmatpush1.msra.mxu0 0.0
  %1597 = vmatprep.subr.mxu0 0.0
  %1598 = vmatpush1.msra.mxu0 0.0
  %1599 = vmatprep.subr.mxu0 0.0
  %1600 = vmatpush1.msra.mxu0 0.0
  %1601 = vmatprep.subr.mxu0 0.0
  %1602 = vmatpush1.msra.mxu0 0.0
  %1603 = vmatprep.subr.mxu0 0.0
  %1604 = vmatpush1.msra.mxu0 0.0
  %1605 = vmatprep.subr.mxu0 0.0
  %1606 = vmatpush1.msra.mxu0 0.0
  %1607 = vmatprep.mubr.f32.mxu0 0.0
  %1608 = vmatmul.mubr.f32.gmra.mrb[0].mxu0 %v1541
  %v1609 = vpop.f32.mrb[0].mxu0
  %v1610 = vadd.f32 0.0, %v1609
  %v1611 = vpop.f32.mrb[0].mxu0
  %1612 = vdwg.mxu0
  %v1613 = vadd.f32 %v1531, %v1610
  %v1614 = vadd.f32 %v1359, %v1360
  %v1615 = vld [vmem:[%s5 + $0x60] sm:$0xff]
  %v1616 = vld [vmem:[%s5 + $0x68] sm:$0xff]
  %v1617 = vld [vmem:[%s5 + $0x70] sm:$0xff]
  %v1618 = vld [vmem:[%s5 + $0x78] sm:$0xff]
  %v1620 = vsel %vm1387, %v1614, 0
  %1622 = vmatprep.subr.mxu0 0.0
  %1623 = vmatpush1.msra.mxu0 %v1615
  %1624 = vmatprep.subr.mxu0 0.0
  %1625 = vmatpush1.msra.mxu0 %v1616
  %1626 = vmatprep.subr.mxu0 0.0
  %1627 = vmatpush1.msra.mxu0 %v1617
  %1628 = vmatprep.subr.mxu0 0.0
  %1629 = vmatpush1.msra.mxu0 %v1618
  %1630 = vmatprep.subr.mxu0 0.0
  %1631 = vmatpush1.msra.mxu0 0.0
  %1632 = vmatprep.subr.mxu0 0.0
  %1633 = vmatpush1.msra.mxu0 0.0
  %1634 = vmatprep.subr.mxu0 0.0
  %1635 = vmatpush1.msra.mxu0 0.0
  %1636 = vmatprep.subr.mxu0 0.0
  %1637 = vmatpush1.msra.mxu0 0.0
  %1638 = vmatprep.subr.mxu0 0.0
  %1639 = vmatpush1.msra.mxu0 0.0
  %1640 = vmatprep.subr.mxu0 0.0
  %1641 = vmatpush1.msra.mxu0 0.0
  %1642 = vmatprep.subr.mxu0 0.0
  %1643 = vmatpush1.msra.mxu0 0.0
  %1644 = vmatprep.subr.mxu0 0.0
  %1645 = vmatpush1.msra.mxu0 0.0
  %1646 = vmatprep.subr.mxu0 0.0
  %1647 = vmatpush1.msra.mxu0 0.0
  %1648 = vmatprep.subr.mxu0 0.0
  %1649 = vmatpush1.msra.mxu0 0.0
  %1650 = vmatprep.subr.mxu0 0.0
  %1651 = vmatpush1.msra.mxu0 0.0
  %1652 = vmatprep.subr.mxu0 0.0
  %1653 = vmatpush1.msra.mxu0 0.0
  %1654 = vmatprep.subr.mxu0 0.0
  %1655 = vmatpush1.msra.mxu0 0.0
  %1656 = vmatprep.subr.mxu0 0.0
  %1657 = vmatpush1.msra.mxu0 0.0
  %1658 = vmatprep.subr.mxu0 0.0
  %1659 = vmatpush1.msra.mxu0 0.0
  %1660 = vmatprep.subr.mxu0 0.0
  %1661 = vmatpush1.msra.mxu0 0.0
  %1662 = vmatprep.subr.mxu0 0.0
  %1663 = vmatpush1.msra.mxu0 0.0
  %1664 = vmatprep.subr.mxu0 0.0
  %1665 = vmatpush1.msra.mxu0 0.0
  %1666 = vmatprep.subr.mxu0 0.0
  %1667 = vmatpush1.msra.mxu0 0.0
  %1668 = vmatprep.subr.mxu0 0.0
  %1669 = vmatpush1.msra.mxu0 0.0
  %1670 = vmatprep.subr.mxu0 0.0
  %1671 = vmatpush1.msra.mxu0 0.0
  %1672 = vmatprep.subr.mxu0 0.0
  %1673 = vmatpush1.msra.mxu0 0.0
  %1674 = vmatprep.subr.mxu0 0.0
  %1675 = vmatpush1.msra.mxu0 0.0
  %1676 = vmatprep.subr.mxu0 0.0
  %1677 = vmatpush1.msra.mxu0 0.0
  %1678 = vmatprep.subr.mxu0 0.0
  %1679 = vmatpush1.msra.mxu0 0.0
  %1680 = vmatprep.subr.mxu0 0.0
  %1681 = vmatpush1.msra.mxu0 0.0
  %1682 = vmatprep.subr.mxu0 0.0
  %1683 = vmatpush1.msra.mxu0 0.0
  %1684 = vmatprep.subr.mxu0 0.0
  %1685 = vmatpush1.msra.mxu0 0.0
  %1686 = vmatprep.mubr.f32.mxu0 0.0
  %1687 = vmatmul.mubr.f32.gmra.mrb[0].mxu0 %v1620
  %v1688 = vpop.f32.mrb[0].mxu0
  %v1689 = vadd.f32 0.0, %v1688
  %v1690 = vpop.f32.mrb[0].mxu0
  %1691 = vdwg.mxu0
  %v1692 = vadd.f32 %v1613, %v1689
  %v1693 = vadd.f32 %v1360, %v1361
  %v1694 = vld [vmem:[%s5 + $0x80] sm:$0xff]
  %v1695 = vld [vmem:[%s5 + $0x88] sm:$0xff]
  %v1696 = vld [vmem:[%s5 + $0x90] sm:$0xff]
  %v1697 = vld [vmem:[%s5 + $0x98] sm:$0xff]
  %v1699 = vsel %vm1387, %v1693, 0
  %1701 = vmatprep.subr.mxu0 0.0
  %1702 = vmatpush1.msra.mxu0 %v1694
  %1703 = vmatprep.subr.mxu0 0.0
  %1704 = vmatpush1.msra.mxu0 %v1695
  %1705 = vmatprep.subr.mxu0 0.0
  %1706 = vmatpush1.msra.mxu0 %v1696
  %1707 = vmatprep.subr.mxu0 0.0
  %1708 = vmatpush1.msra.mxu0 %v1697
  %1709 = vmatprep.subr.mxu0 0.0
  %1710 = vmatpush1.msra.mxu0 0.0
  %1711 = vmatprep.subr.mxu0 0.0
  %1712 = vmatpush1.msra.mxu0 0.0
  %1713 = vmatprep.subr.mxu0 0.0
  %1714 = vmatpush1.msra.mxu0 0.0
  %1715 = vmatprep.subr.mxu0 0.0
  %1716 = vmatpush1.msra.mxu0 0.0
  %1717 = vmatprep.subr.mxu0 0.0
  %1718 = vmatpush1.msra.mxu0 0.0
  %1719 = vmatprep.subr.mxu0 0.0
  %1720 = vmatpush1.msra.mxu0 0.0
  %1721 = vmatprep.subr.mxu0 0.0
  %1722 = vmatpush1.msra.mxu0 0.0
  %1723 = vmatprep.subr.mxu0 0.0
  %1724 = vmatpush1.msra.mxu0 0.0
  %1725 = vmatprep.subr.mxu0 0.0
  %1726 = vmatpush1.msra.mxu0 0.0
  %1727 = vmatprep.subr.mxu0 0.0
  %1728 = vmatpush1.msra.mxu0 0.0
  %1729 = vmatprep.subr.mxu0 0.0
  %1730 = vmatpush1.msra.mxu0 0.0
  %1731 = vmatprep.subr.mxu0 0.0
  %1732 = vmatpush1.msra.mxu0 0.0
  %1733 = vmatprep.subr.mxu0 0.0
  %1734 = vmatpush1.msra.mxu0 0.0
  %1735 = vmatprep.subr.mxu0 0.0
  %1736 = vmatpush1.msra.mxu0 0.0
  %1737 = vmatprep.subr.mxu0 0.0
  %1738 = vmatpush1.msra.mxu0 0.0
  %1739 = vmatprep.subr.mxu0 0.0
  %1740 = vmatpush1.msra.mxu0 0.0
  %1741 = vmatprep.subr.mxu0 0.0
  %1742 = vmatpush1.msra.mxu0 0.0
  %1743 = vmatprep.subr.mxu0 0.0
  %1744 = vmatpush1.msra.mxu0 0.0
  %1745 = vmatprep.subr.mxu0 0.0
  %1746 = vmatpush1.msra.mxu0 0.0
  %1747 = vmatprep.subr.mxu0 0.0
  %1748 = vmatpush1.msra.mxu0 0.0
  %1749 = vmatprep.subr.mxu0 0.0
  %1750 = vmatpush1.msra.mxu0 0.0
  %1751 = vmatprep.subr.mxu0 0.0
  %1752 = vmatpush1.msra.mxu0 0.0
  %1753 = vmatprep.subr.mxu0 0.0
  %1754 = vmatpush1.msra.mxu0 0.0
  %1755 = vmatprep.subr.mxu0 0.0
  %1756 = vmatpush1.msra.mxu0 0.0
  %1757 = vmatprep.subr.mxu0 0.0
  %1758 = vmatpush1.msra.mxu0 0.0
  %1759 = vmatprep.subr.mxu0 0.0
  %1760 = vmatpush1.msra.mxu0 0.0
  %1761 = vmatprep.subr.mxu0 0.0
  %1762 = vmatpush1.msra.mxu0 0.0
  %1763 = vmatprep.subr.mxu0 0.0
  %1764 = vmatpush1.msra.mxu0 0.0
  %1765 = vmatprep.mubr.f32.mxu0 0.0
  %1766 = vmatmul.mubr.f32.gmra.mrb[0].mxu0 %v1699
  %v1767 = vpop.f32.mrb[0].mxu0
  %v1768 = vadd.f32 0.0, %v1767
  %v1769 = vpop.f32.mrb[0].mxu0
  %1770 = vdwg.mxu0
  %v1771 = vadd.f32 %v1692, %v1768
  %v1772 = vadd.f32 %v1361, %v1362
  %v1773 = vadd.f32 %v1772, %v1363
  %v1774 = vld [vmem:[%s5 + $0xa0] sm:$0xff]
  %v1775 = vld [vmem:[%s5 + $0xa8] sm:$0xff]
  %v1776 = vld [vmem:[%s5 + $0xb0] sm:$0xff]
  %v1777 = vld [vmem:[%s5 + $0xb8] sm:$0xff]
  %v1779 = vsel %vm1387, %v1773, 0
  %1781 = vmatprep.subr.mxu0 0.0
  %1782 = vmatpush1.msra.mxu0 %v1774
  %1783 = vmatprep.subr.mxu0 0.0
  %1784 = vmatpush1.msra.mxu0 %v1775
  %1785 = vmatprep.subr.mxu0 0.0
  %1786 = vmatpush1.msra.mxu0 %v1776
  %1787 = vmatprep.subr.mxu0 0.0
  %1788 = vmatpush1.msra.mxu0 %v1777
  %1789 = vmatprep.subr.mxu0 0.0
  %1790 = vmatpush1.msra.mxu0 0.0
  %1791 = vmatprep.subr.mxu0 0.0
  %1792 = vmatpush1.msra.mxu0 0.0
  %1793 = vmatprep.subr.mxu0 0.0
  %1794 = vmatpush1.msra.mxu0 0.0
  %1795 = vmatprep.subr.mxu0 0.0
  %1796 = vmatpush1.msra.mxu0 0.0
  %1797 = vmatprep.subr.mxu0 0.0
  %1798 = vmatpush1.msra.mxu0 0.0
  %1799 = vmatprep.subr.mxu0 0.0
  %1800 = vmatpush1.msra.mxu0 0.0
  %1801 = vmatprep.subr.mxu0 0.0
  %1802 = vmatpush1.msra.mxu0 0.0
  %1803 = vmatprep.subr.mxu0 0.0
  %1804 = vmatpush1.msra.mxu0 0.0
  %1805 = vmatprep.subr.mxu0 0.0
  %1806 = vmatpush1.msra.mxu0 0.0
  %1807 = vmatprep.subr.mxu0 0.0
  %1808 = vmatpush1.msra.mxu0 0.0
  %1809 = vmatprep.subr.mxu0 0.0
  %1810 = vmatpush1.msra.mxu0 0.0
  %1811 = vmatprep.subr.mxu0 0.0
  %1812 = vmatpush1.msra.mxu0 0.0
  %1813 = vmatprep.subr.mxu0 0.0
  %1814 = vmatpush1.msra.mxu0 0.0
  %1815 = vmatprep.subr.mxu0 0.0
  %1816 = vmatpush1.msra.mxu0 0.0
  %1817 = vmatprep.subr.mxu0 0.0
  %1818 = vmatpush1.msra.mxu0 0.0
  %1819 = vmatprep.subr.mxu0 0.0
  %1820 = vmatpush1.msra.mxu0 0.0
  %1821 = vmatprep.subr.mxu0 0.0
  %1822 = vmatpush1.msra.mxu0 0.0
  %1823 = vmatprep.subr.mxu0 0.0
  %1824 = vmatpush1.msra.mxu0 0.0
  %1825 = vmatprep.subr.mxu0 0.0
  %1826 = vmatpush1.msra.mxu0 0.0
  %1827 = vmatprep.subr.mxu0 0.0
  %1828 = vmatpush1.msra.mxu0 0.0
  %1829 = vmatprep.subr.mxu0 0.0
  %1830 = vmatpush1.msra.mxu0 0.0
  %1831 = vmatprep.subr.mxu0 0.0
  %1832 = vmatpush1.msra.mxu0 0.0
  %1833 = vmatprep.subr.mxu0 0.0
  %1834 = vmatpush1.msra.mxu0 0.0
  %1835 = vmatprep.subr.mxu0 0.0
  %1836 = vmatpush1.msra.mxu0 0.0
  %1837 = vmatprep.subr.mxu0 0.0
  %1838 = vmatpush1.msra.mxu0 0.0
  %1839 = vmatprep.subr.mxu0 0.0
  %1840 = vmatpush1.msra.mxu0 0.0
  %1841 = vmatprep.subr.mxu0 0.0
  %1842 = vmatpush1.msra.mxu0 0.0
  %1843 = vmatprep.subr.mxu0 0.0
  %1844 = vmatpush1.msra.mxu0 0.0
  %1845 = vmatprep.mubr.f32.mxu0 0.0
  %1846 = vmatmul.mubr.f32.gmra.mrb[0].mxu0 %v1779
  %v1847 = vpop.f32.mrb[0].mxu0
  %v1848 = vadd.f32 0.0, %v1847
  %v1849 = vpop.f32.mrb[0].mxu0
  %1850 = vdwg.mxu0
  %v1851 = vadd.f32 %v1771, %v1848
  %v1852 = vadd.f32 %v1363, %v1364
  %v1853 = vld [vmem:[%s5 + $0xc0] sm:$0xff]
  %v1854 = vld [vmem:[%s5 + $0xc8] sm:$0xff]
  %v1855 = vld [vmem:[%s5 + $0xd0] sm:$0xff]
  %v1856 = vld [vmem:[%s5 + $0xd8] sm:$0xff]
  %v1858 = vsel %vm1387, %v1852, 0
  %1860 = vmatprep.subr.mxu0 0.0
  %1861 = vmatpush1.msra.mxu0 %v1853
  %1862 = vmatprep.subr.mxu0 0.0
  %1863 = vmatpush1.msra.mxu0 %v1854
  %1864 = vmatprep.subr.mxu0 0.0
  %1865 = vmatpush1.msra.mxu0 %v1855
  %1866 = vmatprep.subr.mxu0 0.0
  %1867 = vmatpush1.msra.mxu0 %v1856
  %1868 = vmatprep.subr.mxu0 0.0
  %1869 = vmatpush1.msra.mxu0 0.0
  %1870 = vmatprep.subr.mxu0 0.0
  %1871 = vmatpush1.msra.mxu0 0.0
  %1872 = vmatprep.subr.mxu0 0.0
  %1873 = vmatpush1.msra.mxu0 0.0
  %1874 = vmatprep.subr.mxu0 0.0
  %1875 = vmatpush1.msra.mxu0 0.0
  %1876 = vmatprep.subr.mxu0 0.0
  %1877 = vmatpush1.msra.mxu0 0.0
  %1878 = vmatprep.subr.mxu0 0.0
  %1879 = vmatpush1.msra.mxu0 0.0
  %1880 = vmatprep.subr.mxu0 0.0
  %1881 = vmatpush1.msra.mxu0 0.0
  %1882 = vmatprep.subr.mxu0 0.0
  %1883 = vmatpush1.msra.mxu0 0.0
  %1884 = vmatprep.subr.mxu0 0.0
  %1885 = vmatpush1.msra.mxu0 0.0
  %1886 = vmatprep.subr.mxu0 0.0
  %1887 = vmatpush1.msra.mxu0 0.0
  %1888 = vmatprep.subr.mxu0 0.0
  %1889 = vmatpush1.msra.mxu0 0.0
  %1890 = vmatprep.subr.mxu0 0.0
  %1891 = vmatpush1.msra.mxu0 0.0
  %1892 = vmatprep.subr.mxu0 0.0
  %1893 = vmatpush1.msra.mxu0 0.0
  %1894 = vmatprep.subr.mxu0 0.0
  %1895 = vmatpush1.msra.mxu0 0.0
  %1896 = vmatprep.subr.mxu0 0.0
  %1897 = vmatpush1.msra.mxu0 0.0
  %1898 = vmatprep.subr.mxu0 0.0
  %1899 = vmatpush1.msra.mxu0 0.0
  %1900 = vmatprep.subr.mxu0 0.0
  %1901 = vmatpush1.msra.mxu0 0.0
  %1902 = vmatprep.subr.mxu0 0.0
  %1903 = vmatpush1.msra.mxu0 0.0
  %1904 = vmatprep.subr.mxu0 0.0
  %1905 = vmatpush1.msra.mxu0 0.0
  %1906 = vmatprep.subr.mxu0 0.0
  %1907 = vmatpush1.msra.mxu0 0.0
  %1908 = vmatprep.subr.mxu0 0.0
  %1909 = vmatpush1.msra.mxu0 0.0
  %1910 = vmatprep.subr.mxu0 0.0
  %1911 = vmatpush1.msra.mxu0 0.0
  %1912 = vmatprep.subr.mxu0 0.0
  %1913 = vmatpush1.msra.mxu0 0.0
  %1914 = vmatprep.subr.mxu0 0.0
  %1915 = vmatpush1.msra.mxu0 0.0
  %1916 = vmatprep.subr.mxu0 0.0
  %1917 = vmatpush1.msra.mxu0 0.0
  %1918 = vmatprep.subr.mxu0 0.0
  %1919 = vmatpush1.msra.mxu0 0.0
  %1920 = vmatprep.subr.mxu0 0.0
  %1921 = vmatpush1.msra.mxu0 0.0
  %1922 = vmatprep.subr.mxu0 0.0
  %1923 = vmatpush1.msra.mxu0 0.0
  %1924 = vmatprep.mubr.f32.mxu0 0.0
  %1925 = vmatmul.mubr.f32.gmra.mrb[0].mxu0 %v1858
  %v1926 = vpop.f32.mrb[0].mxu0
  %v1927 = vadd.f32 0.0, %v1926
  %v1928 = vpop.f32.mrb[0].mxu0
  %1929 = vdwg.mxu0
  %v1930 = vadd.f32 %v1851, %v1927
  %v1931 = vadd.f32 %v1364, %v1365
  %v1932 = vld [vmem:[%s5 + $0xe0] sm:$0xff]
  %v1933 = vld [vmem:[%s5 + $0xe8] sm:$0xff]
  %v1934 = vld [vmem:[%s5 + $0xf0] sm:$0xff]
  %v1935 = vld [vmem:[%s5 + $0xf8] sm:$0xff]
  %v1937 = vsel %vm1387, %v1931, 0
  %1939 = vmatprep.subr.mxu0 0.0
  %1940 = vmatpush1.msra.mxu0 %v1932
  %1941 = vmatprep.subr.mxu0 0.0
  %1942 = vmatpush1.msra.mxu0 %v1933
  %1943 = vmatprep.subr.mxu0 0.0
  %1944 = vmatpush1.msra.mxu0 %v1934
  %1945 = vmatprep.subr.mxu0 0.0
  %1946 = vmatpush1.msra.mxu0 %v1935
  %1947 = vmatprep.subr.mxu0 0.0
  %1948 = vmatpush1.msra.mxu0 0.0
  %1949 = vmatprep.subr.mxu0 0.0
  %1950 = vmatpush1.msra.mxu0 0.0
  %1951 = vmatprep.subr.mxu0 0.0
  %1952 = vmatpush1.msra.mxu0 0.0
  %1953 = vmatprep.subr.mxu0 0.0
  %1954 = vmatpush1.msra.mxu0 0.0
  %1955 = vmatprep.subr.mxu0 0.0
  %1956 = vmatpush1.msra.mxu0 0.0
  %1957 = vmatprep.subr.mxu0 0.0
  %1958 = vmatpush1.msra.mxu0 0.0
  %1959 = vmatprep.subr.mxu0 0.0
  %1960 = vmatpush1.msra.mxu0 0.0
  %1961 = vmatprep.subr.mxu0 0.0
  %1962 = vmatpush1.msra.mxu0 0.0
  %1963 = vmatprep.subr.mxu0 0.0
  %1964 = vmatpush1.msra.mxu0 0.0
  %1965 = vmatprep.subr.mxu0 0.0
  %1966 = vmatpush1.msra.mxu0 0.0
  %1967 = vmatprep.subr.mxu0 0.0
  %1968 = vmatpush1.msra.mxu0 0.0
  %1969 = vmatprep.subr.mxu0 0.0
  %1970 = vmatpush1.msra.mxu0 0.0
  %1971 = vmatprep.subr.mxu0 0.0
  %1972 = vmatpush1.msra.mxu0 0.0
  %1973 = vmatprep.subr.mxu0 0.0
  %1974 = vmatpush1.msra.mxu0 0.0
  %1975 = vmatprep.subr.mxu0 0.0
  %1976 = vmatpush1.msra.mxu0 0.0
  %1977 = vmatprep.subr.mxu0 0.0
  %1978 = vmatpush1.msra.mxu0 0.0
  %1979 = vmatprep.subr.mxu0 0.0
  %1980 = vmatpush1.msra.mxu0 0.0
  %1981 = vmatprep.subr.mxu0 0.0
  %1982 = vmatpush1.msra.mxu0 0.0
  %1983 = vmatprep.subr.mxu0 0.0
  %1984 = vmatpush1.msra.mxu0 0.0
  %1985 = vmatprep.subr.mxu0 0.0
  %1986 = vmatpush1.msra.mxu0 0.0
  %1987 = vmatprep.subr.mxu0 0.0
  %1988 = vmatpush1.msra.mxu0 0.0
  %1989 = vmatprep.subr.mxu0 0.0
  %1990 = vmatpush1.msra.mxu0 0.0
  %1991 = vmatprep.subr.mxu0 0.0
  %1992 = vmatpush1.msra.mxu0 0.0
  %1993 = vmatprep.subr.mxu0 0.0
  %1994 = vmatpush1.msra.mxu0 0.0
  %1995 = vmatprep.subr.mxu0 0.0
  %1996 = vmatpush1.msra.mxu0 0.0
  %1997 = vmatprep.subr.mxu0 0.0
  %1998 = vmatpush1.msra.mxu0 0.0
  %1999 = vmatprep.subr.mxu0 0.0
  %2000 = vmatpush1.msra.mxu0 0.0
  %2001 = vmatprep.subr.mxu0 0.0
  %2002 = vmatpush1.msra.mxu0 0.0
  %2003 = vmatprep.mubr.f32.mxu0 0.0
  %2004 = vmatmul.mubr.f32.gmra.mrb[0].mxu0 %v1937
  %v2005 = vpop.f32.mrb[0].mxu0
  %v2006 = vadd.f32 0.0, %v2005
  %v2007 = vpop.f32.mrb[0].mxu0
  %2008 = vdwg.mxu0
  %v2009 = vadd.f32 %v1930, %v2006
  %v2010 = vadd.f32 %v1366, %v1367
  %v2011 = vld [vmem:[%s5 + $0x100] sm:$0xff]
  %v2012 = vld [vmem:[%s5 + $0x108] sm:$0xff]
  %v2013 = vld [vmem:[%s5 + $0x110] sm:$0xff]
  %v2014 = vld [vmem:[%s5 + $0x118] sm:$0xff]
  %v2016 = vsel %vm1387, %v2010, 0
  %2018 = vmatprep.subr.mxu0 0.0
  %2019 = vmatpush1.msra.mxu0 %v2011
  %2020 = vmatprep.subr.mxu0 0.0
  %2021 = vmatpush1.msra.mxu0 %v2012
  %2022 = vmatprep.subr.mxu0 0.0
  %2023 = vmatpush1.msra.mxu0 %v2013
  %2024 = vmatprep.subr.mxu0 0.0
  %2025 = vmatpush1.msra.mxu0 %v2014
  %2026 = vmatprep.subr.mxu0 0.0
  %2027 = vmatpush1.msra.mxu0 0.0
  %2028 = vmatprep.subr.mxu0 0.0
  %2029 = vmatpush1.msra.mxu0 0.0
  %2030 = vmatprep.subr.mxu0 0.0
  %2031 = vmatpush1.msra.mxu0 0.0
  %2032 = vmatprep.subr.mxu0 0.0
  %2033 = vmatpush1.msra.mxu0 0.0
  %2034 = vmatprep.subr.mxu0 0.0
  %2035 = vmatpush1.msra.mxu0 0.0
  %2036 = vmatprep.subr.mxu0 0.0
  %2037 = vmatpush1.msra.mxu0 0.0
  %2038 = vmatprep.subr.mxu0 0.0
  %2039 = vmatpush1.msra.mxu0 0.0
  %2040 = vmatprep.subr.mxu0 0.0
  %2041 = vmatpush1.msra.mxu0 0.0
  %2042 = vmatprep.subr.mxu0 0.0
  %2043 = vmatpush1.msra.mxu0 0.0
  %2044 = vmatprep.subr.mxu0 0.0
  %2045 = vmatpush1.msra.mxu0 0.0
  %2046 = vmatprep.subr.mxu0 0.0
  %2047 = vmatpush1.msra.mxu0 0.0
  %2048 = vmatprep.subr.mxu0 0.0
  %2049 = vmatpush1.msra.mxu0 0.0
  %2050 = vmatprep.subr.mxu0 0.0
  %2051 = vmatpush1.msra.mxu0 0.0
  %2052 = vmatprep.subr.mxu0 0.0
  %2053 = vmatpush1.msra.mxu0 0.0
  %2054 = vmatprep.subr.mxu0 0.0
  %2055 = vmatpush1.msra.mxu0 0.0
  %2056 = vmatprep.subr.mxu0 0.0
  %2057 = vmatpush1.msra.mxu0 0.0
  %2058 = vmatprep.subr.mxu0 0.0
  %2059 = vmatpush1.msra.mxu0 0.0
  %2060 = vmatprep.subr.mxu0 0.0
  %2061 = vmatpush1.msra.mxu0 0.0
  %2062 = vmatprep.subr.mxu0 0.0
  %2063 = vmatpush1.msra.mxu0 0.0
  %2064 = vmatprep.subr.mxu0 0.0
  %2065 = vmatpush1.msra.mxu0 0.0
  %2066 = vmatprep.subr.mxu0 0.0
  %2067 = vmatpush1.msra.mxu0 0.0
  %2068 = vmatprep.subr.mxu0 0.0
  %2069 = vmatpush1.msra.mxu0 0.0
  %2070 = vmatprep.subr.mxu0 0.0
  %2071 = vmatpush1.msra.mxu0 0.0
  %2072 = vmatprep.subr.mxu0 0.0
  %2073 = vmatpush1.msra.mxu0 0.0
  %2074 = vmatprep.subr.mxu0 0.0
  %2075 = vmatpush1.msra.mxu0 0.0
  %2076 = vmatprep.subr.mxu0 0.0
  %2077 = vmatpush1.msra.mxu0 0.0
  %2078 = vmatprep.subr.mxu0 0.0
  %2079 = vmatpush1.msra.mxu0 0.0
  %2080 = vmatprep.subr.mxu0 0.0
  %2081 = vmatpush1.msra.mxu0 0.0
  %2082 = vmatprep.mubr.f32.mxu0 0.0
  %2083 = vmatmul.mubr.f32.gmra.mrb[0].mxu0 %v2016
  %v2084 = vpop.f32.mrb[0].mxu0
  %v2085 = vadd.f32 0.0, %v2084
  %v2086 = vpop.f32.mrb[0].mxu0
  %2087 = vdwg.mxu0
  %v2088 = vadd.f32 %v2009, %v2085
  %v2089 = vadd.f32 %v1367, %v1368
  %v2090 = vld [vmem:[%s5 + $0x120] sm:$0xff]
  %v2091 = vld [vmem:[%s5 + $0x128] sm:$0xff]
  %v2092 = vld [vmem:[%s5 + $0x130] sm:$0xff]
  %v2093 = vld [vmem:[%s5 + $0x138] sm:$0xff]
  %v2095 = vsel %vm1387, %v2089, 0
  %2097 = vmatprep.subr.mxu0 0.0
  %2098 = vmatpush1.msra.mxu0 %v2090
  %2099 = vmatprep.subr.mxu0 0.0
  %2100 = vmatpush1.msra.mxu0 %v2091
  %2101 = vmatprep.subr.mxu0 0.0
  %2102 = vmatpush1.msra.mxu0 %v2092
  %2103 = vmatprep.subr.mxu0 0.0
  %2104 = vmatpush1.msra.mxu0 %v2093
  %2105 = vmatprep.subr.mxu0 0.0
  %2106 = vmatpush1.msra.mxu0 0.0
  %2107 = vmatprep.subr.mxu0 0.0
  %2108 = vmatpush1.msra.mxu0 0.0
  %2109 = vmatprep.subr.mxu0 0.0
  %2110 = vmatpush1.msra.mxu0 0.0
  %2111 = vmatprep.subr.mxu0 0.0
  %2112 = vmatpush1.msra.mxu0 0.0
  %2113 = vmatprep.subr.mxu0 0.0
  %2114 = vmatpush1.msra.mxu0 0.0
  %2115 = vmatprep.subr.mxu0 0.0
  %2116 = vmatpush1.msra.mxu0 0.0
  %2117 = vmatprep.subr.mxu0 0.0
  %2118 = vmatpush1.msra.mxu0 0.0
  %2119 = vmatprep.subr.mxu0 0.0
  %2120 = vmatpush1.msra.mxu0 0.0
  %2121 = vmatprep.subr.mxu0 0.0
  %2122 = vmatpush1.msra.mxu0 0.0
  %2123 = vmatprep.subr.mxu0 0.0
  %2124 = vmatpush1.msra.mxu0 0.0
  %2125 = vmatprep.subr.mxu0 0.0
  %2126 = vmatpush1.msra.mxu0 0.0
  %2127 = vmatprep.subr.mxu0 0.0
  %2128 = vmatpush1.msra.mxu0 0.0
  %2129 = vmatprep.subr.mxu0 0.0
  %2130 = vmatpush1.msra.mxu0 0.0
  %2131 = vmatprep.subr.mxu0 0.0
  %2132 = vmatpush1.msra.mxu0 0.0
  %2133 = vmatprep.subr.mxu0 0.0
  %2134 = vmatpush1.msra.mxu0 0.0
  %2135 = vmatprep.subr.mxu0 0.0
  %2136 = vmatpush1.msra.mxu0 0.0
  %2137 = vmatprep.subr.mxu0 0.0
  %2138 = vmatpush1.msra.mxu0 0.0
  %2139 = vmatprep.subr.mxu0 0.0
  %2140 = vmatpush1.msra.mxu0 0.0
  %2141 = vmatprep.subr.mxu0 0.0
  %2142 = vmatpush1.msra.mxu0 0.0
  %2143 = vmatprep.subr.mxu0 0.0
  %2144 = vmatpush1.msra.mxu0 0.0
  %2145 = vmatprep.subr.mxu0 0.0
  %2146 = vmatpush1.msra.mxu0 0.0
  %2147 = vmatprep.subr.mxu0 0.0
  %2148 = vmatpush1.msra.mxu0 0.0
  %2149 = vmatprep.subr.mxu0 0.0
  %2150 = vmatpush1.msra.mxu0 0.0
  %2151 = vmatprep.subr.mxu0 0.0
  %2152 = vmatpush1.msra.mxu0 0.0
  %2153 = vmatprep.subr.mxu0 0.0
  %2154 = vmatpush1.msra.mxu0 0.0
  %2155 = vmatprep.subr.mxu0 0.0
  %2156 = vmatpush1.msra.mxu0 0.0
  %2157 = vmatprep.subr.mxu0 0.0
  %2158 = vmatpush1.msra.mxu0 0.0
  %2159 = vmatprep.subr.mxu0 0.0
  %2160 = vmatpush1.msra.mxu0 0.0
  %2161 = vmatprep.mubr.f32.mxu0 0.0
  %2162 = vmatmul.mubr.f32.gmra.mrb[0].mxu0 %v2095
  %v2163 = vpop.f32.mrb[0].mxu0
  %v2164 = vadd.f32 0.0, %v2163
  %v2165 = vpop.f32.mrb[0].mxu0
  %2166 = vdwg.mxu0
  %v2167 = vadd.f32 %v2088, %v2164
  %v2168 = vadd.f32 %v1368, %v1369
  %v2169 = vadd.f32 %v2168, %v1370
  %v2170 = vld [vmem:[%s5 + $0x140] sm:$0xff]
  %v2171 = vld [vmem:[%s5 + $0x148] sm:$0xff]
  %v2172 = vld [vmem:[%s5 + $0x150] sm:$0xff]
  %v2173 = vld [vmem:[%s5 + $0x158] sm:$0xff]
  %v2175 = vsel %vm1387, %v2169, 0
  %2177 = vmatprep.subr.mxu0 0.0
  %2178 = vmatpush1.msra.mxu0 %v2170
  %2179 = vmatprep.subr.mxu0 0.0
  %2180 = vmatpush1.msra.mxu0 %v2171
  %2181 = vmatprep.subr.mxu0 0.0
  %2182 = vmatpush1.msra.mxu0 %v2172
  %2183 = vmatprep.subr.mxu0 0.0
  %2184 = vmatpush1.msra.mxu0 %v2173
  %2185 = vmatprep.subr.mxu0 0.0
  %2186 = vmatpush1.msra.mxu0 0.0
  %2187 = vmatprep.subr.mxu0 0.0
  %2188 = vmatpush1.msra.mxu0 0.0
  %2189 = vmatprep.subr.mxu0 0.0
  %2190 = vmatpush1.msra.mxu0 0.0
  %2191 = vmatprep.subr.mxu0 0.0
  %2192 = vmatpush1.msra.mxu0 0.0
  %2193 = vmatprep.subr.mxu0 0.0
  %2194 = vmatpush1.msra.mxu0 0.0
  %2195 = vmatprep.subr.mxu0 0.0
  %2196 = vmatpush1.msra.mxu0 0.0
  %2197 = vmatprep.subr.mxu0 0.0
  %2198 = vmatpush1.msra.mxu0 0.0
  %2199 = vmatprep.subr.mxu0 0.0
  %2200 = vmatpush1.msra.mxu0 0.0
  %2201 = vmatprep.subr.mxu0 0.0
  %2202 = vmatpush1.msra.mxu0 0.0
  %2203 = vmatprep.subr.mxu0 0.0
  %2204 = vmatpush1.msra.mxu0 0.0
  %2205 = vmatprep.subr.mxu0 0.0
  %2206 = vmatpush1.msra.mxu0 0.0
  %2207 = vmatprep.subr.mxu0 0.0
  %2208 = vmatpush1.msra.mxu0 0.0
  %2209 = vmatprep.subr.mxu0 0.0
  %2210 = vmatpush1.msra.mxu0 0.0
  %2211 = vmatprep.subr.mxu0 0.0
  %2212 = vmatpush1.msra.mxu0 0.0
  %2213 = vmatprep.subr.mxu0 0.0
  %2214 = vmatpush1.msra.mxu0 0.0
  %2215 = vmatprep.subr.mxu0 0.0
  %2216 = vmatpush1.msra.mxu0 0.0
  %2217 = vmatprep.subr.mxu0 0.0
  %2218 = vmatpush1.msra.mxu0 0.0
  %2219 = vmatprep.subr.mxu0 0.0
  %2220 = vmatpush1.msra.mxu0 0.0
  %2221 = vmatprep.subr.mxu0 0.0
  %2222 = vmatpush1.msra.mxu0 0.0
  %2223 = vmatprep.subr.mxu0 0.0
  %2224 = vmatpush1.msra.mxu0 0.0
  %2225 = vmatprep.subr.mxu0 0.0
  %2226 = vmatpush1.msra.mxu0 0.0
  %2227 = vmatprep.subr.mxu0 0.0
  %2228 = vmatpush1.msra.mxu0 0.0
  %2229 = vmatprep.subr.mxu0 0.0
  %2230 = vmatpush1.msra.mxu0 0.0
  %2231 = vmatprep.subr.mxu0 0.0
  %2232 = vmatpush1.msra.mxu0 0.0
  %2233 = vmatprep.subr.mxu0 0.0
  %2234 = vmatpush1.msra.mxu0 0.0
  %2235 = vmatprep.subr.mxu0 0.0
  %2236 = vmatpush1.msra.mxu0 0.0
  %2237 = vmatprep.subr.mxu0 0.0
  %2238 = vmatpush1.msra.mxu0 0.0
  %2239 = vmatprep.subr.mxu0 0.0
  %2240 = vmatpush1.msra.mxu0 0.0
  %2241 = vmatprep.mubr.f32.mxu0 0.0
  %2242 = vmatmul.mubr.f32.gmra.mrb[0].mxu0 %v2175
  %v2243 = vpop.f32.mrb[0].mxu0
  %v2244 = vadd.f32 0.0, %v2243
  %v2245 = vpop.f32.mrb[0].mxu0
  %2246 = vdwg.mxu0
  %v2247 = vadd.f32 %v2167, %v2244
  %v2248 = vadd.f32 %v1370, %v1371
  %v2249 = vld [vmem:[%s5 + $0x160] sm:$0xff]
  %v2250 = vld [vmem:[%s5 + $0x168] sm:$0xff]
  %v2251 = vld [vmem:[%s5 + $0x170] sm:$0xff]
  %v2252 = vld [vmem:[%s5 + $0x178] sm:$0xff]
  %v2254 = vsel %vm1387, %v2248, 0
  %2256 = vmatprep.subr.mxu0 0.0
  %2257 = vmatpush1.msra.mxu0 %v2249
  %2258 = vmatprep.subr.mxu0 0.0
  %2259 = vmatpush1.msra.mxu0 %v2250
  %2260 = vmatprep.subr.mxu0 0.0
  %2261 = vmatpush1.msra.mxu0 %v2251
  %2262 = vmatprep.subr.mxu0 0.0
  %2263 = vmatpush1.msra.mxu0 %v2252
  %2264 = vmatprep.subr.mxu0 0.0
  %2265 = vmatpush1.msra.mxu0 0.0
  %2266 = vmatprep.subr.mxu0 0.0
  %2267 = vmatpush1.msra.mxu0 0.0
  %2268 = vmatprep.subr.mxu0 0.0
  %2269 = vmatpush1.msra.mxu0 0.0
  %2270 = vmatprep.subr.mxu0 0.0
  %2271 = vmatpush1.msra.mxu0 0.0
  %2272 = vmatprep.subr.mxu0 0.0
  %2273 = vmatpush1.msra.mxu0 0.0
  %2274 = vmatprep.subr.mxu0 0.0
  %2275 = vmatpush1.msra.mxu0 0.0
  %2276 = vmatprep.subr.mxu0 0.0
  %2277 = vmatpush1.msra.mxu0 0.0
  %2278 = vmatprep.subr.mxu0 0.0
  %2279 = vmatpush1.msra.mxu0 0.0
  %2280 = vmatprep.subr.mxu0 0.0
  %2281 = vmatpush1.msra.mxu0 0.0
  %2282 = vmatprep.subr.mxu0 0.0
  %2283 = vmatpush1.msra.mxu0 0.0
  %2284 = vmatprep.subr.mxu0 0.0
  %2285 = vmatpush1.msra.mxu0 0.0
  %2286 = vmatprep.subr.mxu0 0.0
  %2287 = vmatpush1.msra.mxu0 0.0
  %2288 = vmatprep.subr.mxu0 0.0
  %2289 = vmatpush1.msra.mxu0 0.0
  %2290 = vmatprep.subr.mxu0 0.0
  %2291 = vmatpush1.msra.mxu0 0.0
  %2292 = vmatprep.subr.mxu0 0.0
  %2293 = vmatpush1.msra.mxu0 0.0
  %2294 = vmatprep.subr.mxu0 0.0
  %2295 = vmatpush1.msra.mxu0 0.0
  %2296 = vmatprep.subr.mxu0 0.0
  %2297 = vmatpush1.msra.mxu0 0.0
  %2298 = vmatprep.subr.mxu0 0.0
  %2299 = vmatpush1.msra.mxu0 0.0
  %2300 = vmatprep.subr.mxu0 0.0
  %2301 = vmatpush1.msra.mxu0 0.0
  %2302 = vmatprep.subr.mxu0 0.0
  %2303 = vmatpush1.msra.mxu0 0.0
  %2304 = vmatprep.subr.mxu0 0.0
  %2305 = vmatpush1.msra.mxu0 0.0
  %2306 = vmatprep.subr.mxu0 0.0
  %2307 = vmatpush1.msra.mxu0 0.0
  %2308 = vmatprep.subr.mxu0 0.0
  %2309 = vmatpush1.msra.mxu0 0.0
  %2310 = vmatprep.subr.mxu0 0.0
  %2311 = vmatpush1.msra.mxu0 0.0
  %2312 = vmatprep.subr.mxu0 0.0
  %2313 = vmatpush1.msra.mxu0 0.0
  %2314 = vmatprep.subr.mxu0 0.0
  %2315 = vmatpush1.msra.mxu0 0.0
  %2316 = vmatprep.subr.mxu0 0.0
  %2317 = vmatpush1.msra.mxu0 0.0
  %2318 = vmatprep.subr.mxu0 0.0
  %2319 = vmatpush1.msra.mxu0 0.0
  %2320 = vmatprep.mubr.f32.mxu0 0.0
  %2321 = vmatmul.mubr.f32.gmra.mrb[0].mxu0 %v2254
  %v2322 = vpop.f32.mrb[0].mxu0
  %v2323 = vadd.f32 0.0, %v2322
  %v2324 = vpop.f32.mrb[0].mxu0
  %2325 = vdwg.mxu0
  %v2326 = vadd.f32 %v2247, %v2323
  %v2327 = vadd.f32 %v1371, %v1372
  %v2328 = vld [vmem:[%s5 + $0x180] sm:$0xff]
  %v2329 = vld [vmem:[%s5 + $0x188] sm:$0xff]
  %v2330 = vld [vmem:[%s5 + $0x190] sm:$0xff]
  %v2331 = vld [vmem:[%s5 + $0x198] sm:$0xff]
  %v2333 = vsel %vm1387, %v2327, 0
  %2335 = vmatprep.subr.mxu0 0.0
  %2336 = vmatpush1.msra.mxu0 %v2328
  %2337 = vmatprep.subr.mxu0 0.0
  %2338 = vmatpush1.msra.mxu0 %v2329
  %2339 = vmatprep.subr.mxu0 0.0
  %2340 = vmatpush1.msra.mxu0 %v2330
  %2341 = vmatprep.subr.mxu0 0.0
  %2342 = vmatpush1.msra.mxu0 %v2331
  %2343 = vmatprep.subr.mxu0 0.0
  %2344 = vmatpush1.msra.mxu0 0.0
  %2345 = vmatprep.subr.mxu0 0.0
  %2346 = vmatpush1.msra.mxu0 0.0
  %2347 = vmatprep.subr.mxu0 0.0
  %2348 = vmatpush1.msra.mxu0 0.0
  %2349 = vmatprep.subr.mxu0 0.0
  %2350 = vmatpush1.msra.mxu0 0.0
  %2351 = vmatprep.subr.mxu0 0.0
  %2352 = vmatpush1.msra.mxu0 0.0
  %2353 = vmatprep.subr.mxu0 0.0
  %2354 = vmatpush1.msra.mxu0 0.0
  %2355 = vmatprep.subr.mxu0 0.0
  %2356 = vmatpush1.msra.mxu0 0.0
  %2357 = vmatprep.subr.mxu0 0.0
  %2358 = vmatpush1.msra.mxu0 0.0
  %2359 = vmatprep.subr.mxu0 0.0
  %2360 = vmatpush1.msra.mxu0 0.0
  %2361 = vmatprep.subr.mxu0 0.0
  %2362 = vmatpush1.msra.mxu0 0.0
  %2363 = vmatprep.subr.mxu0 0.0
  %2364 = vmatpush1.msra.mxu0 0.0
  %2365 = vmatprep.subr.mxu0 0.0
  %2366 = vmatpush1.msra.mxu0 0.0
  %2367 = vmatprep.subr.mxu0 0.0
  %2368 = vmatpush1.msra.mxu0 0.0
  %2369 = vmatprep.subr.mxu0 0.0
  %2370 = vmatpush1.msra.mxu0 0.0
  %2371 = vmatprep.subr.mxu0 0.0
  %2372 = vmatpush1.msra.mxu0 0.0
  %2373 = vmatprep.subr.mxu0 0.0
  %2374 = vmatpush1.msra.mxu0 0.0
  %2375 = vmatprep.subr.mxu0 0.0
  %2376 = vmatpush1.msra.mxu0 0.0
  %2377 = vmatprep.subr.mxu0 0.0
  %2378 = vmatpush1.msra.mxu0 0.0
  %2379 = vmatprep.subr.mxu0 0.0
  %2380 = vmatpush1.msra.mxu0 0.0
  %2381 = vmatprep.subr.mxu0 0.0
  %2382 = vmatpush1.msra.mxu0 0.0
  %2383 = vmatprep.subr.mxu0 0.0
  %2384 = vmatpush1.msra.mxu0 0.0
  %2385 = vmatprep.subr.mxu0 0.0
  %2386 = vmatpush1.msra.mxu0 0.0
  %2387 = vmatprep.subr.mxu0 0.0
  %2388 = vmatpush1.msra.mxu0 0.0
  %2389 = vmatprep.subr.mxu0 0.0
  %2390 = vmatpush1.msra.mxu0 0.0
  %2391 = vmatprep.subr.mxu0 0.0
  %2392 = vmatpush1.msra.mxu0 0.0
  %2393 = vmatprep.subr.mxu0 0.0
  %2394 = vmatpush1.msra.mxu0 0.0
  %2395 = vmatprep.subr.mxu0 0.0
  %2396 = vmatpush1.msra.mxu0 0.0
  %2397 = vmatprep.subr.mxu0 0.0
  %2398 = vmatpush1.msra.mxu0 0.0
  %2399 = vmatprep.mubr.f32.mxu0 0.0
  %2400 = vmatmul.mubr.f32.gmra.mrb[0].mxu0 %v2333
  %v2401 = vpop.f32.mrb[0].mxu0
  %v2402 = vadd.f32 0.0, %v2401
  %v2403 = vpop.f32.mrb[0].mxu0
  %2404 = vdwg.mxu0
  %v2405 = vadd.f32 %v2326, %v2402
  %v2406 = vadd.f32 %v1372, %v1373
  %v2407 = vadd.f32 %v2406, %v1374
  %v2408 = vld [vmem:[%s5 + $0x1a0] sm:$0xff]
  %v2409 = vld [vmem:[%s5 + $0x1a8] sm:$0xff]
  %v2410 = vld [vmem:[%s5 + $0x1b0] sm:$0xff]
  %v2411 = vld [vmem:[%s5 + $0x1b8] sm:$0xff]
  %v2413 = vsel %vm1387, %v2407, 0
  %2415 = vmatprep.subr.mxu0 0.0
  %2416 = vmatpush1.msra.mxu0 %v2408
  %2417 = vmatprep.subr.mxu0 0.0
  %2418 = vmatpush1.msra.mxu0 %v2409
  %2419 = vmatprep.subr.mxu0 0.0
  %2420 = vmatpush1.msra.mxu0 %v2410
  %2421 = vmatprep.subr.mxu0 0.0
  %2422 = vmatpush1.msra.mxu0 %v2411
  %2423 = vmatprep.subr.mxu0 0.0
  %2424 = vmatpush1.msra.mxu0 0.0
  %2425 = vmatprep.subr.mxu0 0.0
  %2426 = vmatpush1.msra.mxu0 0.0
  %2427 = vmatprep.subr.mxu0 0.0
  %2428 = vmatpush1.msra.mxu0 0.0
  %2429 = vmatprep.subr.mxu0 0.0
  %2430 = vmatpush1.msra.mxu0 0.0
  %2431 = vmatprep.subr.mxu0 0.0
  %2432 = vmatpush1.msra.mxu0 0.0
  %2433 = vmatprep.subr.mxu0 0.0
  %2434 = vmatpush1.msra.mxu0 0.0
  %2435 = vmatprep.subr.mxu0 0.0
  %2436 = vmatpush1.msra.mxu0 0.0
  %2437 = vmatprep.subr.mxu0 0.0
  %2438 = vmatpush1.msra.mxu0 0.0
  %2439 = vmatprep.subr.mxu0 0.0
  %2440 = vmatpush1.msra.mxu0 0.0
  %2441 = vmatprep.subr.mxu0 0.0
  %2442 = vmatpush1.msra.mxu0 0.0
  %2443 = vmatprep.subr.mxu0 0.0
  %2444 = vmatpush1.msra.mxu0 0.0
  %2445 = vmatprep.subr.mxu0 0.0
  %2446 = vmatpush1.msra.mxu0 0.0
  %2447 = vmatprep.subr.mxu0 0.0
  %2448 = vmatpush1.msra.mxu0 0.0
  %2449 = vmatprep.subr.mxu0 0.0
  %2450 = vmatpush1.msra.mxu0 0.0
  %2451 = vmatprep.subr.mxu0 0.0
  %2452 = vmatpush1.msra.mxu0 0.0
  %2453 = vmatprep.subr.mxu0 0.0
  %2454 = vmatpush1.msra.mxu0 0.0
  %2455 = vmatprep.subr.mxu0 0.0
  %2456 = vmatpush1.msra.mxu0 0.0
  %2457 = vmatprep.subr.mxu0 0.0
  %2458 = vmatpush1.msra.mxu0 0.0
  %2459 = vmatprep.subr.mxu0 0.0
  %2460 = vmatpush1.msra.mxu0 0.0
  %2461 = vmatprep.subr.mxu0 0.0
  %2462 = vmatpush1.msra.mxu0 0.0
  %2463 = vmatprep.subr.mxu0 0.0
  %2464 = vmatpush1.msra.mxu0 0.0
  %2465 = vmatprep.subr.mxu0 0.0
  %2466 = vmatpush1.msra.mxu0 0.0
  %2467 = vmatprep.subr.mxu0 0.0
  %2468 = vmatpush1.msra.mxu0 0.0
  %2469 = vmatprep.subr.mxu0 0.0
  %2470 = vmatpush1.msra.mxu0 0.0
  %2471 = vmatprep.subr.mxu0 0.0
  %2472 = vmatpush1.msra.mxu0 0.0
  %2473 = vmatprep.subr.mxu0 0.0
  %2474 = vmatpush1.msra.mxu0 0.0
  %2475 = vmatprep.subr.mxu0 0.0
  %2476 = vmatpush1.msra.mxu0 0.0
  %2477 = vmatprep.subr.mxu0 0.0
  %2478 = vmatpush1.msra.mxu0 0.0
  %2479 = vmatprep.mubr.f32.mxu0 0.0
  %2480 = vmatmul.mubr.f32.gmra.mrb[0].mxu0 %v2413
  %v2481 = vpop.f32.mrb[0].mxu0
  %v2482 = vadd.f32 0.0, %v2481
  %v2483 = vpop.f32.mrb[0].mxu0
  %2484 = vdwg.mxu0
  %v2485 = vadd.f32 %v2405, %v2482
  %v2486 = vadd.f32 %v1374, %v1375
  %v2487 = vld [vmem:[%s5 + $0x1c0] sm:$0xff]
  %v2488 = vld [vmem:[%s5 + $0x1c8] sm:$0xff]
  %v2489 = vld [vmem:[%s5 + $0x1d0] sm:$0xff]
  %v2490 = vld [vmem:[%s5 + $0x1d8] sm:$0xff]
  %v2492 = vsel %vm1387, %v2486, 0
  %2494 = vmatprep.subr.mxu0 0.0
  %2495 = vmatpush1.msra.mxu0 %v2487
  %2496 = vmatprep.subr.mxu0 0.0
  %2497 = vmatpush1.msra.mxu0 %v2488
  %2498 = vmatprep.subr.mxu0 0.0
  %2499 = vmatpush1.msra.mxu0 %v2489
  %2500 = vmatprep.subr.mxu0 0.0
  %2501 = vmatpush1.msra.mxu0 %v2490
  %2502 = vmatprep.subr.mxu0 0.0
  %2503 = vmatpush1.msra.mxu0 0.0
  %2504 = vmatprep.subr.mxu0 0.0
  %2505 = vmatpush1.msra.mxu0 0.0
  %2506 = vmatprep.subr.mxu0 0.0
  %2507 = vmatpush1.msra.mxu0 0.0
  %2508 = vmatprep.subr.mxu0 0.0
  %2509 = vmatpush1.msra.mxu0 0.0
  %2510 = vmatprep.subr.mxu0 0.0
  %2511 = vmatpush1.msra.mxu0 0.0
  %2512 = vmatprep.subr.mxu0 0.0
  %2513 = vmatpush1.msra.mxu0 0.0
  %2514 = vmatprep.subr.mxu0 0.0
  %2515 = vmatpush1.msra.mxu0 0.0
  %2516 = vmatprep.subr.mxu0 0.0
  %2517 = vmatpush1.msra.mxu0 0.0
  %2518 = vmatprep.subr.mxu0 0.0
  %2519 = vmatpush1.msra.mxu0 0.0
  %2520 = vmatprep.subr.mxu0 0.0
  %2521 = vmatpush1.msra.mxu0 0.0
  %2522 = vmatprep.subr.mxu0 0.0
  %2523 = vmatpush1.msra.mxu0 0.0
  %2524 = vmatprep.subr.mxu0 0.0
  %2525 = vmatpush1.msra.mxu0 0.0
  %2526 = vmatprep.subr.mxu0 0.0
  %2527 = vmatpush1.msra.mxu0 0.0
  %2528 = vmatprep.subr.mxu0 0.0
  %2529 = vmatpush1.msra.mxu0 0.0
  %2530 = vmatprep.subr.mxu0 0.0
  %2531 = vmatpush1.msra.mxu0 0.0
  %2532 = vmatprep.subr.mxu0 0.0
  %2533 = vmatpush1.msra.mxu0 0.0
  %2534 = vmatprep.subr.mxu0 0.0
  %2535 = vmatpush1.msra.mxu0 0.0
  %2536 = vmatprep.subr.mxu0 0.0
  %2537 = vmatpush1.msra.mxu0 0.0
  %2538 = vmatprep.subr.mxu0 0.0
  %2539 = vmatpush1.msra.mxu0 0.0
  %2540 = vmatprep.subr.mxu0 0.0
  %2541 = vmatpush1.msra.mxu0 0.0
  %2542 = vmatprep.subr.mxu0 0.0
  %2543 = vmatpush1.msra.mxu0 0.0
  %2544 = vmatprep.subr.mxu0 0.0
  %2545 = vmatpush1.msra.mxu0 0.0
  %2546 = vmatprep.subr.mxu0 0.0
  %2547 = vmatpush1.msra.mxu0 0.0
  %2548 = vmatprep.subr.mxu0 0.0
  %2549 = vmatpush1.msra.mxu0 0.0
  %2550 = vmatprep.subr.mxu0 0.0
  %2551 = vmatpush1.msra.mxu0 0.0
  %2552 = vmatprep.subr.mxu0 0.0
  %2553 = vmatpush1.msra.mxu0 0.0
  %2554 = vmatprep.subr.mxu0 0.0
  %2555 = vmatpush1.msra.mxu0 0.0
  %2556 = vmatprep.subr.mxu0 0.0
  %2557 = vmatpush1.msra.mxu0 0.0
  %2558 = vmatprep.mubr.f32.mxu0 0.0
  %2559 = vmatmul.mubr.f32.gmra.mrb[0].mxu0 %v2492
  %v2560 = vpop.f32.mrb[0].mxu0
  %v2561 = vadd.f32 0.0, %v2560
  %v2562 = vpop.f32.mrb[0].mxu0
  %2563 = vdwg.mxu0
  %v2564 = vadd.f32 %v2485, %v2561
  %v2565 = vadd.f32 %v1375, %v1376
  %v2566 = vld [vmem:[%s5 + $0x1e0] sm:$0xff]
  %v2567 = vld [vmem:[%s5 + $0x1e8] sm:$0xff]
  %v2568 = vld [vmem:[%s5 + $0x1f0] sm:$0xff]
  %v2569 = vld [vmem:[%s5 + $0x1f8] sm:$0xff]
  %v2571 = vsel %vm1387, %v2565, 0
  %2573 = vmatprep.subr.mxu0 0.0
  %2574 = vmatpush1.msra.mxu0 %v2566
  %2575 = vmatprep.subr.mxu0 0.0
  %2576 = vmatpush1.msra.mxu0 %v2567
  %2577 = vmatprep.subr.mxu0 0.0
  %2578 = vmatpush1.msra.mxu0 %v2568
  %2579 = vmatprep.subr.mxu0 0.0
  %2580 = vmatpush1.msra.mxu0 %v2569
  %2581 = vmatprep.subr.mxu0 0.0
  %2582 = vmatpush1.msra.mxu0 0.0
  %2583 = vmatprep.subr.mxu0 0.0
  %2584 = vmatpush1.msra.mxu0 0.0
  %2585 = vmatprep.subr.mxu0 0.0
  %2586 = vmatpush1.msra.mxu0 0.0
  %2587 = vmatprep.subr.mxu0 0.0
  %2588 = vmatpush1.msra.mxu0 0.0
  %2589 = vmatprep.subr.mxu0 0.0
  %2590 = vmatpush1.msra.mxu0 0.0
  %2591 = vmatprep.subr.mxu0 0.0
  %2592 = vmatpush1.msra.mxu0 0.0
  %2593 = vmatprep.subr.mxu0 0.0
  %2594 = vmatpush1.msra.mxu0 0.0
  %2595 = vmatprep.subr.mxu0 0.0
  %2596 = vmatpush1.msra.mxu0 0.0
  %2597 = vmatprep.subr.mxu0 0.0
  %2598 = vmatpush1.msra.mxu0 0.0
  %2599 = vmatprep.subr.mxu0 0.0
  %2600 = vmatpush1.msra.mxu0 0.0
  %2601 = vmatprep.subr.mxu0 0.0
  %2602 = vmatpush1.msra.mxu0 0.0
  %2603 = vmatprep.subr.mxu0 0.0
  %2604 = vmatpush1.msra.mxu0 0.0
  %2605 = vmatprep.subr.mxu0 0.0
  %2606 = vmatpush1.msra.mxu0 0.0
  %2607 = vmatprep.subr.mxu0 0.0
  %2608 = vmatpush1.msra.mxu0 0.0
  %2609 = vmatprep.subr.mxu0 0.0
  %2610 = vmatpush1.msra.mxu0 0.0
  %2611 = vmatprep.subr.mxu0 0.0
  %2612 = vmatpush1.msra.mxu0 0.0
  %2613 = vmatprep.subr.mxu0 0.0
  %2614 = vmatpush1.msra.mxu0 0.0
  %2615 = vmatprep.subr.mxu0 0.0
  %2616 = vmatpush1.msra.mxu0 0.0
  %2617 = vmatprep.subr.mxu0 0.0
  %2618 = vmatpush1.msra.mxu0 0.0
  %2619 = vmatprep.subr.mxu0 0.0
  %2620 = vmatpush1.msra.mxu0 0.0
  %2621 = vmatprep.subr.mxu0 0.0
  %2622 = vmatpush1.msra.mxu0 0.0
  %2623 = vmatprep.subr.mxu0 0.0
  %2624 = vmatpush1.msra.mxu0 0.0
  %2625 = vmatprep.subr.mxu0 0.0
  %2626 = vmatpush1.msra.mxu0 0.0
  %2627 = vmatprep.subr.mxu0 0.0
  %2628 = vmatpush1.msra.mxu0 0.0
  %2629 = vmatprep.subr.mxu0 0.0
  %2630 = vmatpush1.msra.mxu0 0.0
  %2631 = vmatprep.subr.mxu0 0.0
  %2632 = vmatpush1.msra.mxu0 0.0
  %2633 = vmatprep.subr.mxu0 0.0
  %2634 = vmatpush1.msra.mxu0 0.0
  %2635 = vmatprep.subr.mxu0 0.0
  %2636 = vmatpush1.msra.mxu0 0.0
  %2637 = vmatprep.mubr.f32.mxu0 0.0
  %2638 = vmatmul.mubr.f32.gmra.mrb[0].mxu0 %v2571
  %v2639 = vpop.f32.mrb[0].mxu0
  %v2640 = vadd.f32 0.0, %v2639
  %v2641 = vpop.f32.mrb[0].mxu0
  %2642 = vdwg.mxu0
  %v2643 = vadd.f32 %v2564, %v2640
  %v2644 = vld [vmem:[%s6 + $0x2] sm:$0x1]
  %v2645 = vld [vmem:[%s6 + $0x3] sm:$0x1]
  %v2646 = vld [vmem:[%s1] sm:$0xff]
  %v2647 = vld [vmem:[%s1 + $0x8] sm:$0xff]
  %v2648 = vld [vmem:[%s1 + $0x10] sm:$0xff]
  %v2649 = vld [vmem:[%s1 + $0x18] sm:$0xff]
  %v2650 = vld [vmem:[%s1 + $0x20] sm:$0xff]
  %v2651 = vld [vmem:[%s4] sm:$0x3f]
  %v2652 = vlaneseq
  %v2653 = vshrl.u32 %v2652, 7
  %v2654 = vsub.s32 0, %v2653
  %v2655 = vrot.slane %v2644, %v2654
  %vm2656 = vcmask 48128
  %v2658 = vsel %vm2656, %v2646, 0
  %v2661 = vsel %vm2656, %v2647, 0
  %v2664 = vsel %vm2656, %v2648, 0
  %v2667 = vsel %vm2656, %v2649, 0
  %v2670 = vsel %vm2656, %v2650, 0
  %vm2672 = vcmask 1045504
  %v2674 = vsel %vm2672, %v2651, 0
  %2676 = vmatprep.subr.mxu0 0.0
  %2677 = vmatpush1.msra.mxu0 %v2674
  %2678 = vmatprep.subr.mxu0 0.0
  %2679 = vmatpush1.msra.mxu0 0.0
  %2680 = vmatprep.subr.mxu0 0.0
  %2681 = vmatpush1.msra.mxu0 0.0
  %2682 = vmatprep.subr.mxu0 0.0
  %2683 = vmatpush1.msra.mxu0 0.0
  %2684 = vmatprep.subr.mxu0 0.0
  %2685 = vmatpush1.msra.mxu0 0.0
  %2686 = vmatprep.subr.mxu0 0.0
  %2687 = vmatpush1.msra.mxu0 0.0
  %2688 = vmatprep.subr.mxu0 0.0
  %2689 = vmatpush1.msra.mxu0 0.0
  %2690 = vmatprep.subr.mxu0 0.0
  %2691 = vmatpush1.msra.mxu0 0.0
  %2692 = vmatprep.subr.mxu0 0.0
  %2693 = vmatpush1.msra.mxu0 0.0
  %2694 = vmatprep.subr.mxu0 0.0
  %2695 = vmatpush1.msra.mxu0 0.0
  %2696 = vmatprep.subr.mxu0 0.0
  %2697 = vmatpush1.msra.mxu0 0.0
  %2698 = vmatprep.subr.mxu0 0.0
  %2699 = vmatpush1.msra.mxu0 0.0
  %2700 = vmatprep.subr.mxu0 0.0
  %2701 = vmatpush1.msra.mxu0 0.0
  %2702 = vmatprep.subr.mxu0 0.0
  %2703 = vmatpush1.msra.mxu0 0.0
  %2704 = vmatprep.subr.mxu0 0.0
  %2705 = vmatpush1.msra.mxu0 0.0
  %2706 = vmatprep.subr.mxu0 0.0
  %2707 = vmatpush1.msra.mxu0 0.0
  %2708 = vmatprep.subr.mxu0 0.0
  %2709 = vmatpush1.msra.mxu0 0.0
  %2710 = vmatprep.subr.mxu0 0.0
  %2711 = vmatpush1.msra.mxu0 0.0
  %2712 = vmatprep.subr.mxu0 0.0
  %2713 = vmatpush1.msra.mxu0 0.0
  %2714 = vmatprep.subr.mxu0 0.0
  %2715 = vmatpush1.msra.mxu0 0.0
  %2716 = vmatprep.subr.mxu0 0.0
  %2717 = vmatpush1.msra.mxu0 0.0
  %2718 = vmatprep.subr.mxu0 0.0
  %2719 = vmatpush1.msra.mxu0 0.0
  %2720 = vmatprep.subr.mxu0 0.0
  %2721 = vmatpush1.msra.mxu0 0.0
  %2722 = vmatprep.subr.mxu0 0.0
  %2723 = vmatpush1.msra.mxu0 0.0
  %2724 = vmatprep.subr.mxu0 0.0
  %2725 = vmatpush1.msra.mxu0 0.0
  %2726 = vmatprep.subr.mxu0 0.0
  %2727 = vmatpush1.msra.mxu0 0.0
  %2728 = vmatprep.subr.mxu0 0.0
  %2729 = vmatpush1.msra.mxu0 0.0
  %2730 = vmatprep.subr.mxu0 0.0
  %2731 = vmatpush1.msra.mxu0 0.0
  %2732 = vmatprep.subr.mxu0 0.0
  %2733 = vmatpush1.msra.mxu0 0.0
  %2734 = vmatprep.subr.mxu0 0.0
  %2735 = vmatpush1.msra.mxu0 0.0
  %2736 = vmatprep.subr.mxu0 0.0
  %2737 = vmatpush1.msra.mxu0 0.0
  %2738 = vmatprep.subr.mxu0 0.0
  %2739 = vmatpush1.msra.mxu0 0.0
  %2740 = vmatprep.mubr.f32.mxu0 0.0
  %2741 = vmatmul.mubr.f32.gmra.mrb[0].mxu0 %v2658
  %v2742 = vpop.f32.mrb[0].mxu0
  %v2743 = vadd.f32 %v2655, %v2742
  %v2744 = vpop.f32.mrb[0].mxu0
  %2745 = vmatprep.mubr.f32.mxu0 0.0
  %2746 = vmatmul.mubr.f32.gmra.mrb[0].mxu0 %v2661
  %v2747 = vpop.f32.mrb[0].mxu0
  %v2748 = vadd.f32 %v2655, %v2747
  %v2749 = vpop.f32.mrb[0].mxu0
  %2750 = vmatprep.mubr.f32.mxu0 0.0
  %2751 = vmatmul.mubr.f32.gmra.mrb[0].mxu0 %v2664
  %v2752 = vpop.f32.mrb[0].mxu0
  %v2753 = vadd.f32 %v2655, %v2752
  %v2754 = vpop.f32.mrb[0].mxu0
  %2755 = vmatprep.mubr.f32.mxu0 0.0
  %2756 = vmatmul.mubr.f32.gmra.mrb[0].mxu0 %v2667
  %v2757 = vpop.f32.mrb[0].mxu0
  %v2758 = vadd.f32 %v2655, %v2757
  %v2759 = vpop.f32.mrb[0].mxu0
  %2760 = vmatprep.mubr.f32.mxu0 0.0
  %2761 = vmatmul.mubr.f32.gmra.mrb[0].mxu0 %v2670
  %v2762 = vpop.f32.mrb[0].mxu0
  %v2763 = vadd.f32 %v2655, %v2762
  %v2764 = vpop.f32.mrb[0].mxu0
  %2765 = vdwg.mxu0
  %v2766 = vmax.f32 %v2743, 0.0
  %v2767 = vmax.f32 %v2748, 0.0
  %v2768 = vmax.f32 %v2753, 0.0
  %v2769 = vmax.f32 %v2758, 0.0
  %v2770 = vmax.f32 %v2763, 0.0
  %v2771 = vld [vmem:[%s5 + $0x200] sm:$0xff]
  %v2772 = vld [vmem:[%s5 + $0x208] sm:$0xff]
  %v2773 = vld [vmem:[%s5 + $0x210] sm:$0xff]
  %v2774 = vld [vmem:[%s5 + $0x218] sm:$0xff]
  %v2775 = vld [vmem:[%s5 + $0x220] sm:$0xff]
  %v2776 = vld [vmem:[%s5 + $0x228] sm:$0xff]
  %v2777 = vld [vmem:[%s5 + $0x230] sm:$0xff]
  %v2778 = vld [vmem:[%s5 + $0x238] sm:$0xff]
  %v2779 = vld [vmem:[%s5 + $0x240] sm:$0xff]
  %v2780 = vld [vmem:[%s5 + $0x248] sm:$0xff]
  %v2781 = vld [vmem:[%s5 + $0x250] sm:$0xff]
  %v2782 = vld [vmem:[%s5 + $0x258] sm:$0xff]
  %v2783 = vld [vmem:[%s5 + $0x260] sm:$0xff]
  %v2784 = vld [vmem:[%s5 + $0x268] sm:$0xff]
  %v2785 = vld [vmem:[%s5 + $0x270] sm:$0xff]
  %v2786 = vld [vmem:[%s5 + $0x278] sm:$0xff]
  %v2787 = vlaneseq
  %v2788 = vshrl.u32 %v2787, 7
  %v2789 = vsub.s32 0, %v2788
  %v2790 = vrot.slane %v2645, %v2789
  %2791 = vmatprep.subr.mxu0 0.0
  %2792 = vmatpush1.msra.mxu0 %v2771
  %2793 = vmatprep.subr.mxu0 0.0
  %2794 = vmatpush1.msra.mxu0 %v2772
  %2795 = vmatprep.subr.mxu0 0.0
  %2796 = vmatpush1.msra.mxu0 %v2773
  %2797 = vmatprep.subr.mxu0 0.0
  %2798 = vmatpush1.msra.mxu0 %v2774
  %2799 = vmatprep.subr.mxu0 0.0
  %2800 = vmatpush1.msra.mxu0 %v2775
  %2801 = vmatprep.subr.mxu0 0.0
  %2802 = vmatpush1.msra.mxu0 %v2776
  %2803 = vmatprep.subr.mxu0 0.0
  %2804 = vmatpush1.msra.mxu0 %v2777
  %2805 = vmatprep.subr.mxu0 0.0
  %2806 = vmatpush1.msra.mxu0 %v2778
  %2807 = vmatprep.subr.mxu0 0.0
  %2808 = vmatpush1.msra.mxu0 %v2779
  %2809 = vmatprep.subr.mxu0 0.0
  %2810 = vmatpush1.msra.mxu0 %v2780
  %2811 = vmatprep.subr.mxu0 0.0
  %2812 = vmatpush1.msra.mxu0 %v2781
  %2813 = vmatprep.subr.mxu0 0.0
  %2814 = vmatpush1.msra.mxu0 %v2782
  %2815 = vmatprep.subr.mxu0 0.0
  %2816 = vmatpush1.msra.mxu0 %v2783
  %2817 = vmatprep.subr.mxu0 0.0
  %2818 = vmatpush1.msra.mxu0 %v2784
  %2819 = vmatprep.subr.mxu0 0.0
  %2820 = vmatpush1.msra.mxu0 %v2785
  %2821 = vmatprep.subr.mxu0 0.0
  %2822 = vmatpush1.msra.mxu0 %v2786
  %2823 = vmatprep.subr.mxu0 0.0
  %2824 = vmatpush1.msra.mxu0 0.0
  %2825 = vmatprep.subr.mxu0 0.0
  %2826 = vmatpush1.msra.mxu0 0.0
  %2827 = vmatprep.subr.mxu0 0.0
  %2828 = vmatpush1.msra.mxu0 0.0
  %2829 = vmatprep.subr.mxu0 0.0
  %2830 = vmatpush1.msra.mxu0 0.0
  %2831 = vmatprep.subr.mxu0 0.0
  %2832 = vmatpush1.msra.mxu0 0.0
  %2833 = vmatprep.subr.mxu0 0.0
  %2834 = vmatpush1.msra.mxu0 0.0
  %2835 = vmatprep.subr.mxu0 0.0
  %2836 = vmatpush1.msra.mxu0 0.0
  %2837 = vmatprep.subr.mxu0 0.0
  %2838 = vmatpush1.msra.mxu0 0.0
  %2839 = vmatprep.subr.mxu0 0.0
  %2840 = vmatpush1.msra.mxu0 0.0
  %2841 = vmatprep.subr.mxu0 0.0
  %2842 = vmatpush1.msra.mxu0 0.0
  %2843 = vmatprep.subr.mxu0 0.0
  %2844 = vmatpush1.msra.mxu0 0.0
  %2845 = vmatprep.subr.mxu0 0.0
  %2846 = vmatpush1.msra.mxu0 0.0
  %2847 = vmatprep.subr.mxu0 0.0
  %2848 = vmatpush1.msra.mxu0 0.0
  %2849 = vmatprep.subr.mxu0 0.0
  %2850 = vmatpush1.msra.mxu0 0.0
  %2851 = vmatprep.subr.mxu0 0.0
  %2852 = vmatpush1.msra.mxu0 0.0
  %2853 = vmatprep.subr.mxu0 0.0
  %2854 = vmatpush1.msra.mxu0 0.0
  %2855 = vmatprep.mubr.f32.mxu0 0.0
  %2856 = vmatmul.mubr.f32.gmra.mrb[0].mxu0 %v2766
  %v2857 = vpop.f32.mrb[0].mxu0
  %v2858 = vadd.f32 %v2790, %v2857
  %v2859 = vpop.f32.mrb[0].mxu0
  %2860 = vmatprep.mubr.f32.mxu0 0.0
  %2861 = vmatmul.mubr.f32.gmra.mrb[0].mxu0 %v2767
  %v2862 = vpop.f32.mrb[0].mxu0
  %v2863 = vadd.f32 %v2790, %v2862
  %v2864 = vpop.f32.mrb[0].mxu0
  %2865 = vmatprep.mubr.f32.mxu0 0.0
  %2866 = vmatmul.mubr.f32.gmra.mrb[0].mxu0 %v2768
  %v2867 = vpop.f32.mrb[0].mxu0
  %v2868 = vadd.f32 %v2790, %v2867
  %v2869 = vpop.f32.mrb[0].mxu0
  %2870 = vmatprep.mubr.f32.mxu0 0.0
  %2871 = vmatmul.mubr.f32.gmra.mrb[0].mxu0 %v2769
  %v2872 = vpop.f32.mrb[0].mxu0
  %v2873 = vadd.f32 %v2790, %v2872
  %v2874 = vpop.f32.mrb[0].mxu0
  %2875 = vmatprep.mubr.f32.mxu0 0.0
  %2876 = vmatmul.mubr.f32.gmra.mrb[0].mxu0 %v2770
  %v2877 = vpop.f32.mrb[0].mxu0
  %v2878 = vadd.f32 %v2790, %v2877
  %v2879 = vpop.f32.mrb[0].mxu0
  %2880 = vdwg.mxu0
  %v2881 = vld [vmem:[%s6 + $0x4] sm:$0x1]
  %v2882 = vld [vmem:[%s6 + $0x5] sm:$0x1]
  %v2883 = vld [vmem:[%s6 + $0x6] sm:$0x1]
  %v2884 = vld [vmem:[%s5 + $0x280] sm:$0xff]
  %v2885 = vld [vmem:[%s5 + $0x288] sm:$0xff]
  %v2886 = vld [vmem:[%s5 + $0x290] sm:$0xff]
  %v2887 = vld [vmem:[%s5 + $0x298] sm:$0xff]
  %v2888 = vld [vmem:[%s5 + $0x2a0] sm:$0xff]
  %v2889 = vld [vmem:[%s5 + $0x2a8] sm:$0xff]
  %v2890 = vld [vmem:[%s5 + $0x2b0] sm:$0xff]
  %v2891 = vld [vmem:[%s5 + $0x2b8] sm:$0xff]
  %vm2892 = vcmask 523264
  %v2894 = vsel %vm2892, %v2858, 0
  %v2897 = vsel %vm2892, %v2863, 0
  %v2900 = vsel %vm2892, %v2868, 0
  %v2903 = vsel %vm2892, %v2873, 0
  %v2906 = vsel %vm2892, %v2878, 0
  %2908 = vmatprep.subr.mxu0 0.0
  %2909 = vmatpush1.msra.mxu0 %v2884
  %2910 = vmatprep.subr.mxu0 0.0
  %2911 = vmatpush1.msra.mxu0 %v2885
  %2912 = vmatprep.subr.mxu0 0.0
  %2913 = vmatpush1.msra.mxu0 %v2886
  %2914 = vmatprep.subr.mxu0 0.0
  %2915 = vmatpush1.msra.mxu0 %v2887
  %2916 = vmatprep.subr.mxu0 0.0
  %2917 = vmatpush1.msra.mxu0 %v2888
  %2918 = vmatprep.subr.mxu0 0.0
  %2919 = vmatpush1.msra.mxu0 %v2889
  %2920 = vmatprep.subr.mxu0 0.0
  %2921 = vmatpush1.msra.mxu0 %v2890
  %2922 = vmatprep.subr.mxu0 0.0
  %2923 = vmatpush1.msra.mxu0 %v2891
  %2924 = vmatprep.subr.mxu0 0.0
  %2925 = vmatpush1.msra.mxu0 0.0
  %2926 = vmatprep.subr.mxu0 0.0
  %2927 = vmatpush1.msra.mxu0 0.0
  %2928 = vmatprep.subr.mxu0 0.0
  %2929 = vmatpush1.msra.mxu0 0.0
  %2930 = vmatprep.subr.mxu0 0.0
  %2931 = vmatpush1.msra.mxu0 0.0
  %2932 = vmatprep.subr.mxu0 0.0
  %2933 = vmatpush1.msra.mxu0 0.0
  %2934 = vmatprep.subr.mxu0 0.0
  %2935 = vmatpush1.msra.mxu0 0.0
  %2936 = vmatprep.subr.mxu0 0.0
  %2937 = vmatpush1.msra.mxu0 0.0
  %2938 = vmatprep.subr.mxu0 0.0
  %2939 = vmatpush1.msra.mxu0 0.0
  %2940 = vmatprep.subr.mxu0 0.0
  %2941 = vmatpush1.msra.mxu0 0.0
  %2942 = vmatprep.subr.mxu0 0.0
  %2943 = vmatpush1.msra.mxu0 0.0
  %2944 = vmatprep.subr.mxu0 0.0
  %2945 = vmatpush1.msra.mxu0 0.0
  %2946 = vmatprep.subr.mxu0 0.0
  %2947 = vmatpush1.msra.mxu0 0.0
  %2948 = vmatprep.subr.mxu0 0.0
  %2949 = vmatpush1.msra.mxu0 0.0
  %2950 = vmatprep.subr.mxu0 0.0
  %2951 = vmatpush1.msra.mxu0 0.0
  %2952 = vmatprep.subr.mxu0 0.0
  %2953 = vmatpush1.msra.mxu0 0.0
  %2954 = vmatprep.subr.mxu0 0.0
  %2955 = vmatpush1.msra.mxu0 0.0
  %2956 = vmatprep.subr.mxu0 0.0
  %2957 = vmatpush1.msra.mxu0 0.0
  %2958 = vmatprep.subr.mxu0 0.0
  %2959 = vmatpush1.msra.mxu0 0.0
  %2960 = vmatprep.subr.mxu0 0.0
  %2961 = vmatpush1.msra.mxu0 0.0
  %2962 = vmatprep.subr.mxu0 0.0
  %2963 = vmatpush1.msra.mxu0 0.0
  %2964 = vmatprep.subr.mxu0 0.0
  %2965 = vmatpush1.msra.mxu0 0.0
  %2966 = vmatprep.subr.mxu0 0.0
  %2967 = vmatpush1.msra.mxu0 0.0
  %2968 = vmatprep.subr.mxu0 0.0
  %2969 = vmatpush1.msra.mxu0 0.0
  %2970 = vmatprep.subr.mxu0 0.0
  %2971 = vmatpush1.msra.mxu0 0.0
  %2972 = vmatprep.mubr.f32.mxu0 0.0
  %2973 = vmatmul.mubr.f32.gmra.mrb[0].mxu0 %v2894
  %v2974 = vpop.f32.mrb[0].mxu0
  %v2975 = vadd.f32 0.0, %v2974
  %v2976 = vpop.f32.mrb[0].mxu0
  %2977 = vmatprep.mubr.f32.mxu0 0.0
  %2978 = vmatmul.mubr.f32.gmra.mrb[0].mxu0 %v2897
  %v2979 = vpop.f32.mrb[0].mxu0
  %v2980 = vadd.f32 0.0, %v2979
  %v2981 = vpop.f32.mrb[0].mxu0
  %2982 = vmatprep.mubr.f32.mxu0 0.0
  %2983 = vmatmul.mubr.f32.gmra.mrb[0].mxu0 %v2900
  %v2984 = vpop.f32.mrb[0].mxu0
  %v2985 = vadd.f32 0.0, %v2984
  %v2986 = vpop.f32.mrb[0].mxu0
  %2987 = vmatprep.mubr.f32.mxu0 0.0
  %2988 = vmatmul.mubr.f32.gmra.mrb[0].mxu0 %v2903
  %v2989 = vpop.f32.mrb[0].mxu0
  %v2990 = vadd.f32 0.0, %v2989
  %v2991 = vpop.f32.mrb[0].mxu0
  %2992 = vmatprep.mubr.f32.mxu0 0.0
  %2993 = vmatmul.mubr.f32.gmra.mrb[0].mxu0 %v2906
  %v2994 = vpop.f32.mrb[0].mxu0
  %v2995 = vadd.f32 0.0, %v2994
  %v2996 = vpop.f32.mrb[0].mxu0
  %2997 = vdwg.mxu0
  %v2998 = vadd.f32 %v2643, %v2975
  %v2999 = vadd.f32 %v2643, %v2980
  %v3000 = vadd.f32 %v2643, %v2985
  %v3001 = vadd.f32 %v2643, %v2990
  %v3002 = vadd.f32 %v2643, %v2995
  %v3003 = vlaneseq
  %v3004 = vshrl.u32 %v3003, 7
  %v3005 = vsub.s32 0, %v3004
  %v3006 = vrot.slane %v2881, %v3005
  %v3007 = vadd.f32 %v2998, %v3006
  %v3008 = vadd.f32 %v2999, %v3006
  %v3009 = vadd.f32 %v3000, %v3006
  %v3010 = vadd.f32 %v3001, %v3006
  %v3011 = vadd.f32 %v3002, %v3006
  %v3012 = vmax.f32 %v3007, 0.0
  %v3013 = vmax.f32 %v3008, 0.0
  %v3014 = vmax.f32 %v3009, 0.0
  %v3015 = vmax.f32 %v3010, 0.0
  %v3016 = vmax.f32 %v3011, 0.0
  %v3017 = vld [vmem:[%s5 + $0x2c0] sm:$0xff]
  %v3018 = vld [vmem:[%s5 + $0x2c8] sm:$0xff]
  %v3019 = vld [vmem:[%s5 + $0x2d0] sm:$0xff]
  %v3020 = vld [vmem:[%s5 + $0x2d8] sm:$0xff]
  %v3021 = vld [vmem:[%s5 + $0x2e0] sm:$0xff]
  %v3022 = vld [vmem:[%s5 + $0x2e8] sm:$0xff]
  %v3023 = vld [vmem:[%s5 + $0x2f0] sm:$0xff]
  %v3024 = vld [vmem:[%s5 + $0x2f8] sm:$0xff]
  %v3025 = vlaneseq
  %v3026 = vshrl.u32 %v3025, 7
  %v3027 = vsub.s32 0, %v3026
  %v3028 = vrot.slane %v2882, %v3027
  %v3030 = vsel %vm2892, %v3012, 0
  %v3033 = vsel %vm2892, %v3013, 0
  %v3036 = vsel %vm2892, %v3014, 0
  %v3039 = vsel %vm2892, %v3015, 0
  %v3042 = vsel %vm2892, %v3016, 0
  %3044 = vmatprep.subr.mxu0 0.0
  %3045 = vmatpush1.msra.mxu0 %v3017
  %3046 = vmatprep.subr.mxu0 0.0
  %3047 = vmatpush1.msra.mxu0 %v3018
  %3048 = vmatprep.subr.mxu0 0.0
  %3049 = vmatpush1.msra.mxu0 %v3019
  %3050 = vmatprep.subr.mxu0 0.0
  %3051 = vmatpush1.msra.mxu0 %v3020
  %3052 = vmatprep.subr.mxu0 0.0
  %3053 = vmatpush1.msra.mxu0 %v3021
  %3054 = vmatprep.subr.mxu0 0.0
  %3055 = vmatpush1.msra.mxu0 %v3022
  %3056 = vmatprep.subr.mxu0 0.0
  %3057 = vmatpush1.msra.mxu0 %v3023
  %3058 = vmatprep.subr.mxu0 0.0
  %3059 = vmatpush1.msra.mxu0 %v3024
  %3060 = vmatprep.subr.mxu0 0.0
  %3061 = vmatpush1.msra.mxu0 0.0
  %3062 = vmatprep.subr.mxu0 0.0
  %3063 = vmatpush1.msra.mxu0 0.0
  %3064 = vmatprep.subr.mxu0 0.0
  %3065 = vmatpush1.msra.mxu0 0.0
  %3066 = vmatprep.subr.mxu0 0.0
  %3067 = vmatpush1.msra.mxu0 0.0
  %3068 = vmatprep.subr.mxu0 0.0
  %3069 = vmatpush1.msra.mxu0 0.0
  %3070 = vmatprep.subr.mxu0 0.0
  %3071 = vmatpush1.msra.mxu0 0.0
  %3072 = vmatprep.subr.mxu0 0.0
  %3073 = vmatpush1.msra.mxu0 0.0
  %3074 = vmatprep.subr.mxu0 0.0
  %3075 = vmatpush1.msra.mxu0 0.0
  %3076 = vmatprep.subr.mxu0 0.0
  %3077 = vmatpush1.msra.mxu0 0.0
  %3078 = vmatprep.subr.mxu0 0.0
  %3079 = vmatpush1.msra.mxu0 0.0
  %3080 = vmatprep.subr.mxu0 0.0
  %3081 = vmatpush1.msra.mxu0 0.0
  %3082 = vmatprep.subr.mxu0 0.0
  %3083 = vmatpush1.msra.mxu0 0.0
  %3084 = vmatprep.subr.mxu0 0.0
  %3085 = vmatpush1.msra.mxu0 0.0
  %3086 = vmatprep.subr.mxu0 0.0
  %3087 = vmatpush1.msra.mxu0 0.0
  %3088 = vmatprep.subr.mxu0 0.0
  %3089 = vmatpush1.msra.mxu0 0.0
  %3090 = vmatprep.subr.mxu0 0.0
  %3091 = vmatpush1.msra.mxu0 0.0
  %3092 = vmatprep.subr.mxu0 0.0
  %3093 = vmatpush1.msra.mxu0 0.0
  %3094 = vmatprep.subr.mxu0 0.0
  %3095 = vmatpush1.msra.mxu0 0.0
  %3096 = vmatprep.subr.mxu0 0.0
  %3097 = vmatpush1.msra.mxu0 0.0
  %3098 = vmatprep.subr.mxu0 0.0
  %3099 = vmatpush1.msra.mxu0 0.0
  %3100 = vmatprep.subr.mxu0 0.0
  %3101 = vmatpush1.msra.mxu0 0.0
  %3102 = vmatprep.subr.mxu0 0.0
  %3103 = vmatpush1.msra.mxu0 0.0
  %3104 = vmatprep.subr.mxu0 0.0
  %3105 = vmatpush1.msra.mxu0 0.0
  %3106 = vmatprep.subr.mxu0 0.0
  %3107 = vmatpush1.msra.mxu0 0.0
  %3108 = vmatprep.mubr.f32.mxu0 0.0
  %3109 = vmatmul.mubr.f32.gmra.mrb[0].mxu0 %v3030
  %v3110 = vpop.f32.mrb[0].mxu0
  %v3111 = vadd.f32 %v3028, %v3110
  %v3112 = vpop.f32.mrb[0].mxu0
  %3113 = vmatprep.mubr.f32.mxu0 0.0
  %3114 = vmatmul.mubr.f32.gmra.mrb[0].mxu0 %v3033
  %v3115 = vpop.f32.mrb[0].mxu0
  %v3116 = vadd.f32 %v3028, %v3115
  %v3117 = vpop.f32.mrb[0].mxu0
  %3118 = vmatprep.mubr.f32.mxu0 0.0
  %3119 = vmatmul.mubr.f32.gmra.mrb[0].mxu0 %v3036
  %v3120 = vpop.f32.mrb[0].mxu0
  %v3121 = vadd.f32 %v3028, %v3120
  %v3122 = vpop.f32.mrb[0].mxu0
  %3123 = vmatprep.mubr.f32.mxu0 0.0
  %3124 = vmatmul.mubr.f32.gmra.mrb[0].mxu0 %v3039
  %v3125 = vpop.f32.mrb[0].mxu0
  %v3126 = vadd.f32 %v3028, %v3125
  %v3127 = vpop.f32.mrb[0].mxu0
  %3128 = vmatprep.mubr.f32.mxu0 0.0
  %3129 = vmatmul.mubr.f32.gmra.mrb[0].mxu0 %v3042
  %v3130 = vpop.f32.mrb[0].mxu0
  %v3131 = vadd.f32 %v3028, %v3130
  %v3132 = vpop.f32.mrb[0].mxu0
  %3133 = vdwg.mxu0
  %v3134 = vmax.f32 %v3111, 0.0
  %v3135 = vmax.f32 %v3116, 0.0
  %v3136 = vmax.f32 %v3121, 0.0
  %v3137 = vmax.f32 %v3126, 0.0
  %v3138 = vmax.f32 %v3131, 0.0
  %v3139 = vld [vmem:[%s7] sm:$0xff]
  %v3140 = vld [vmem:[%s7 + $0x8] sm:$0xff]
  %v3141 = vld [vmem:[%s7 + $0x10] sm:$0xff]
  %v3142 = vld [vmem:[%s7 + $0x18] sm:$0xff]
  %v3143 = vld [vmem:[%s7 + $0x20] sm:$0xff]
  %v3144 = vld [vmem:[%s7 + $0x28] sm:$0xff]
  %v3145 = vld [vmem:[%s7 + $0x30] sm:$0xff]
  %v3146 = vld [vmem:[%s7 + $0x38] sm:$0xff]
  %v3147 = vlaneseq
  %v3148 = vshrl.u32 %v3147, 7
  %v3149 = vsub.s32 0, %v3148
  %v3150 = vrot.slane %v2883, %v3149
  %v3152 = vsel %vm2892, %v3134, 0
  %v3155 = vsel %vm2892, %v3135, 0
  %v3158 = vsel %vm2892, %v3136, 0
  %v3161 = vsel %vm2892, %v3137, 0
  %v3164 = vsel %vm2892, %v3138, 0
  %3166 = vmatprep.subr.mxu0 0.0
  %3167 = vmatpush1.msra.mxu0 %v3139
  %3168 = vmatprep.subr.mxu0 0.0
  %3169 = vmatpush1.msra.mxu0 %v3140
  %3170 = vmatprep.subr.mxu0 0.0
  %3171 = vmatpush1.msra.mxu0 %v3141
  %3172 = vmatprep.subr.mxu0 0.0
  %3173 = vmatpush1.msra.mxu0 %v3142
  %3174 = vmatprep.subr.mxu0 0.0
  %3175 = vmatpush1.msra.mxu0 %v3143
  %3176 = vmatprep.subr.mxu0 0.0
  %3177 = vmatpush1.msra.mxu0 %v3144
  %3178 = vmatprep.subr.mxu0 0.0
  %3179 = vmatpush1.msra.mxu0 %v3145
  %3180 = vmatprep.subr.mxu0 0.0
  %3181 = vmatpush1.msra.mxu0 %v3146
  %3182 = vmatprep.subr.mxu0 0.0
  %3183 = vmatpush1.msra.mxu0 0.0
  %3184 = vmatprep.subr.mxu0 0.0
  %3185 = vmatpush1.msra.mxu0 0.0
  %3186 = vmatprep.subr.mxu0 0.0
  %3187 = vmatpush1.msra.mxu0 0.0
  %3188 = vmatprep.subr.mxu0 0.0
  %3189 = vmatpush1.msra.mxu0 0.0
  %3190 = vmatprep.subr.mxu0 0.0
  %3191 = vmatpush1.msra.mxu0 0.0
  %3192 = vmatprep.subr.mxu0 0.0
  %3193 = vmatpush1.msra.mxu0 0.0
  %3194 = vmatprep.subr.mxu0 0.0
  %3195 = vmatpush1.msra.mxu0 0.0
  %3196 = vmatprep.subr.mxu0 0.0
  %3197 = vmatpush1.msra.mxu0 0.0
  %3198 = vmatprep.subr.mxu0 0.0
  %3199 = vmatpush1.msra.mxu0 0.0
  %3200 = vmatprep.subr.mxu0 0.0
  %3201 = vmatpush1.msra.mxu0 0.0
  %3202 = vmatprep.subr.mxu0 0.0
  %3203 = vmatpush1.msra.mxu0 0.0
  %3204 = vmatprep.subr.mxu0 0.0
  %3205 = vmatpush1.msra.mxu0 0.0
  %3206 = vmatprep.subr.mxu0 0.0
  %3207 = vmatpush1.msra.mxu0 0.0
  %3208 = vmatprep.subr.mxu0 0.0
  %3209 = vmatpush1.msra.mxu0 0.0
  %3210 = vmatprep.subr.mxu0 0.0
  %3211 = vmatpush1.msra.mxu0 0.0
  %3212 = vmatprep.subr.mxu0 0.0
  %3213 = vmatpush1.msra.mxu0 0.0
  %3214 = vmatprep.subr.mxu0 0.0
  %3215 = vmatpush1.msra.mxu0 0.0
  %3216 = vmatprep.subr.mxu0 0.0
  %3217 = vmatpush1.msra.mxu0 0.0
  %3218 = vmatprep.subr.mxu0 0.0
  %3219 = vmatpush1.msra.mxu0 0.0
  %3220 = vmatprep.subr.mxu0 0.0
  %3221 = vmatpush1.msra.mxu0 0.0
  %3222 = vmatprep.subr.mxu0 0.0
  %3223 = vmatpush1.msra.mxu0 0.0
  %3224 = vmatprep.subr.mxu0 0.0
  %3225 = vmatpush1.msra.mxu0 0.0
  %3226 = vmatprep.subr.mxu0 0.0
  %3227 = vmatpush1.msra.mxu0 0.0
  %3228 = vmatprep.subr.mxu0 0.0
  %3229 = vmatpush1.msra.mxu0 0.0
  %3230 = vmatprep.mubr.f32.mxu0 0.0
  %3231 = vmatmul.mubr.f32.gmra.mrb[0].mxu0 %v3152
  %v3232 = vpop.f32.mrb[0].mxu0
  %v3233 = vadd.f32 %v3150, %v3232
  %v3234 = vpop.f32.mrb[0].mxu0
  %3235 = vmatprep.mubr.f32.mxu0 0.0
  %3236 = vmatmul.mubr.f32.gmra.mrb[0].mxu0 %v3155
  %v3237 = vpop.f32.mrb[0].mxu0
  %v3238 = vadd.f32 %v3150, %v3237
  %v3239 = vpop.f32.mrb[0].mxu0
  %3240 = vmatprep.mubr.f32.mxu0 0.0
  %3241 = vmatmul.mubr.f32.gmra.mrb[0].mxu0 %v3158
  %v3242 = vpop.f32.mrb[0].mxu0
  %v3243 = vadd.f32 %v3150, %v3242
  %v3244 = vpop.f32.mrb[0].mxu0
  %3245 = vmatprep.mubr.f32.mxu0 0.0
  %3246 = vmatmul.mubr.f32.gmra.mrb[0].mxu0 %v3161
  %v3247 = vpop.f32.mrb[0].mxu0
  %v3248 = vadd.f32 %v3150, %v3247
  %v3249 = vpop.f32.mrb[0].mxu0
  %3250 = vmatprep.mubr.f32.mxu0 0.0
  %3251 = vmatmul.mubr.f32.gmra.mrb[0].mxu0 %v3164
  %v3252 = vpop.f32.mrb[0].mxu0
  %v3253 = vadd.f32 %v3150, %v3252
  %v3254 = vpop.f32.mrb[0].mxu0
  %3255 = vdwg.mxu0
  %vm3256 = vcmask 23552
  %3257 = vst.msk [vmem:[%s8] sm:$0xff] %vm3256, %v3233
  %3258 = vst.msk [vmem:[%s8 + $0x8] sm:$0xff] %vm3256, %v3238
  %3259 = vst.msk [vmem:[%s8 + $0x10] sm:$0xff] %vm3256, %v3243
  %3260 = vst.msk [vmem:[%s8 + $0x18] sm:$0xff] %vm3256, %v3248
  %3261 = vst.msk [vmem:[%s8 + $0x20] sm:$0xff] %vm3256, %v3253
  // Predicated region
  $region34: #{laser_fc_actor_forward.1} parent=0 // pred_check
    _
  $region35: #{laser_fc_actor_forward.1} parent=0 // pred_check_branch
    %3263 = sbr.rel (0) target = $region37
  $region36: #{laser_fc_actor_forward.1} parent=0 // pred_region
    _
  $region37: #{laser_fc_actor_forward.1} parent=0 // pred_fallthru
    _
  // Predicated region
  $region38: #{laser_fc_actor_forward.1} parent=0 // pred_check
    _
  $region39: #{laser_fc_actor_forward.1} parent=0 // pred_check_branch
    %3265 = sbr.rel (0) target = $region41
  $region40: #{laser_fc_actor_forward.1} parent=0 // pred_region
    _
  $region41: #{laser_fc_actor_forward.1} parent=0 // pred_fallthru
    _

</llo_original>
